<compile_context>
chip_gen: v7x
topology: tpu7x:2x2x1
jax: 0.10.0
libtpu: 0.0.40
codegen_flags: <defaults>
</compile_context>

<pallas_src>
import functools

import jax
import jax.numpy as jnp
from jax.experimental import pallas as pl
from jax.experimental.pallas import tpu as pltpu

_OFF = 128  # lane halo on each side of the flat image buffer (must be >= W+1)


# ---------------------------------------------------------------------------
# Fused Pallas kernel: conv1+bn1+relu -> conv2+bn2+residual+relu (bb images)
# ---------------------------------------------------------------------------
def _basic_block_kernel(x_ref, w1_ref, b1_ref, w2_ref, b2_ref, m_ref,
                        o_ref, pad_ref, *, W):
    """Shapes (Cp = channels padded to 8, L = batch_block * H * W):

    x_ref  : (Cp, L)            input; channels on sublanes, batch*spatial on lanes
    w1_ref : (9, Cp, Cp)        conv1 per-tap (Cout, Cin) matrices, BN1 scale folded
    b1_ref : (Cp, 1)            BN1 bias  (beta - mean*scale)
    w2_ref : (9, Cp, Cp)        conv2 per-tap matrices, BN2 scale folded
    b2_ref : (Cp, 1)            BN2 bias
    m_ref  : (4, L)             validity masks: rows = [y>=1, y<=H-2, x>=1, x<=W-2]
    o_ref  : (Cp, L)            output
    pad_ref: (Cp, 2*_OFF + L)   VMEM scratch: zero-bordered flat activation buffer
    """
    Cp, L = x_ref.shape

    # Zero only the two halo strips; the interior is fully overwritten per conv.
    pad_ref[:, 0:_OFF] = jnp.zeros((Cp, _OFF), pad_ref.dtype)
    pad_ref[:, _OFF + L:2 * _OFF + L] = jnp.zeros((Cp, _OFF), pad_ref.dtype)

    top_ok = m_ref[0:1, :]      # 1.0 where y >= 1     (valid for dy = 0 taps)
    bot_ok = m_ref[1:2, :]      # 1.0 where y <= H - 2 (valid for dy = 2 taps)
    left_ok = m_ref[2:3, :]     # 1.0 where x >= 1     (valid for dx = 0 taps)
    right_ok = m_ref[3:4, :]    # 1.0 where x <= W - 2 (valid for dx = 2 taps)

    def conv3x3_acc(w_ref):
        # Accumulate 9 tap matmuls from shifted views of pad_ref.  Row/column
        # masks zero every lane whose true source pixel is outside its image
        # (halo zeros and cross-image leakage are both covered by the masks).
        acc = jnp.zeros((Cp, L), jnp.float32)
        for dy in range(3):
            for dx in range(3):
                s = (dy - 1) * W + (dx - 1)          # static lane shift
                v = pad_ref[:, pl.ds(_OFF + s, L)]   # (Cp, L)
                if dy == 0:
                    v = v * top_ok
                elif dy == 2:
                    v = v * bot_ok
                if dx == 0:
                    v = v * left_ok
                elif dx == 2:
                    v = v * right_ok
                acc = acc + jnp.dot(w_ref[dy * 3 + dx], v,
                                    preferred_element_type=jnp.float32)
        return acc

    xv = x_ref[...]                                   # (Cp, L)

    # ---- conv1 + bn1 (scale folded into w1) + relu (dropout = id in eval) ---
    pad_ref[:, _OFF:_OFF + L] = xv
    h = jnp.maximum(conv3x3_acc(w1_ref) + b1_ref[...], 0.0)

    # ---- conv2 + bn2 + residual add + relu ----------------------------------
    pad_ref[:, _OFF:_OFF + L] = h
    y = jnp.maximum(conv3x3_acc(w2_ref) + b2_ref[...] + xv, 0.0)
    o_ref[...] = y.astype(o_ref.dtype)


# ---------------------------------------------------------------------------
# Wrapper: BN folding, weight re-layout, pallas_call plumbing
# ---------------------------------------------------------------------------
def _round_up(x, m):
    return (x + m - 1) // m * m


def _fold_bn(gamma, beta, mean, var, eps=1e-5):
    scale = gamma / jnp.sqrt(var + eps)
    bias = beta - mean * scale
    return scale, bias


def _fold_weight(w_oihw, scale, c_pad):
    """PyTorch (Cout, Cin, 3, 3) -> (9, c_pad, c_pad) per-tap matrices, BN folded."""
    cout, cin = w_oihw.shape[0], w_oihw.shape[1]
    w = w_oihw * scale[:, None, None, None]                       # fold BN scale
    w = jnp.transpose(w, (2, 3, 0, 1)).reshape(9, cout, cin)      # k = dy*3 + dx
    return jnp.pad(w, ((0, 0), (0, c_pad - cout), (0, c_pad - cin)))


@functools.partial(jax.jit, static_argnames=("batch_block",))
def basic_block_forward(x_nchw, params, *, batch_block=None):
    """BasicBlock forward (eval mode). x_nchw: (N, C, H, W) float32, NCHW.

    batch_block: images per grid step (default: whole batch -> single step).
    On v7x (2 TensorCores) prefer batch_block = N // 2 so both cores are fed.
    """
    N, C, H, W = x_nchw.shape
    HW = H * W
    Cp = _round_up(C, 8)
    bb = N if batch_block is None else batch_block
    assert N % bb == 0, (N, bb)
    assert W + 1 <= _OFF, "halo too small for this image width"
    L = bb * HW

    # (N, C, H, W) -> (Cp, N*HW): channels on sublanes, batch*spatial on lanes.
    x2 = jnp.transpose(x_nchw.reshape(N, C, HW), (1, 0, 2)).reshape(C, N * HW)
    x2 = jnp.pad(x2, ((0, Cp - C), (0, 0)))

    s1, b1 = _fold_bn(params["bn1_gamma"], params["bn1_beta"],
                      params["bn1_mean"], params["bn1_var"])
    s2, b2 = _fold_bn(params["bn2_gamma"], params["bn2_beta"],
                      params["bn2_mean"], params["bn2_var"])
    w1 = _fold_weight(params["w1"], s1, Cp)                       # (9, Cp, Cp)
    w2 = _fold_weight(params["w2"], s2, Cp)
    b1p = jnp.pad(b1, (0, Cp - C))[:, None]                       # (Cp, 1)
    b2p = jnp.pad(b2, (0, Cp - C))[:, None]

    # Per-lane validity masks for one bb-image block (identical for every block).
    idx = jnp.arange(L, dtype=jnp.int32) % HW
    yy = idx // W
    xx = idx % W
    masks = jnp.stack([(yy >= 1), (yy <= H - 2),
                       (xx >= 1), (xx <= W - 2)], axis=0).astype(jnp.float32)

    flops = 2 * (2 * N * HW * C * 9 * C)                          # two 3x3 convs
    bytes_accessed = 4 * (2 * N * Cp * HW + 2 * 9 * Cp * Cp + 2 * Cp + 4 * L)

    kernel = functools.partial(_basic_block_kernel, W=W)
    out2 = pl.pallas_call(
        kernel,
        out_shape=jax.ShapeDtypeStruct((Cp, N * HW), jnp.float32),
        grid=(N // bb,),
        in_specs=[
            pl.BlockSpec((Cp, L), lambda i: (0, i)),
            pl.BlockSpec((9, Cp, Cp), lambda i: (0, 0, 0)),
            pl.BlockSpec((Cp, 1), lambda i: (0, 0)),
            pl.BlockSpec((9, Cp, Cp), lambda i: (0, 0, 0)),
            pl.BlockSpec((Cp, 1), lambda i: (0, 0)),
            pl.BlockSpec((4, L), lambda i: (0, 0)),
        ],
        out_specs=pl.BlockSpec((Cp, L), lambda i: (0, i)),
        scratch_shapes=[
            pltpu.VMEM((Cp, 2 * _OFF + L), jnp.float32),   # zero-bordered buffer
        ],
        compiler_params=pltpu.CompilerParams(
            dimension_semantics=("parallel",),
            vmem_limit_bytes=32 * 1024 * 1024),
        cost_estimate=pl.CostEstimate(flops=flops, transcendentals=0,
                                      bytes_accessed=bytes_accessed),
    )(x2, w1, b1p, w2, b2p, masks)

    out = out2[:C].reshape(C, N, HW)
    return jnp.transpose(out, (1, 0, 2)).reshape(N, C, H, W)


# ---------------------------------------------------------------------------
# Pure-JAX reference (for correctness check) + deterministic init + driver
# ---------------------------------------------------------------------------
def _reference_forward(x, p, eps=1e-5):
    def conv(h, w):
        return jax.lax.conv_general_dilated(
            h, w, window_strides=(1, 1), padding=((1, 1), (1, 1)),
            dimension_numbers=("NCHW", "OIHW", "NCHW"),
            precision=jax.lax.Precision.HIGHEST)

    def bn(h, g, b, m, v):
        s = g / jnp.sqrt(v + eps)
        return h * s[None, :, None, None] + (b - m * s)[None, :, None, None]

    h = jax.nn.relu(bn(conv(x, p["w1"]), p["bn1_gamma"], p["bn1_beta"],
                       p["bn1_mean"], p["bn1_var"]))
    y = bn(conv(h, p["w2"]), p["bn2_gamma"], p["bn2_beta"],
           p["bn2_mean"], p["bn2_var"])
    return jax.nn.relu(y + x)


def init_params(key, inplanes, planes):
    ks = jax.random.split(key, 8)
    return {
        # PyTorch conv weight layout (Cout, Cin, 3, 3); folding happens in-wrapper.
        "w1": jax.random.normal(ks[0], (planes, inplanes, 3, 3), jnp.float32) * 0.1,
        "w2": jax.random.normal(ks[1], (planes, planes, 3, 3), jnp.float32) * 0.1,
        "bn1_gamma": 1.0 + 0.1 * jax.random.normal(ks[2], (planes,), jnp.float32),
        "bn1_beta": 0.1 * jax.random.normal(ks[3], (planes,), jnp.float32),
        "bn1_mean": 0.1 * jax.random.normal(ks[4], (planes,), jnp.float32),
        "bn1_var": 1.0 + 0.1 * jnp.abs(jax.random.normal(ks[5], (planes,), jnp.float32)),
        "bn2_gamma": 1.0 + 0.1 * jax.random.normal(ks[6], (planes,), jnp.float32),
        "bn2_beta": 0.1 * jax.random.normal(ks[7], (planes,), jnp.float32),
        "bn2_mean": jnp.zeros((planes,), jnp.float32),
        "bn2_var": jnp.ones((planes,), jnp.float32),
    }


if __name__ == "__main__":
    N, C, H, W = 2, 4, 16, 16          # inplanes = planes = 4, stride = 1
    key = jax.random.PRNGKey(0)
    kx, kp = jax.random.split(key)
    x = jax.random.normal(kx, (N, C, H, W), jnp.float32)
    params = init_params(kp, C, C)

    out = basic_block_forward(x, params)
    out = jax.block_until_ready(out)

    assert out.shape == (N, C, H, W), out.shape
    assert bool(jnp.all(jnp.isfinite(out)))
    assert bool(jnp.all(out >= 0.0))   # final ReLU

    ref = _reference_forward(x, params)
    assert bool(jnp.allclose(out, ref, atol=2e-2, rtol=2e-2)), (
        float(jnp.max(jnp.abs(out - ref))))

    print("KERNEL_OK")
</pallas_src>

<mosaic_0001>
module attributes {stable_mosaic.version = 11 : i64} {
  func.func @_basic_block_kernel(%arg0: i32, %arg1: memref<8x512xf32, #tpu.memory_space<vmem>>, %arg2: memref<9x8x8xf32, #tpu.memory_space<vmem>>, %arg3: memref<8x1xf32, #tpu.memory_space<vmem>>, %arg4: memref<9x8x8xf32, #tpu.memory_space<vmem>>, %arg5: memref<8x1xf32, #tpu.memory_space<vmem>>, %arg6: memref<4x512xf32, #tpu.memory_space<vmem>>, %arg7: memref<8x512xf32, #tpu.memory_space<vmem>>, %arg8: memref<8x768xf32, #tpu.memory_space<vmem>>) attributes {dimension_semantics = [#tpu.dimension_semantics<parallel>], iteration_bounds = array<i64: 1>, scalar_prefetch = 0 : i64, scratch_operands = 1 : i64, tpu.core_type = #tpu.core_type<tc>, window_params = [{transform_indices = @transform_0, window_bounds = array<i64: 8, 512>}, {pipeline_mode = #tpu.pipeline_mode<synchronous>, transform_indices = @transform_1, window_bounds = array<i64: 9, 8, 8>}, {pipeline_mode = #tpu.pipeline_mode<synchronous>, transform_indices = @transform_2, window_bounds = array<i64: 8, 1>}, {pipeline_mode = #tpu.pipeline_mode<synchronous>, transform_indices = @transform_3, window_bounds = array<i64: 9, 8, 8>}, {pipeline_mode = #tpu.pipeline_mode<synchronous>, transform_indices = @transform_4, window_bounds = array<i64: 8, 1>}, {pipeline_mode = #tpu.pipeline_mode<synchronous>, transform_indices = @transform_5, window_bounds = array<i64: 4, 512>}, {transform_indices = @transform_6, window_bounds = array<i64: 8, 512>}]} {
    %cst = arith.constant 0.000000e+00 : f32
    %0 = vector.broadcast %cst : f32 to vector<8x128xf32>
    %c0 = arith.constant 0 : index
    %c0_0 = arith.constant 0 : index
    %1 = vector.load %arg8[%c0, %c0_0] : memref<8x768xf32, #tpu.memory_space<vmem>>, vector<8x128xf32>
    tpu.vector_store %arg8[%c0, %c0_0], %0 {strides = array<i32>} : memref<8x768xf32, #tpu.memory_space<vmem>>, vector<8x128xf32>,
    %cst_1 = arith.constant 0.000000e+00 : f32
    %2 = vector.broadcast %cst_1 : f32 to vector<8x128xf32>
    %c0_2 = arith.constant 0 : index
    %c640 = arith.constant 640 : index
    %3 = vector.load %arg8[%c0_2, %c640] : memref<8x768xf32, #tpu.memory_space<vmem>>, vector<8x128xf32>
    tpu.vector_store %arg8[%c0_2, %c640], %2 {strides = array<i32>} : memref<8x768xf32, #tpu.memory_space<vmem>>, vector<8x128xf32>,
    %c0_3 = arith.constant 0 : index
    %c0_4 = arith.constant 0 : index
    %4 = vector.load %arg6[%c0_3, %c0_4] : memref<4x512xf32, #tpu.memory_space<vmem>>, vector<1x512xf32>
    %c1 = arith.constant 1 : index
    %c0_5 = arith.constant 0 : index
    %5 = vector.load %arg6[%c1, %c0_5] : memref<4x512xf32, #tpu.memory_space<vmem>>, vector<1x512xf32>
    %c2 = arith.constant 2 : index
    %c0_6 = arith.constant 0 : index
    %6 = vector.load %arg6[%c2, %c0_6] : memref<4x512xf32, #tpu.memory_space<vmem>>, vector<1x512xf32>
    %c3 = arith.constant 3 : index
    %c0_7 = arith.constant 0 : index
    %7 = vector.load %arg6[%c3, %c0_7] : memref<4x512xf32, #tpu.memory_space<vmem>>, vector<1x512xf32>
    %c0_8 = arith.constant 0 : index
    %c0_9 = arith.constant 0 : index
    %8 = vector.load %arg1[%c0_8, %c0_9] : memref<8x512xf32, #tpu.memory_space<vmem>>, vector<8x512xf32>
    %c0_10 = arith.constant 0 : index
    %c128 = arith.constant 128 : index
    %9 = vector.load %arg8[%c0_10, %c128] : memref<8x768xf32, #tpu.memory_space<vmem>>, vector<8x512xf32>
    tpu.vector_store %arg8[%c0_10, %c128], %8 {strides = array<i32>} : memref<8x768xf32, #tpu.memory_space<vmem>>, vector<8x512xf32>,
    %cst_11 = arith.constant 0.000000e+00 : f32
    %10 = vector.broadcast %cst_11 : f32 to vector<8x512xf32>
    %c0_12 = arith.constant 0 : index
    %c111 = arith.constant 111 : index
    %11 = vector.load %arg8[%c0_12, %c111] : memref<8x768xf32, #tpu.memory_space<vmem>>, vector<8x512xf32>
    %12 = vector.broadcast %4 : vector<1x512xf32> to vector<8x512xf32>
    %13 = arith.mulf %11, %12 : vector<8x512xf32>
    %14 = vector.broadcast %6 : vector<1x512xf32> to vector<8x512xf32>
    %15 = arith.mulf %13, %14 : vector<8x512xf32>
    %c0_13 = arith.constant 0 : index
    %c0_14 = arith.constant 0 : index
    %c0_15 = arith.constant 0 : index
    %16 = vector.load %arg2[%c0_13, %c0_14, %c0_15] : memref<9x8x8xf32, #tpu.memory_space<vmem>>, vector<1x8x8xf32>
    %17 = vector.shape_cast %16 : vector<1x8x8xf32> to vector<8x8xf32>
    %cst_16 = arith.constant dense<0.000000e+00> : vector<8x512xf32>
    %18 = tpu.matmul %17, %15, %cst_16 {dimension_numbers = #tpu.dot_dimension_numbers<[1], [0], [0], [1], [0, 0, 1, 1], [], []>} : vector<8x8xf32>, vector<8x512xf32>, vector<8x512xf32> -> vector<8x512xf32>
    %19 = arith.addf %10, %18 : vector<8x512xf32>
    %c0_17 = arith.constant 0 : index
    %c112 = arith.constant 112 : index
    %20 = vector.load %arg8[%c0_17, %c112] : memref<8x768xf32, #tpu.memory_space<vmem>>, vector<8x512xf32>
    %21 = vector.broadcast %4 : vector<1x512xf32> to vector<8x512xf32>
    %22 = arith.mulf %20, %21 : vector<8x512xf32>
    %c1_18 = arith.constant 1 : index
    %c0_19 = arith.constant 0 : index
    %c0_20 = arith.constant 0 : index
    %23 = vector.load %arg2[%c1_18, %c0_19, %c0_20] : memref<9x8x8xf32, #tpu.memory_space<vmem>>, vector<1x8x8xf32>
    %24 = vector.shape_cast %23 : vector<1x8x8xf32> to vector<8x8xf32>
    %cst_21 = arith.constant dense<0.000000e+00> : vector<8x512xf32>
    %25 = tpu.matmul %24, %22, %cst_21 {dimension_numbers = #tpu.dot_dimension_numbers<[1], [0], [0], [1], [0, 0, 1, 1], [], []>} : vector<8x8xf32>, vector<8x512xf32>, vector<8x512xf32> -> vector<8x512xf32>
    %26 = arith.addf %19, %25 : vector<8x512xf32>
    %c0_22 = arith.constant 0 : index
    %c113 = arith.constant 113 : index
    %27 = vector.load %arg8[%c0_22, %c113] : memref<8x768xf32, #tpu.memory_space<vmem>>, vector<8x512xf32>
    %28 = vector.broadcast %4 : vector<1x512xf32> to vector<8x512xf32>
    %29 = arith.mulf %27, %28 : vector<8x512xf32>
    %30 = vector.broadcast %7 : vector<1x512xf32> to vector<8x512xf32>
    %31 = arith.mulf %29, %30 : vector<8x512xf32>
    %c2_23 = arith.constant 2 : index
    %c0_24 = arith.constant 0 : index
    %c0_25 = arith.constant 0 : index
    %32 = vector.load %arg2[%c2_23, %c0_24, %c0_25] : memref<9x8x8xf32, #tpu.memory_space<vmem>>, vector<1x8x8xf32>
    %33 = vector.shape_cast %32 : vector<1x8x8xf32> to vector<8x8xf32>
    %cst_26 = arith.constant dense<0.000000e+00> : vector<8x512xf32>
    %34 = tpu.matmul %33, %31, %cst_26 {dimension_numbers = #tpu.dot_dimension_numbers<[1], [0], [0], [1], [0, 0, 1, 1], [], []>} : vector<8x8xf32>, vector<8x512xf32>, vector<8x512xf32> -> vector<8x512xf32>
    %35 = arith.addf %26, %34 : vector<8x512xf32>
    %c0_27 = arith.constant 0 : index
    %c127 = arith.constant 127 : index
    %36 = vector.load %arg8[%c0_27, %c127] : memref<8x768xf32, #tpu.memory_space<vmem>>, vector<8x512xf32>
    %37 = vector.broadcast %6 : vector<1x512xf32> to vector<8x512xf32>
    %38 = arith.mulf %36, %37 : vector<8x512xf32>
    %c3_28 = arith.constant 3 : index
    %c0_29 = arith.constant 0 : index
    %c0_30 = arith.constant 0 : index
    %39 = vector.load %arg2[%c3_28, %c0_29, %c0_30] : memref<9x8x8xf32, #tpu.memory_space<vmem>>, vector<1x8x8xf32>
    %40 = vector.shape_cast %39 : vector<1x8x8xf32> to vector<8x8xf32>
    %cst_31 = arith.constant dense<0.000000e+00> : vector<8x512xf32>
    %41 = tpu.matmul %40, %38, %cst_31 {dimension_numbers = #tpu.dot_dimension_numbers<[1], [0], [0], [1], [0, 0, 1, 1], [], []>} : vector<8x8xf32>, vector<8x512xf32>, vector<8x512xf32> -> vector<8x512xf32>
    %42 = arith.addf %35, %41 : vector<8x512xf32>
    %c0_32 = arith.constant 0 : index
    %c128_33 = arith.constant 128 : index
    %43 = vector.load %arg8[%c0_32, %c128_33] : memref<8x768xf32, #tpu.memory_space<vmem>>, vector<8x512xf32>
    %c4 = arith.constant 4 : index
    %c0_34 = arith.constant 0 : index
    %c0_35 = arith.constant 0 : index
    %44 = vector.load %arg2[%c4, %c0_34, %c0_35] : memref<9x8x8xf32, #tpu.memory_space<vmem>>, vector<1x8x8xf32>
    %45 = vector.shape_cast %44 : vector<1x8x8xf32> to vector<8x8xf32>
    %cst_36 = arith.constant dense<0.000000e+00> : vector<8x512xf32>
    %46 = tpu.matmul %45, %43, %cst_36 {dimension_numbers = #tpu.dot_dimension_numbers<[1], [0], [0], [1], [0, 0, 1, 1], [], []>} : vector<8x8xf32>, vector<8x512xf32>, vector<8x512xf32> -> vector<8x512xf32>
    %47 = arith.addf %42, %46 : vector<8x512xf32>
    %c0_37 = arith.constant 0 : index
    %c129 = arith.constant 129 : index
    %48 = vector.load %arg8[%c0_37, %c129] : memref<8x768xf32, #tpu.memory_space<vmem>>, vector<8x512xf32>
    %49 = vector.broadcast %7 : vector<1x512xf32> to vector<8x512xf32>
    %50 = arith.mulf %48, %49 : vector<8x512xf32>
    %c5 = arith.constant 5 : index
    %c0_38 = arith.constant 0 : index
    %c0_39 = arith.constant 0 : index
    %51 = vector.load %arg2[%c5, %c0_38, %c0_39] : memref<9x8x8xf32, #tpu.memory_space<vmem>>, vector<1x8x8xf32>
    %52 = vector.shape_cast %51 : vector<1x8x8xf32> to vector<8x8xf32>
    %cst_40 = arith.constant dense<0.000000e+00> : vector<8x512xf32>
    %53 = tpu.matmul %52, %50, %cst_40 {dimension_numbers = #tpu.dot_dimension_numbers<[1], [0], [0], [1], [0, 0, 1, 1], [], []>} : vector<8x8xf32>, vector<8x512xf32>, vector<8x512xf32> -> vector<8x512xf32>
    %54 = arith.addf %47, %53 : vector<8x512xf32>
    %c0_41 = arith.constant 0 : index
    %c143 = arith.constant 143 : index
    %55 = vector.load %arg8[%c0_41, %c143] : memref<8x768xf32, #tpu.memory_space<vmem>>, vector<8x512xf32>
    %56 = vector.broadcast %5 : vector<1x512xf32> to vector<8x512xf32>
    %57 = arith.mulf %55, %56 : vector<8x512xf32>
    %58 = vector.broadcast %6 : vector<1x512xf32> to vector<8x512xf32>
    %59 = arith.mulf %57, %58 : vector<8x512xf32>
    %c6 = arith.constant 6 : index
    %c0_42 = arith.constant 0 : index
    %c0_43 = arith.constant 0 : index
    %60 = vector.load %arg2[%c6, %c0_42, %c0_43] : memref<9x8x8xf32, #tpu.memory_space<vmem>>, vector<1x8x8xf32>
    %61 = vector.shape_cast %60 : vector<1x8x8xf32> to vector<8x8xf32>
    %cst_44 = arith.constant dense<0.000000e+00> : vector<8x512xf32>
    %62 = tpu.matmul %61, %59, %cst_44 {dimension_numbers = #tpu.dot_dimension_numbers<[1], [0], [0], [1], [0, 0, 1, 1], [], []>} : vector<8x8xf32>, vector<8x512xf32>, vector<8x512xf32> -> vector<8x512xf32>
    %63 = arith.addf %54, %62 : vector<8x512xf32>
    %c0_45 = arith.constant 0 : index
    %c144 = arith.constant 144 : index
    %64 = vector.load %arg8[%c0_45, %c144] : memref<8x768xf32, #tpu.memory_space<vmem>>, vector<8x512xf32>
    %65 = vector.broadcast %5 : vector<1x512xf32> to vector<8x512xf32>
    %66 = arith.mulf %64, %65 : vector<8x512xf32>
    %c7 = arith.constant 7 : index
    %c0_46 = arith.constant 0 : index
    %c0_47 = arith.constant 0 : index
    %67 = vector.load %arg2[%c7, %c0_46, %c0_47] : memref<9x8x8xf32, #tpu.memory_space<vmem>>, vector<1x8x8xf32>
    %68 = vector.shape_cast %67 : vector<1x8x8xf32> to vector<8x8xf32>
    %cst_48 = arith.constant dense<0.000000e+00> : vector<8x512xf32>
    %69 = tpu.matmul %68, %66, %cst_48 {dimension_numbers = #tpu.dot_dimension_numbers<[1], [0], [0], [1], [0, 0, 1, 1], [], []>} : vector<8x8xf32>, vector<8x512xf32>, vector<8x512xf32> -> vector<8x512xf32>
    %70 = arith.addf %63, %69 : vector<8x512xf32>
    %c0_49 = arith.constant 0 : index
    %c145 = arith.constant 145 : index
    %71 = vector.load %arg8[%c0_49, %c145] : memref<8x768xf32, #tpu.memory_space<vmem>>, vector<8x512xf32>
    %72 = vector.broadcast %5 : vector<1x512xf32> to vector<8x512xf32>
    %73 = arith.mulf %71, %72 : vector<8x512xf32>
    %74 = vector.broadcast %7 : vector<1x512xf32> to vector<8x512xf32>
    %75 = arith.mulf %73, %74 : vector<8x512xf32>
    %c8 = arith.constant 8 : index
    %c0_50 = arith.constant 0 : index
    %c0_51 = arith.constant 0 : index
    %76 = vector.load %arg2[%c8, %c0_50, %c0_51] : memref<9x8x8xf32, #tpu.memory_space<vmem>>, vector<1x8x8xf32>
    %77 = vector.shape_cast %76 : vector<1x8x8xf32> to vector<8x8xf32>
    %cst_52 = arith.constant dense<0.000000e+00> : vector<8x512xf32>
    %78 = tpu.matmul %77, %75, %cst_52 {dimension_numbers = #tpu.dot_dimension_numbers<[1], [0], [0], [1], [0, 0, 1, 1], [], []>} : vector<8x8xf32>, vector<8x512xf32>, vector<8x512xf32> -> vector<8x512xf32>
    %79 = arith.addf %70, %78 : vector<8x512xf32>
    %c0_53 = arith.constant 0 : index
    %c0_54 = arith.constant 0 : index
    %80 = vector.load %arg3[%c0_53, %c0_54] : memref<8x1xf32, #tpu.memory_space<vmem>>, vector<8x1xf32>
    %81 = vector.broadcast %80 : vector<8x1xf32> to vector<8x512xf32>
    %82 = arith.addf %79, %81 : vector<8x512xf32>
    %cst_55 = arith.constant 0.000000e+00 : f32
    %83 = vector.broadcast %cst_55 : f32 to vector<8x512xf32>
    %84 = arith.maximumf %82, %83 : vector<8x512xf32>
    %c0_56 = arith.constant 0 : index
    %c128_57 = arith.constant 128 : index
    %85 = vector.load %arg8[%c0_56, %c128_57] : memref<8x768xf32, #tpu.memory_space<vmem>>, vector<8x512xf32>
    tpu.vector_store %arg8[%c0_56, %c128_57], %84 {strides = array<i32>} : memref<8x768xf32, #tpu.memory_space<vmem>>, vector<8x512xf32>,
    %cst_58 = arith.constant 0.000000e+00 : f32
    %86 = vector.broadcast %cst_58 : f32 to vector<8x512xf32>
    %c0_59 = arith.constant 0 : index
    %c111_60 = arith.constant 111 : index
    %87 = vector.load %arg8[%c0_59, %c111_60] : memref<8x768xf32, #tpu.memory_space<vmem>>, vector<8x512xf32>
    %88 = vector.broadcast %4 : vector<1x512xf32> to vector<8x512xf32>
    %89 = arith.mulf %87, %88 : vector<8x512xf32>
    %90 = vector.broadcast %6 : vector<1x512xf32> to vector<8x512xf32>
    %91 = arith.mulf %89, %90 : vector<8x512xf32>
    %c0_61 = arith.constant 0 : index
    %c0_62 = arith.constant 0 : index
    %c0_63 = arith.constant 0 : index
    %92 = vector.load %arg4[%c0_61, %c0_62, %c0_63] : memref<9x8x8xf32, #tpu.memory_space<vmem>>, vector<1x8x8xf32>
    %93 = vector.shape_cast %92 : vector<1x8x8xf32> to vector<8x8xf32>
    %cst_64 = arith.constant dense<0.000000e+00> : vector<8x512xf32>
    %94 = tpu.matmul %93, %91, %cst_64 {dimension_numbers = #tpu.dot_dimension_numbers<[1], [0], [0], [1], [0, 0, 1, 1], [], []>} : vector<8x8xf32>, vector<8x512xf32>, vector<8x512xf32> -> vector<8x512xf32>
    %95 = arith.addf %86, %94 : vector<8x512xf32>
    %c0_65 = arith.constant 0 : index
    %c112_66 = arith.constant 112 : index
    %96 = vector.load %arg8[%c0_65, %c112_66] : memref<8x768xf32, #tpu.memory_space<vmem>>, vector<8x512xf32>
    %97 = vector.broadcast %4 : vector<1x512xf32> to vector<8x512xf32>
    %98 = arith.mulf %96, %97 : vector<8x512xf32>
    %c1_67 = arith.constant 1 : index
    %c0_68 = arith.constant 0 : index
    %c0_69 = arith.constant 0 : index
    %99 = vector.load %arg4[%c1_67, %c0_68, %c0_69] : memref<9x8x8xf32, #tpu.memory_space<vmem>>, vector<1x8x8xf32>
    %100 = vector.shape_cast %99 : vector<1x8x8xf32> to vector<8x8xf32>
    %cst_70 = arith.constant dense<0.000000e+00> : vector<8x512xf32>
    %101 = tpu.matmul %100, %98, %cst_70 {dimension_numbers = #tpu.dot_dimension_numbers<[1], [0], [0], [1], [0, 0, 1, 1], [], []>} : vector<8x8xf32>, vector<8x512xf32>, vector<8x512xf32> -> vector<8x512xf32>
    %102 = arith.addf %95, %101 : vector<8x512xf32>
    %c0_71 = arith.constant 0 : index
    %c113_72 = arith.constant 113 : index
    %103 = vector.load %arg8[%c0_71, %c113_72] : memref<8x768xf32, #tpu.memory_space<vmem>>, vector<8x512xf32>
    %104 = vector.broadcast %4 : vector<1x512xf32> to vector<8x512xf32>
    %105 = arith.mulf %103, %104 : vector<8x512xf32>
    %106 = vector.broadcast %7 : vector<1x512xf32> to vector<8x512xf32>
    %107 = arith.mulf %105, %106 : vector<8x512xf32>
    %c2_73 = arith.constant 2 : index
    %c0_74 = arith.constant 0 : index
    %c0_75 = arith.constant 0 : index
    %108 = vector.load %arg4[%c2_73, %c0_74, %c0_75] : memref<9x8x8xf32, #tpu.memory_space<vmem>>, vector<1x8x8xf32>
    %109 = vector.shape_cast %108 : vector<1x8x8xf32> to vector<8x8xf32>
    %cst_76 = arith.constant dense<0.000000e+00> : vector<8x512xf32>
    %110 = tpu.matmul %109, %107, %cst_76 {dimension_numbers = #tpu.dot_dimension_numbers<[1], [0], [0], [1], [0, 0, 1, 1], [], []>} : vector<8x8xf32>, vector<8x512xf32>, vector<8x512xf32> -> vector<8x512xf32>
    %111 = arith.addf %102, %110 : vector<8x512xf32>
    %c0_77 = arith.constant 0 : index
    %c127_78 = arith.constant 127 : index
    %112 = vector.load %arg8[%c0_77, %c127_78] : memref<8x768xf32, #tpu.memory_space<vmem>>, vector<8x512xf32>
    %113 = vector.broadcast %6 : vector<1x512xf32> to vector<8x512xf32>
    %114 = arith.mulf %112, %113 : vector<8x512xf32>
    %c3_79 = arith.constant 3 : index
    %c0_80 = arith.constant 0 : index
    %c0_81 = arith.constant 0 : index
    %115 = vector.load %arg4[%c3_79, %c0_80, %c0_81] : memref<9x8x8xf32, #tpu.memory_space<vmem>>, vector<1x8x8xf32>
    %116 = vector.shape_cast %115 : vector<1x8x8xf32> to vector<8x8xf32>
    %cst_82 = arith.constant dense<0.000000e+00> : vector<8x512xf32>
    %117 = tpu.matmul %116, %114, %cst_82 {dimension_numbers = #tpu.dot_dimension_numbers<[1], [0], [0], [1], [0, 0, 1, 1], [], []>} : vector<8x8xf32>, vector<8x512xf32>, vector<8x512xf32> -> vector<8x512xf32>
    %118 = arith.addf %111, %117 : vector<8x512xf32>
    %c0_83 = arith.constant 0 : index
    %c128_84 = arith.constant 128 : index
    %119 = vector.load %arg8[%c0_83, %c128_84] : memref<8x768xf32, #tpu.memory_space<vmem>>, vector<8x512xf32>
    %c4_85 = arith.constant 4 : index
    %c0_86 = arith.constant 0 : index
    %c0_87 = arith.constant 0 : index
    %120 = vector.load %arg4[%c4_85, %c0_86, %c0_87] : memref<9x8x8xf32, #tpu.memory_space<vmem>>, vector<1x8x8xf32>
    %121 = vector.shape_cast %120 : vector<1x8x8xf32> to vector<8x8xf32>
    %cst_88 = arith.constant dense<0.000000e+00> : vector<8x512xf32>
    %122 = tpu.matmul %121, %119, %cst_88 {dimension_numbers = #tpu.dot_dimension_numbers<[1], [0], [0], [1], [0, 0, 1, 1], [], []>} : vector<8x8xf32>, vector<8x512xf32>, vector<8x512xf32> -> vector<8x512xf32>
    %123 = arith.addf %118, %122 : vector<8x512xf32>
    %c0_89 = arith.constant 0 : index
    %c129_90 = arith.constant 129 : index
    %124 = vector.load %arg8[%c0_89, %c129_90] : memref<8x768xf32, #tpu.memory_space<vmem>>, vector<8x512xf32>
    %125 = vector.broadcast %7 : vector<1x512xf32> to vector<8x512xf32>
    %126 = arith.mulf %124, %125 : vector<8x512xf32>
    %c5_91 = arith.constant 5 : index
    %c0_92 = arith.constant 0 : index
    %c0_93 = arith.constant 0 : index
    %127 = vector.load %arg4[%c5_91, %c0_92, %c0_93] : memref<9x8x8xf32, #tpu.memory_space<vmem>>, vector<1x8x8xf32>
    %128 = vector.shape_cast %127 : vector<1x8x8xf32> to vector<8x8xf32>
    %cst_94 = arith.constant dense<0.000000e+00> : vector<8x512xf32>
    %129 = tpu.matmul %128, %126, %cst_94 {dimension_numbers = #tpu.dot_dimension_numbers<[1], [0], [0], [1], [0, 0, 1, 1], [], []>} : vector<8x8xf32>, vector<8x512xf32>, vector<8x512xf32> -> vector<8x512xf32>
    %130 = arith.addf %123, %129 : vector<8x512xf32>
    %c0_95 = arith.constant 0 : index
    %c143_96 = arith.constant 143 : index
    %131 = vector.load %arg8[%c0_95, %c143_96] : memref<8x768xf32, #tpu.memory_space<vmem>>, vector<8x512xf32>
    %132 = vector.broadcast %5 : vector<1x512xf32> to vector<8x512xf32>
    %133 = arith.mulf %131, %132 : vector<8x512xf32>
    %134 = vector.broadcast %6 : vector<1x512xf32> to vector<8x512xf32>
    %135 = arith.mulf %133, %134 : vector<8x512xf32>
    %c6_97 = arith.constant 6 : index
    %c0_98 = arith.constant 0 : index
    %c0_99 = arith.constant 0 : index
    %136 = vector.load %arg4[%c6_97, %c0_98, %c0_99] : memref<9x8x8xf32, #tpu.memory_space<vmem>>, vector<1x8x8xf32>
    %137 = vector.shape_cast %136 : vector<1x8x8xf32> to vector<8x8xf32>
    %cst_100 = arith.constant dense<0.000000e+00> : vector<8x512xf32>
    %138 = tpu.matmul %137, %135, %cst_100 {dimension_numbers = #tpu.dot_dimension_numbers<[1], [0], [0], [1], [0, 0, 1, 1], [], []>} : vector<8x8xf32>, vector<8x512xf32>, vector<8x512xf32> -> vector<8x512xf32>
    %139 = arith.addf %130, %138 : vector<8x512xf32>
    %c0_101 = arith.constant 0 : index
    %c144_102 = arith.constant 144 : index
    %140 = vector.load %arg8[%c0_101, %c144_102] : memref<8x768xf32, #tpu.memory_space<vmem>>, vector<8x512xf32>
    %141 = vector.broadcast %5 : vector<1x512xf32> to vector<8x512xf32>
    %142 = arith.mulf %140, %141 : vector<8x512xf32>
    %c7_103 = arith.constant 7 : index
    %c0_104 = arith.constant 0 : index
    %c0_105 = arith.constant 0 : index
    %143 = vector.load %arg4[%c7_103, %c0_104, %c0_105] : memref<9x8x8xf32, #tpu.memory_space<vmem>>, vector<1x8x8xf32>
    %144 = vector.shape_cast %143 : vector<1x8x8xf32> to vector<8x8xf32>
    %cst_106 = arith.constant dense<0.000000e+00> : vector<8x512xf32>
    %145 = tpu.matmul %144, %142, %cst_106 {dimension_numbers = #tpu.dot_dimension_numbers<[1], [0], [0], [1], [0, 0, 1, 1], [], []>} : vector<8x8xf32>, vector<8x512xf32>, vector<8x512xf32> -> vector<8x512xf32>
    %146 = arith.addf %139, %145 : vector<8x512xf32>
    %c0_107 = arith.constant 0 : index
    %c145_108 = arith.constant 145 : index
    %147 = vector.load %arg8[%c0_107, %c145_108] : memref<8x768xf32, #tpu.memory_space<vmem>>, vector<8x512xf32>
    %148 = vector.broadcast %5 : vector<1x512xf32> to vector<8x512xf32>
    %149 = arith.mulf %147, %148 : vector<8x512xf32>
    %150 = vector.broadcast %7 : vector<1x512xf32> to vector<8x512xf32>
    %151 = arith.mulf %149, %150 : vector<8x512xf32>
    %c8_109 = arith.constant 8 : index
    %c0_110 = arith.constant 0 : index
    %c0_111 = arith.constant 0 : index
    %152 = vector.load %arg4[%c8_109, %c0_110, %c0_111] : memref<9x8x8xf32, #tpu.memory_space<vmem>>, vector<1x8x8xf32>
    %153 = vector.shape_cast %152 : vector<1x8x8xf32> to vector<8x8xf32>
    %cst_112 = arith.constant dense<0.000000e+00> : vector<8x512xf32>
    %154 = tpu.matmul %153, %151, %cst_112 {dimension_numbers = #tpu.dot_dimension_numbers<[1], [0], [0], [1], [0, 0, 1, 1], [], []>} : vector<8x8xf32>, vector<8x512xf32>, vector<8x512xf32> -> vector<8x512xf32>
    %155 = arith.addf %146, %154 : vector<8x512xf32>
    %c0_113 = arith.constant 0 : index
    %c0_114 = arith.constant 0 : index
    %156 = vector.load %arg5[%c0_113, %c0_114] : memref<8x1xf32, #tpu.memory_space<vmem>>, vector<8x1xf32>
    %157 = vector.broadcast %156 : vector<8x1xf32> to vector<8x512xf32>
    %158 = arith.addf %155, %157 : vector<8x512xf32>
    %159 = arith.addf %158, %8 : vector<8x512xf32>
    %cst_115 = arith.constant 0.000000e+00 : f32
    %160 = vector.broadcast %cst_115 : f32 to vector<8x512xf32>
    %161 = arith.maximumf %159, %160 : vector<8x512xf32>
    %c0_116 = arith.constant 0 : index
    %c0_117 = arith.constant 0 : index
    %162 = vector.load %arg7[%c0_116, %c0_117] : memref<8x512xf32, #tpu.memory_space<vmem>>, vector<8x512xf32>
    tpu.vector_store %arg7[%c0_116, %c0_117], %161 {strides = array<i32>} : memref<8x512xf32, #tpu.memory_space<vmem>>, vector<8x512xf32>,
    return
  }
  func.func @transform_0(%arg0: i32) -> (i32, i32) {
    %c0_i32 = arith.constant 0 : i32
    %c0_i32_0 = arith.constant 0 : i32
    return %c0_i32, %arg0 : i32, i32
  }
  func.func @transform_1(%arg0: i32) -> (i32, i32, i32) {
    %c0_i32 = arith.constant 0 : i32
    %c0_i32_0 = arith.constant 0 : i32
    %c0_i32_1 = arith.constant 0 : i32
    %c0_i32_2 = arith.constant 0 : i32
    return %c0_i32, %c0_i32_0, %c0_i32_1 : i32, i32, i32
  }
  func.func @transform_2(%arg0: i32) -> (i32, i32) {
    %c0_i32 = arith.constant 0 : i32
    %c0_i32_0 = arith.constant 0 : i32
    %c0_i32_1 = arith.constant 0 : i32
    return %c0_i32, %c0_i32_0 : i32, i32
  }
  func.func @transform_3(%arg0: i32) -> (i32, i32, i32) {
    %c0_i32 = arith.constant 0 : i32
    %c0_i32_0 = arith.constant 0 : i32
    %c0_i32_1 = arith.constant 0 : i32
    %c0_i32_2 = arith.constant 0 : i32
    return %c0_i32, %c0_i32_0, %c0_i32_1 : i32, i32, i32
  }
  func.func @transform_4(%arg0: i32) -> (i32, i32) {
    %c0_i32 = arith.constant 0 : i32
    %c0_i32_0 = arith.constant 0 : i32
    %c0_i32_1 = arith.constant 0 : i32
    return %c0_i32, %c0_i32_0 : i32, i32
  }
  func.func @transform_5(%arg0: i32) -> (i32, i32) {
    %c0_i32 = arith.constant 0 : i32
    %c0_i32_0 = arith.constant 0 : i32
    %c0_i32_1 = arith.constant 0 : i32
    return %c0_i32, %c0_i32_0 : i32, i32
  }
  func.func @transform_6(%arg0: i32) -> (i32, i32) {
    %c0_i32 = arith.constant 0 : i32
    %c0_i32_0 = arith.constant 0 : i32
    return %c0_i32, %arg0 : i32, i32
  }
}

</mosaic_0001>

<llo_original>
// kernel: basic_block_forward.1
$region0: #{basic_block_forward.1}
  #allocation0 [shape = 'u32[]', space=smem, size = 0x4, offset = 0x4, fixed_abs, tag = 'smem constant byte address 0x4 - core index']
  #allocation1 [shape = 'u32[144,128]{1,0:T(1,128)}', space=vmem, size = 0x12000, scoped, tag = 'internal scratch']
  #allocation2 [shape = 'f32[8,768]{1,0:T(8,128)}', space=vmem, size = 0x6000, scoped, tag = 'scratch operand']
  %s0 = inlined_call_operand.vmem [shape: f32[8,512], index: 0, kind: input, shape index: {}]
  %s1 = inlined_call_operand.vmem [shape: f32[9,8,8], index: 1, kind: input, shape index: {}]
  %s2 = inlined_call_operand.vmem [shape: f32[8,1], index: 2, kind: input, shape index: {}]
  %s3 = inlined_call_operand.vmem [shape: f32[9,8,8], index: 3, kind: input, shape index: {}]
  %s4 = inlined_call_operand.vmem [shape: f32[8,1], index: 4, kind: input, shape index: {}]
  %s5 = inlined_call_operand.vmem [shape: f32[4,512], index: 5, kind: input, shape index: {}]
  %s6 = inlined_call_operand.vmem [shape: f32[8,512], index: 6, kind: output, shape index: {}]
  %s7 = sld [smem:[#allocation0]]
  $region34: #{basic_block_forward.1} parent=0
    _
  %s9 = ssub.s32 1, %s7
  %s10 = scalar_select 0, %s9, %s7
  // Predicated region
  $region2: #{basic_block_forward.1} parent=0 // pred_check
    _
  $region3: #{basic_block_forward.1} parent=0 // pred_check_branch
    %12 = sbr.rel (0) target = $region5
  $region4: #{basic_block_forward.1} parent=0 // pred_region
    _
  $region5: #{basic_block_forward.1} parent=0 // pred_fallthru
    _
  // Predicated region
  $region6: #{basic_block_forward.1} parent=0 // pred_check
    _
  $region7: #{basic_block_forward.1} parent=0 // pred_check_branch
    %14 = sbr.rel (0) target = $region9
  $region8: #{basic_block_forward.1} parent=0 // pred_region
    _
  $region9: #{basic_block_forward.1} parent=0 // pred_fallthru
    _
  // Predicated region
  $region10: #{basic_block_forward.1} parent=0 // pred_check
    _
  $region11: #{basic_block_forward.1} parent=0 // pred_check_branch
    %16 = sbr.rel (0) target = $region13
  $region12: #{basic_block_forward.1} parent=0 // pred_region
    _
  $region13: #{basic_block_forward.1} parent=0 // pred_fallthru
    _
  // Predicated region
  $region14: #{basic_block_forward.1} parent=0 // pred_check
    _
  $region15: #{basic_block_forward.1} parent=0 // pred_check_branch
    %18 = sbr.rel (0) target = $region17
  $region16: #{basic_block_forward.1} parent=0 // pred_region
    _
  $region17: #{basic_block_forward.1} parent=0 // pred_fallthru
    _
  // Predicated region
  $region18: #{basic_block_forward.1} parent=0 // pred_check
    _
  $region19: #{basic_block_forward.1} parent=0 // pred_check_branch
    %20 = sbr.rel (0) target = $region21
  $region20: #{basic_block_forward.1} parent=0 // pred_region
    _
  $region21: #{basic_block_forward.1} parent=0 // pred_fallthru
    _
  // Predicated region
  $region22: #{basic_block_forward.1} parent=0 // pred_check
    _
  $region23: #{basic_block_forward.1} parent=0 // pred_check_branch
    %22 = sbr.rel (0) target = $region25
  $region24: #{basic_block_forward.1} parent=0 // pred_region
    _
  $region25: #{basic_block_forward.1} parent=0 // pred_fallthru
    _
  %23 = vst [vmem:[#allocation2] sm:$0xff] 0.0
  %24 = vst [vmem:[#allocation2 + $0x28] sm:$0xff] 0.0
  %v25 = vld [vmem:[%s5] ss:$4 sm:$0xf]
  %s26 = scalar_lea.vmem %s5, 1
  %v27 = vld [vmem:[%s26] ss:$4 sm:$0xf]
  %s28 = scalar_lea.vmem %s5, 2
  %v29 = vld [vmem:[%s28] ss:$4 sm:$0xf]
  %s30 = scalar_lea.vmem %s5, 3
  %v31 = vld [vmem:[%s30] ss:$4 sm:$0xf]
  %v32 = vld [vmem:[%s0] sm:$0xff]
  %v33 = vld [vmem:[%s0 + $0x8] sm:$0xff]
  %v34 = vld [vmem:[%s0 + $0x10] sm:$0xff]
  %v35 = vld [vmem:[%s0 + $0x18] sm:$0xff]
  %36 = vst [vmem:[#allocation2 + $0x8] sm:$0xff] %v32
  %37 = vst [vmem:[#allocation2 + $0x10] sm:$0xff] %v33
  %38 = vst [vmem:[#allocation2 + $0x18] sm:$0xff] %v34
  %39 = vst [vmem:[#allocation2 + $0x20] sm:$0xff] %v35
  %v40 = vld [vmem:[#allocation2] sm:$0xff]
  %v41 = vld [vmem:[#allocation2 + $0x8] sm:$0xff]
  %v42 = vld [vmem:[#allocation2 + $0x10] sm:$0xff]
  %v43 = vld [vmem:[#allocation2 + $0x18] sm:$0xff]
  %v44 = vld [vmem:[#allocation2 + $0x20] sm:$0xff]
  %v46 = vlaneseq
  %v47 = vshrl.u32 %v46, 7
  %v48 = vsub.s32 0, %v47
  %v49 = vrot.slane %v25, %v48
  %v50 = vlaneseq
  %v51 = vshrl.u32 %v50, 7
  %v52 = vsub.s32 1, %v51
  %v53 = vrot.slane %v25, %v52
  %v54 = vlaneseq
  %v55 = vshrl.u32 %v54, 7
  %v56 = vsub.s32 2, %v55
  %v57 = vrot.slane %v25, %v56
  %v58 = vlaneseq
  %v59 = vshrl.u32 %v58, 7
  %v60 = vsub.s32 3, %v59
  %v61 = vrot.slane %v25, %v60
  %62 = vrot.lane.b32.xlu0 %v49, 111
  %v63 = vpop.permute.xlu0 %62
  %64 = vrot.lane.b32.xlu0 %v53, 111
  %v65 = vpop.permute.xlu0 %64
  %66 = vrot.lane.b32.xlu0 %v57, 111
  %v67 = vpop.permute.xlu0 %66
  %68 = vrot.lane.b32.xlu0 %v61, 111
  %v69 = vpop.permute.xlu0 %68
  %vm70 = vcmask 908288
  %v71 = vsel %vm70, %v63, %v65
  %v72 = vsel %vm70, %v65, %v67
  %v73 = vsel %vm70, %v67, %v69
  %v79 = vmul.f32 %v40, %v63
  %v80 = vmul.f32 %v41, %v71
  %v81 = vmul.f32 %v42, %v72
  %v82 = vmul.f32 %v43, %v73
  %v83 = vmul.f32 %v44, %v69
  %v85 = vlaneseq
  %v86 = vshrl.u32 %v85, 7
  %v87 = vsub.s32 0, %v86
  %v88 = vrot.slane %v29, %v87
  %v89 = vlaneseq
  %v90 = vshrl.u32 %v89, 7
  %v91 = vsub.s32 1, %v90
  %v92 = vrot.slane %v29, %v91
  %v93 = vlaneseq
  %v94 = vshrl.u32 %v93, 7
  %v95 = vsub.s32 2, %v94
  %v96 = vrot.slane %v29, %v95
  %v97 = vlaneseq
  %v98 = vshrl.u32 %v97, 7
  %v99 = vsub.s32 3, %v98
  %v100 = vrot.slane %v29, %v99
  %101 = vrot.lane.b32.xlu0 %v88, 111
  %v102 = vpop.permute.xlu0 %101
  %103 = vrot.lane.b32.xlu0 %v92, 111
  %v104 = vpop.permute.xlu0 %103
  %105 = vrot.lane.b32.xlu0 %v96, 111
  %v106 = vpop.permute.xlu0 %105
  %107 = vrot.lane.b32.xlu0 %v100, 111
  %v108 = vpop.permute.xlu0 %107
  %v109 = vsel %vm70, %v102, %v104
  %v110 = vsel %vm70, %v104, %v106
  %v111 = vsel %vm70, %v106, %v108
  %v117 = vmul.f32 %v79, %v102
  %v118 = vmul.f32 %v80, %v109
  %v119 = vmul.f32 %v81, %v110
  %v120 = vmul.f32 %v82, %v111
  %v121 = vmul.f32 %v83, %v108
  %v122 = vld [vmem:[%s1] sm:$0xff]
  %123 = vrot.lane.b32.xlu0 %v49, 112
  %v124 = vpop.permute.xlu0 %123
  %125 = vrot.lane.b32.xlu0 %v53, 112
  %v126 = vpop.permute.xlu0 %125
  %127 = vrot.lane.b32.xlu0 %v57, 112
  %v128 = vpop.permute.xlu0 %127
  %129 = vrot.lane.b32.xlu0 %v61, 112
  %v130 = vpop.permute.xlu0 %129
  %vm131 = vcmask 916480
  %v132 = vsel %vm131, %v124, %v126
  %v133 = vsel %vm131, %v126, %v128
  %v134 = vsel %vm131, %v128, %v130
  %v140 = vmul.f32 %v40, %v124
  %v141 = vmul.f32 %v41, %v132
  %v142 = vmul.f32 %v42, %v133
  %v143 = vmul.f32 %v43, %v134
  %v144 = vmul.f32 %v44, %v130
  %s145 = scalar_lea.vmem %s1, 8
  %v146 = vld [vmem:[%s145] sm:$0xff]
  %152 = vrot.lane.b32.xlu0 %v140, 16
  %v153 = vpop.permute.xlu0 %152
  %154 = vrot.lane.b32.xlu0 %v141, 16
  %v155 = vpop.permute.xlu0 %154
  %156 = vrot.lane.b32.xlu0 %v142, 16
  %v157 = vpop.permute.xlu0 %156
  %158 = vrot.lane.b32.xlu0 %v143, 16
  %v159 = vpop.permute.xlu0 %158
  %160 = vrot.lane.b32.xlu0 %v144, 16
  %v161 = vpop.permute.xlu0 %160
  %vm162 = vcmask 130048
  %v163 = vsel %vm162, %v153, %v155
  %v164 = vsel %vm162, %v155, %v157
  %v165 = vsel %vm162, %v157, %v159
  %v166 = vsel %vm162, %v159, %v161
  %vm171 = vcmask 64512
  %v173 = vsel %vm171, %v146, 0
  %175 = vmatprep.subr.mxu0 %v164
  %176 = vmatpush1.msra.mxu0 %v163
  %177 = vmatprep.subr.mxu0 0.0
  %178 = vmatpush1.msra.mxu0 0.0
  %179 = vmatprep.subr.mxu0 0.0
  %180 = vmatpush1.msra.mxu0 0.0
  %181 = vmatprep.subr.mxu0 0.0
  %182 = vmatpush1.msra.mxu0 0.0
  %183 = vmatprep.subr.mxu0 0.0
  %184 = vmatpush1.msra.mxu0 0.0
  %185 = vmatprep.subr.mxu0 0.0
  %186 = vmatpush1.msra.mxu0 0.0
  %187 = vmatprep.subr.mxu0 0.0
  %188 = vmatpush1.msra.mxu0 0.0
  %189 = vmatprep.subr.mxu0 0.0
  %190 = vmatpush1.msra.mxu0 0.0
  %191 = vmatprep.subr.mxu0 0.0
  %192 = vmatpush1.msra.mxu0 0.0
  %193 = vmatprep.subr.mxu0 0.0
  %194 = vmatpush1.msra.mxu0 0.0
  %195 = vmatprep.subr.mxu0 0.0
  %196 = vmatpush1.msra.mxu0 0.0
  %197 = vmatprep.subr.mxu0 0.0
  %198 = vmatpush1.msra.mxu0 0.0
  %199 = vmatprep.subr.mxu0 0.0
  %200 = vmatpush1.msra.mxu0 0.0
  %201 = vmatprep.subr.mxu0 0.0
  %202 = vmatpush1.msra.mxu0 0.0
  %203 = vmatprep.subr.mxu0 0.0
  %204 = vmatpush1.msra.mxu0 0.0
  %205 = vmatprep.subr.mxu0 0.0
  %206 = vmatpush1.msra.mxu0 0.0
  %207 = vmatprep.subr.mxu0 0.0
  %208 = vmatpush1.msra.mxu0 0.0
  %209 = vmatprep.subr.mxu0 0.0
  %210 = vmatpush1.msra.mxu0 0.0
  %211 = vmatprep.subr.mxu0 0.0
  %212 = vmatpush1.msra.mxu0 0.0
  %213 = vmatprep.subr.mxu0 0.0
  %214 = vmatpush1.msra.mxu0 0.0
  %215 = vmatprep.subr.mxu0 0.0
  %216 = vmatpush1.msra.mxu0 0.0
  %217 = vmatprep.subr.mxu0 0.0
  %218 = vmatpush1.msra.mxu0 0.0
  %219 = vmatprep.subr.mxu0 0.0
  %220 = vmatpush1.msra.mxu0 0.0
  %221 = vmatprep.subr.mxu0 0.0
  %222 = vmatpush1.msra.mxu0 0.0
  %223 = vmatprep.subr.mxu0 0.0
  %224 = vmatpush1.msra.mxu0 0.0
  %225 = vmatprep.subr.mxu0 0.0
  %226 = vmatpush1.msra.mxu0 0.0
  %227 = vmatprep.subr.mxu0 0.0
  %228 = vmatpush1.msra.mxu0 0.0
  %229 = vmatprep.subr.mxu0 0.0
  %230 = vmatpush1.msra.mxu0 0.0
  %231 = vmatprep.subr.mxu0 0.0
  %232 = vmatpush1.msra.mxu0 0.0
  %233 = vmatprep.subr.mxu0 0.0
  %234 = vmatpush1.msra.mxu0 0.0
  %235 = vmatprep.subr.mxu0 0.0
  %236 = vmatpush1.msra.mxu0 0.0
  %237 = vmatprep.subr.mxu0 0.0
  %238 = vmatpush1.msra.mxu0 0.0
  %239 = vmatprep.mubr.f32.mxu0 0.0
  %240 = vmatmul.mubr.f32.gmra.mrb[0].mxu0 %v173
  %v241 = vpop.f32.mrb[0].mxu0
  %v242 = vadd.f32 0.0, %v241
  %v243 = vpop.f32.mrb[0].mxu0
  %v244 = vadd.f32 0.0, %v243
  %245 = vdwg.mxu0
  %246 = vmatprep.subr.mxu0 %v166
  %247 = vmatpush1.msra.mxu0 %v165
  %248 = vmatprep.subr.mxu0 0.0
  %249 = vmatpush1.msra.mxu0 0.0
  %250 = vmatprep.subr.mxu0 0.0
  %251 = vmatpush1.msra.mxu0 0.0
  %252 = vmatprep.subr.mxu0 0.0
  %253 = vmatpush1.msra.mxu0 0.0
  %254 = vmatprep.subr.mxu0 0.0
  %255 = vmatpush1.msra.mxu0 0.0
  %256 = vmatprep.subr.mxu0 0.0
  %257 = vmatpush1.msra.mxu0 0.0
  %258 = vmatprep.subr.mxu0 0.0
  %259 = vmatpush1.msra.mxu0 0.0
  %260 = vmatprep.subr.mxu0 0.0
  %261 = vmatpush1.msra.mxu0 0.0
  %262 = vmatprep.subr.mxu0 0.0
  %263 = vmatpush1.msra.mxu0 0.0
  %264 = vmatprep.subr.mxu0 0.0
  %265 = vmatpush1.msra.mxu0 0.0
  %266 = vmatprep.subr.mxu0 0.0
  %267 = vmatpush1.msra.mxu0 0.0
  %268 = vmatprep.subr.mxu0 0.0
  %269 = vmatpush1.msra.mxu0 0.0
  %270 = vmatprep.subr.mxu0 0.0
  %271 = vmatpush1.msra.mxu0 0.0
  %272 = vmatprep.subr.mxu0 0.0
  %273 = vmatpush1.msra.mxu0 0.0
  %274 = vmatprep.subr.mxu0 0.0
  %275 = vmatpush1.msra.mxu0 0.0
  %276 = vmatprep.subr.mxu0 0.0
  %277 = vmatpush1.msra.mxu0 0.0
  %278 = vmatprep.subr.mxu0 0.0
  %279 = vmatpush1.msra.mxu0 0.0
  %280 = vmatprep.subr.mxu0 0.0
  %281 = vmatpush1.msra.mxu0 0.0
  %282 = vmatprep.subr.mxu0 0.0
  %283 = vmatpush1.msra.mxu0 0.0
  %284 = vmatprep.subr.mxu0 0.0
  %285 = vmatpush1.msra.mxu0 0.0
  %286 = vmatprep.subr.mxu0 0.0
  %287 = vmatpush1.msra.mxu0 0.0
  %288 = vmatprep.subr.mxu0 0.0
  %289 = vmatpush1.msra.mxu0 0.0
  %290 = vmatprep.subr.mxu0 0.0
  %291 = vmatpush1.msra.mxu0 0.0
  %292 = vmatprep.subr.mxu0 0.0
  %293 = vmatpush1.msra.mxu0 0.0
  %294 = vmatprep.subr.mxu0 0.0
  %295 = vmatpush1.msra.mxu0 0.0
  %296 = vmatprep.subr.mxu0 0.0
  %297 = vmatpush1.msra.mxu0 0.0
  %298 = vmatprep.subr.mxu0 0.0
  %299 = vmatpush1.msra.mxu0 0.0
  %300 = vmatprep.subr.mxu0 0.0
  %301 = vmatpush1.msra.mxu0 0.0
  %302 = vmatprep.subr.mxu0 0.0
  %303 = vmatpush1.msra.mxu0 0.0
  %304 = vmatprep.subr.mxu0 0.0
  %305 = vmatpush1.msra.mxu0 0.0
  %306 = vmatprep.subr.mxu0 0.0
  %307 = vmatpush1.msra.mxu0 0.0
  %308 = vmatprep.subr.mxu0 0.0
  %309 = vmatpush1.msra.mxu0 0.0
  %310 = vmatprep.mubr.f32.mxu0 0.0
  %311 = vmatmul.mubr.f32.gmra.mrb[0].mxu0 %v173
  %v312 = vpop.f32.mrb[0].mxu0
  %v313 = vadd.f32 0.0, %v312
  %v314 = vpop.f32.mrb[0].mxu0
  %v315 = vadd.f32 0.0, %v314
  %316 = vdwg.mxu0
  %322 = vrot.lane.b32.xlu0 %v117, 17
  %v323 = vpop.permute.xlu0 %322
  %324 = vrot.lane.b32.xlu0 %v118, 17
  %v325 = vpop.permute.xlu0 %324
  %326 = vrot.lane.b32.xlu0 %v119, 17
  %v327 = vpop.permute.xlu0 %326
  %328 = vrot.lane.b32.xlu0 %v120, 17
  %v329 = vpop.permute.xlu0 %328
  %330 = vrot.lane.b32.xlu0 %v121, 17
  %v331 = vpop.permute.xlu0 %330
  %vm332 = vcmask 138240
  %v333 = vsel %vm332, %v323, %v325
  %v334 = vsel %vm332, %v325, %v327
  %v335 = vsel %vm332, %v327, %v329
  %v336 = vsel %vm332, %v329, %v331
  %v342 = vsel %vm171, %v122, 0
  %344 = vmatprep.subr.mxu0 %v334
  %345 = vmatpush1.msra.mxu0 %v333
  %346 = vmatprep.subr.mxu0 0.0
  %347 = vmatpush1.msra.mxu0 0.0
  %348 = vmatprep.subr.mxu0 0.0
  %349 = vmatpush1.msra.mxu0 0.0
  %350 = vmatprep.subr.mxu0 0.0
  %351 = vmatpush1.msra.mxu0 0.0
  %352 = vmatprep.subr.mxu0 0.0
  %353 = vmatpush1.msra.mxu0 0.0
  %354 = vmatprep.subr.mxu0 0.0
  %355 = vmatpush1.msra.mxu0 0.0
  %356 = vmatprep.subr.mxu0 0.0
  %357 = vmatpush1.msra.mxu0 0.0
  %358 = vmatprep.subr.mxu0 0.0
  %359 = vmatpush1.msra.mxu0 0.0
  %360 = vmatprep.subr.mxu0 0.0
  %361 = vmatpush1.msra.mxu0 0.0
  %362 = vmatprep.subr.mxu0 0.0
  %363 = vmatpush1.msra.mxu0 0.0
  %364 = vmatprep.subr.mxu0 0.0
  %365 = vmatpush1.msra.mxu0 0.0
  %366 = vmatprep.subr.mxu0 0.0
  %367 = vmatpush1.msra.mxu0 0.0
  %368 = vmatprep.subr.mxu0 0.0
  %369 = vmatpush1.msra.mxu0 0.0
  %370 = vmatprep.subr.mxu0 0.0
  %371 = vmatpush1.msra.mxu0 0.0
  %372 = vmatprep.subr.mxu0 0.0
  %373 = vmatpush1.msra.mxu0 0.0
  %374 = vmatprep.subr.mxu0 0.0
  %375 = vmatpush1.msra.mxu0 0.0
  %376 = vmatprep.subr.mxu0 0.0
  %377 = vmatpush1.msra.mxu0 0.0
  %378 = vmatprep.subr.mxu0 0.0
  %379 = vmatpush1.msra.mxu0 0.0
  %380 = vmatprep.subr.mxu0 0.0
  %381 = vmatpush1.msra.mxu0 0.0
  %382 = vmatprep.subr.mxu0 0.0
  %383 = vmatpush1.msra.mxu0 0.0
  %384 = vmatprep.subr.mxu0 0.0
  %385 = vmatpush1.msra.mxu0 0.0
  %386 = vmatprep.subr.mxu0 0.0
  %387 = vmatpush1.msra.mxu0 0.0
  %388 = vmatprep.subr.mxu0 0.0
  %389 = vmatpush1.msra.mxu0 0.0
  %390 = vmatprep.subr.mxu0 0.0
  %391 = vmatpush1.msra.mxu0 0.0
  %392 = vmatprep.subr.mxu0 0.0
  %393 = vmatpush1.msra.mxu0 0.0
  %394 = vmatprep.subr.mxu0 0.0
  %395 = vmatpush1.msra.mxu0 0.0
  %396 = vmatprep.subr.mxu0 0.0
  %397 = vmatpush1.msra.mxu0 0.0
  %398 = vmatprep.subr.mxu0 0.0
  %399 = vmatpush1.msra.mxu0 0.0
  %400 = vmatprep.subr.mxu0 0.0
  %401 = vmatpush1.msra.mxu0 0.0
  %402 = vmatprep.subr.mxu0 0.0
  %403 = vmatpush1.msra.mxu0 0.0
  %404 = vmatprep.subr.mxu0 0.0
  %405 = vmatpush1.msra.mxu0 0.0
  %406 = vmatprep.subr.mxu0 0.0
  %407 = vmatpush1.msra.mxu0 0.0
  %408 = vmatprep.mubr.f32.mxu0 0.0
  %409 = vmatmul.mubr.f32.gmra.mrb[0].mxu0 %v342
  %v410 = vpop.f32.mrb[0].mxu0
  %v411 = vadd.f32 %v242, %v410
  %v412 = vpop.f32.mrb[0].mxu0
  %v413 = vadd.f32 %v244, %v412
  %414 = vdwg.mxu0
  %415 = vmatprep.subr.mxu0 %v336
  %416 = vmatpush1.msra.mxu0 %v335
  %417 = vmatprep.subr.mxu0 0.0
  %418 = vmatpush1.msra.mxu0 0.0
  %419 = vmatprep.subr.mxu0 0.0
  %420 = vmatpush1.msra.mxu0 0.0
  %421 = vmatprep.subr.mxu0 0.0
  %422 = vmatpush1.msra.mxu0 0.0
  %423 = vmatprep.subr.mxu0 0.0
  %424 = vmatpush1.msra.mxu0 0.0
  %425 = vmatprep.subr.mxu0 0.0
  %426 = vmatpush1.msra.mxu0 0.0
  %427 = vmatprep.subr.mxu0 0.0
  %428 = vmatpush1.msra.mxu0 0.0
  %429 = vmatprep.subr.mxu0 0.0
  %430 = vmatpush1.msra.mxu0 0.0
  %431 = vmatprep.subr.mxu0 0.0
  %432 = vmatpush1.msra.mxu0 0.0
  %433 = vmatprep.subr.mxu0 0.0
  %434 = vmatpush1.msra.mxu0 0.0
  %435 = vmatprep.subr.mxu0 0.0
  %436 = vmatpush1.msra.mxu0 0.0
  %437 = vmatprep.subr.mxu0 0.0
  %438 = vmatpush1.msra.mxu0 0.0
  %439 = vmatprep.subr.mxu0 0.0
  %440 = vmatpush1.msra.mxu0 0.0
  %441 = vmatprep.subr.mxu0 0.0
  %442 = vmatpush1.msra.mxu0 0.0
  %443 = vmatprep.subr.mxu0 0.0
  %444 = vmatpush1.msra.mxu0 0.0
  %445 = vmatprep.subr.mxu0 0.0
  %446 = vmatpush1.msra.mxu0 0.0
  %447 = vmatprep.subr.mxu0 0.0
  %448 = vmatpush1.msra.mxu0 0.0
  %449 = vmatprep.subr.mxu0 0.0
  %450 = vmatpush1.msra.mxu0 0.0
  %451 = vmatprep.subr.mxu0 0.0
  %452 = vmatpush1.msra.mxu0 0.0
  %453 = vmatprep.subr.mxu0 0.0
  %454 = vmatpush1.msra.mxu0 0.0
  %455 = vmatprep.subr.mxu0 0.0
  %456 = vmatpush1.msra.mxu0 0.0
  %457 = vmatprep.subr.mxu0 0.0
  %458 = vmatpush1.msra.mxu0 0.0
  %459 = vmatprep.subr.mxu0 0.0
  %460 = vmatpush1.msra.mxu0 0.0
  %461 = vmatprep.subr.mxu0 0.0
  %462 = vmatpush1.msra.mxu0 0.0
  %463 = vmatprep.subr.mxu0 0.0
  %464 = vmatpush1.msra.mxu0 0.0
  %465 = vmatprep.subr.mxu0 0.0
  %466 = vmatpush1.msra.mxu0 0.0
  %467 = vmatprep.subr.mxu0 0.0
  %468 = vmatpush1.msra.mxu0 0.0
  %469 = vmatprep.subr.mxu0 0.0
  %470 = vmatpush1.msra.mxu0 0.0
  %471 = vmatprep.subr.mxu0 0.0
  %472 = vmatpush1.msra.mxu0 0.0
  %473 = vmatprep.subr.mxu0 0.0
  %474 = vmatpush1.msra.mxu0 0.0
  %475 = vmatprep.subr.mxu0 0.0
  %476 = vmatpush1.msra.mxu0 0.0
  %477 = vmatprep.subr.mxu0 0.0
  %478 = vmatpush1.msra.mxu0 0.0
  %479 = vmatprep.mubr.f32.mxu0 0.0
  %480 = vmatmul.mubr.f32.gmra.mrb[0].mxu0 %v342
  %v481 = vpop.f32.mrb[0].mxu0
  %v482 = vadd.f32 %v313, %v481
  %v483 = vpop.f32.mrb[0].mxu0
  %v484 = vadd.f32 %v315, %v483
  %485 = vdwg.mxu0
  %486 = vrot.lane.b32.xlu0 %v49, 113
  %v487 = vpop.permute.xlu0 %486
  %488 = vrot.lane.b32.xlu0 %v53, 113
  %v489 = vpop.permute.xlu0 %488
  %490 = vrot.lane.b32.xlu0 %v57, 113
  %v491 = vpop.permute.xlu0 %490
  %492 = vrot.lane.b32.xlu0 %v61, 113
  %v493 = vpop.permute.xlu0 %492
  %vm494 = vcmask 924672
  %v495 = vsel %vm494, %v487, %v489
  %v496 = vsel %vm494, %v489, %v491
  %v497 = vsel %vm494, %v491, %v493
  %v503 = vmul.f32 %v40, %v487
  %v504 = vmul.f32 %v41, %v495
  %v505 = vmul.f32 %v42, %v496
  %v506 = vmul.f32 %v43, %v497
  %v507 = vmul.f32 %v44, %v493
  %v509 = vlaneseq
  %v510 = vshrl.u32 %v509, 7
  %v511 = vsub.s32 0, %v510
  %v512 = vrot.slane %v31, %v511
  %v513 = vlaneseq
  %v514 = vshrl.u32 %v513, 7
  %v515 = vsub.s32 1, %v514
  %v516 = vrot.slane %v31, %v515
  %v517 = vlaneseq
  %v518 = vshrl.u32 %v517, 7
  %v519 = vsub.s32 2, %v518
  %v520 = vrot.slane %v31, %v519
  %v521 = vlaneseq
  %v522 = vshrl.u32 %v521, 7
  %v523 = vsub.s32 3, %v522
  %v524 = vrot.slane %v31, %v523
  %525 = vrot.lane.b32.xlu0 %v512, 113
  %v526 = vpop.permute.xlu0 %525
  %527 = vrot.lane.b32.xlu0 %v516, 113
  %v528 = vpop.permute.xlu0 %527
  %529 = vrot.lane.b32.xlu0 %v520, 113
  %v530 = vpop.permute.xlu0 %529
  %531 = vrot.lane.b32.xlu0 %v524, 113
  %v532 = vpop.permute.xlu0 %531
  %v533 = vsel %vm494, %v526, %v528
  %v534 = vsel %vm494, %v528, %v530
  %v535 = vsel %vm494, %v530, %v532
  %v541 = vmul.f32 %v503, %v526
  %v542 = vmul.f32 %v504, %v533
  %v543 = vmul.f32 %v505, %v534
  %v544 = vmul.f32 %v506, %v535
  %v545 = vmul.f32 %v507, %v532
  %s546 = scalar_lea.vmem %s1, 16
  %v547 = vld [vmem:[%s546] sm:$0xff]
  %553 = vrot.lane.b32.xlu0 %v541, 15
  %v554 = vpop.permute.xlu0 %553
  %555 = vrot.lane.b32.xlu0 %v542, 15
  %v556 = vpop.permute.xlu0 %555
  %557 = vrot.lane.b32.xlu0 %v543, 15
  %v558 = vpop.permute.xlu0 %557
  %559 = vrot.lane.b32.xlu0 %v544, 15
  %v560 = vpop.permute.xlu0 %559
  %561 = vrot.lane.b32.xlu0 %v545, 15
  %v562 = vpop.permute.xlu0 %561
  %vm563 = vcmask 121856
  %v564 = vsel %vm563, %v554, %v556
  %v565 = vsel %vm563, %v556, %v558
  %v566 = vsel %vm563, %v558, %v560
  %v567 = vsel %vm563, %v560, %v562
  %v573 = vsel %vm171, %v547, 0
  %575 = vmatprep.subr.mxu0 %v565
  %576 = vmatpush1.msra.mxu0 %v564
  %577 = vmatprep.subr.mxu0 0.0
  %578 = vmatpush1.msra.mxu0 0.0
  %579 = vmatprep.subr.mxu0 0.0
  %580 = vmatpush1.msra.mxu0 0.0
  %581 = vmatprep.subr.mxu0 0.0
  %582 = vmatpush1.msra.mxu0 0.0
  %583 = vmatprep.subr.mxu0 0.0
  %584 = vmatpush1.msra.mxu0 0.0
  %585 = vmatprep.subr.mxu0 0.0
  %586 = vmatpush1.msra.mxu0 0.0
  %587 = vmatprep.subr.mxu0 0.0
  %588 = vmatpush1.msra.mxu0 0.0
  %589 = vmatprep.subr.mxu0 0.0
  %590 = vmatpush1.msra.mxu0 0.0
  %591 = vmatprep.subr.mxu0 0.0
  %592 = vmatpush1.msra.mxu0 0.0
  %593 = vmatprep.subr.mxu0 0.0
  %594 = vmatpush1.msra.mxu0 0.0
  %595 = vmatprep.subr.mxu0 0.0
  %596 = vmatpush1.msra.mxu0 0.0
  %597 = vmatprep.subr.mxu0 0.0
  %598 = vmatpush1.msra.mxu0 0.0
  %599 = vmatprep.subr.mxu0 0.0
  %600 = vmatpush1.msra.mxu0 0.0
  %601 = vmatprep.subr.mxu0 0.0
  %602 = vmatpush1.msra.mxu0 0.0
  %603 = vmatprep.subr.mxu0 0.0
  %604 = vmatpush1.msra.mxu0 0.0
  %605 = vmatprep.subr.mxu0 0.0
  %606 = vmatpush1.msra.mxu0 0.0
  %607 = vmatprep.subr.mxu0 0.0
  %608 = vmatpush1.msra.mxu0 0.0
  %609 = vmatprep.subr.mxu0 0.0
  %610 = vmatpush1.msra.mxu0 0.0
  %611 = vmatprep.subr.mxu0 0.0
  %612 = vmatpush1.msra.mxu0 0.0
  %613 = vmatprep.subr.mxu0 0.0
  %614 = vmatpush1.msra.mxu0 0.0
  %615 = vmatprep.subr.mxu0 0.0
  %616 = vmatpush1.msra.mxu0 0.0
  %617 = vmatprep.subr.mxu0 0.0
  %618 = vmatpush1.msra.mxu0 0.0
  %619 = vmatprep.subr.mxu0 0.0
  %620 = vmatpush1.msra.mxu0 0.0
  %621 = vmatprep.subr.mxu0 0.0
  %622 = vmatpush1.msra.mxu0 0.0
  %623 = vmatprep.subr.mxu0 0.0
  %624 = vmatpush1.msra.mxu0 0.0
  %625 = vmatprep.subr.mxu0 0.0
  %626 = vmatpush1.msra.mxu0 0.0
  %627 = vmatprep.subr.mxu0 0.0
  %628 = vmatpush1.msra.mxu0 0.0
  %629 = vmatprep.subr.mxu0 0.0
  %630 = vmatpush1.msra.mxu0 0.0
  %631 = vmatprep.subr.mxu0 0.0
  %632 = vmatpush1.msra.mxu0 0.0
  %633 = vmatprep.subr.mxu0 0.0
  %634 = vmatpush1.msra.mxu0 0.0
  %635 = vmatprep.subr.mxu0 0.0
  %636 = vmatpush1.msra.mxu0 0.0
  %637 = vmatprep.subr.mxu0 0.0
  %638 = vmatpush1.msra.mxu0 0.0
  %639 = vmatprep.mubr.f32.mxu0 0.0
  %640 = vmatmul.mubr.f32.gmra.mrb[0].mxu0 %v573
  %v641 = vpop.f32.mrb[0].mxu0
  %v642 = vadd.f32 0.0, %v641
  %v643 = vpop.f32.mrb[0].mxu0
  %v644 = vadd.f32 0.0, %v643
  %645 = vdwg.mxu0
  %646 = vmatprep.subr.mxu0 %v567
  %647 = vmatpush1.msra.mxu0 %v566
  %648 = vmatprep.subr.mxu0 0.0
  %649 = vmatpush1.msra.mxu0 0.0
  %650 = vmatprep.subr.mxu0 0.0
  %651 = vmatpush1.msra.mxu0 0.0
  %652 = vmatprep.subr.mxu0 0.0
  %653 = vmatpush1.msra.mxu0 0.0
  %654 = vmatprep.subr.mxu0 0.0
  %655 = vmatpush1.msra.mxu0 0.0
  %656 = vmatprep.subr.mxu0 0.0
  %657 = vmatpush1.msra.mxu0 0.0
  %658 = vmatprep.subr.mxu0 0.0
  %659 = vmatpush1.msra.mxu0 0.0
  %660 = vmatprep.subr.mxu0 0.0
  %661 = vmatpush1.msra.mxu0 0.0
  %662 = vmatprep.subr.mxu0 0.0
  %663 = vmatpush1.msra.mxu0 0.0
  %664 = vmatprep.subr.mxu0 0.0
  %665 = vmatpush1.msra.mxu0 0.0
  %666 = vmatprep.subr.mxu0 0.0
  %667 = vmatpush1.msra.mxu0 0.0
  %668 = vmatprep.subr.mxu0 0.0
  %669 = vmatpush1.msra.mxu0 0.0
  %670 = vmatprep.subr.mxu0 0.0
  %671 = vmatpush1.msra.mxu0 0.0
  %672 = vmatprep.subr.mxu0 0.0
  %673 = vmatpush1.msra.mxu0 0.0
  %674 = vmatprep.subr.mxu0 0.0
  %675 = vmatpush1.msra.mxu0 0.0
  %676 = vmatprep.subr.mxu0 0.0
  %677 = vmatpush1.msra.mxu0 0.0
  %678 = vmatprep.subr.mxu0 0.0
  %679 = vmatpush1.msra.mxu0 0.0
  %680 = vmatprep.subr.mxu0 0.0
  %681 = vmatpush1.msra.mxu0 0.0
  %682 = vmatprep.subr.mxu0 0.0
  %683 = vmatpush1.msra.mxu0 0.0
  %684 = vmatprep.subr.mxu0 0.0
  %685 = vmatpush1.msra.mxu0 0.0
  %686 = vmatprep.subr.mxu0 0.0
  %687 = vmatpush1.msra.mxu0 0.0
  %688 = vmatprep.subr.mxu0 0.0
  %689 = vmatpush1.msra.mxu0 0.0
  %690 = vmatprep.subr.mxu0 0.0
  %691 = vmatpush1.msra.mxu0 0.0
  %692 = vmatprep.subr.mxu0 0.0
  %693 = vmatpush1.msra.mxu0 0.0
  %694 = vmatprep.subr.mxu0 0.0
  %695 = vmatpush1.msra.mxu0 0.0
  %696 = vmatprep.subr.mxu0 0.0
  %697 = vmatpush1.msra.mxu0 0.0
  %698 = vmatprep.subr.mxu0 0.0
  %699 = vmatpush1.msra.mxu0 0.0
  %700 = vmatprep.subr.mxu0 0.0
  %701 = vmatpush1.msra.mxu0 0.0
  %702 = vmatprep.subr.mxu0 0.0
  %703 = vmatpush1.msra.mxu0 0.0
  %704 = vmatprep.subr.mxu0 0.0
  %705 = vmatpush1.msra.mxu0 0.0
  %706 = vmatprep.subr.mxu0 0.0
  %707 = vmatpush1.msra.mxu0 0.0
  %708 = vmatprep.subr.mxu0 0.0
  %709 = vmatpush1.msra.mxu0 0.0
  %710 = vmatprep.mubr.f32.mxu0 0.0
  %711 = vmatmul.mubr.f32.gmra.mrb[0].mxu0 %v573
  %v712 = vpop.f32.mrb[0].mxu0
  %v713 = vadd.f32 0.0, %v712
  %v714 = vpop.f32.mrb[0].mxu0
  %v715 = vadd.f32 0.0, %v714
  %716 = vdwg.mxu0
  %v717 = vadd.f32 %v411, %v642
  %v718 = vadd.f32 %v413, %v644
  %v719 = vadd.f32 %v482, %v713
  %v720 = vadd.f32 %v484, %v715
  %721 = vrot.lane.b32.xlu0 %v88, 127
  %v722 = vpop.permute.xlu0 %721
  %723 = vrot.lane.b32.xlu0 %v92, 127
  %v724 = vpop.permute.xlu0 %723
  %725 = vrot.lane.b32.xlu0 %v96, 127
  %v726 = vpop.permute.xlu0 %725
  %727 = vrot.lane.b32.xlu0 %v100, 127
  %v728 = vpop.permute.xlu0 %727
  %vm729 = vcmask 1039360
  %v730 = vsel %vm729, %v722, %v724
  %v731 = vsel %vm729, %v724, %v726
  %v732 = vsel %vm729, %v726, %v728
  %v738 = vmul.f32 %v40, %v722
  %v739 = vmul.f32 %v41, %v730
  %v740 = vmul.f32 %v42, %v731
  %v741 = vmul.f32 %v43, %v732
  %v742 = vmul.f32 %v44, %v728
  %s743 = scalar_lea.vmem %s1, 24
  %v744 = vld [vmem:[%s743] sm:$0xff]
  %750 = vrot.lane.b32.xlu0 %v738, 1
  %v751 = vpop.permute.xlu0 %750
  %752 = vrot.lane.b32.xlu0 %v739, 1
  %v753 = vpop.permute.xlu0 %752
  %754 = vrot.lane.b32.xlu0 %v740, 1
  %v755 = vpop.permute.xlu0 %754
  %756 = vrot.lane.b32.xlu0 %v741, 1
  %v757 = vpop.permute.xlu0 %756
  %758 = vrot.lane.b32.xlu0 %v742, 1
  %v759 = vpop.permute.xlu0 %758
  %vm760 = vcmask 7168
  %v761 = vsel %vm760, %v751, %v753
  %v762 = vsel %vm760, %v753, %v755
  %v763 = vsel %vm760, %v755, %v757
  %v764 = vsel %vm760, %v757, %v759
  %v770 = vsel %vm171, %v744, 0
  %772 = vmatprep.subr.mxu0 %v762
  %773 = vmatpush1.msra.mxu0 %v761
  %774 = vmatprep.subr.mxu0 0.0
  %775 = vmatpush1.msra.mxu0 0.0
  %776 = vmatprep.subr.mxu0 0.0
  %777 = vmatpush1.msra.mxu0 0.0
  %778 = vmatprep.subr.mxu0 0.0
  %779 = vmatpush1.msra.mxu0 0.0
  %780 = vmatprep.subr.mxu0 0.0
  %781 = vmatpush1.msra.mxu0 0.0
  %782 = vmatprep.subr.mxu0 0.0
  %783 = vmatpush1.msra.mxu0 0.0
  %784 = vmatprep.subr.mxu0 0.0
  %785 = vmatpush1.msra.mxu0 0.0
  %786 = vmatprep.subr.mxu0 0.0
  %787 = vmatpush1.msra.mxu0 0.0
  %788 = vmatprep.subr.mxu0 0.0
  %789 = vmatpush1.msra.mxu0 0.0
  %790 = vmatprep.subr.mxu0 0.0
  %791 = vmatpush1.msra.mxu0 0.0
  %792 = vmatprep.subr.mxu0 0.0
  %793 = vmatpush1.msra.mxu0 0.0
  %794 = vmatprep.subr.mxu0 0.0
  %795 = vmatpush1.msra.mxu0 0.0
  %796 = vmatprep.subr.mxu0 0.0
  %797 = vmatpush1.msra.mxu0 0.0
  %798 = vmatprep.subr.mxu0 0.0
  %799 = vmatpush1.msra.mxu0 0.0
  %800 = vmatprep.subr.mxu0 0.0
  %801 = vmatpush1.msra.mxu0 0.0
  %802 = vmatprep.subr.mxu0 0.0
  %803 = vmatpush1.msra.mxu0 0.0
  %804 = vmatprep.subr.mxu0 0.0
  %805 = vmatpush1.msra.mxu0 0.0
  %806 = vmatprep.subr.mxu0 0.0
  %807 = vmatpush1.msra.mxu0 0.0
  %808 = vmatprep.subr.mxu0 0.0
  %809 = vmatpush1.msra.mxu0 0.0
  %810 = vmatprep.subr.mxu0 0.0
  %811 = vmatpush1.msra.mxu0 0.0
  %812 = vmatprep.subr.mxu0 0.0
  %813 = vmatpush1.msra.mxu0 0.0
  %814 = vmatprep.subr.mxu0 0.0
  %815 = vmatpush1.msra.mxu0 0.0
  %816 = vmatprep.subr.mxu0 0.0
  %817 = vmatpush1.msra.mxu0 0.0
  %818 = vmatprep.subr.mxu0 0.0
  %819 = vmatpush1.msra.mxu0 0.0
  %820 = vmatprep.subr.mxu0 0.0
  %821 = vmatpush1.msra.mxu0 0.0
  %822 = vmatprep.subr.mxu0 0.0
  %823 = vmatpush1.msra.mxu0 0.0
  %824 = vmatprep.subr.mxu0 0.0
  %825 = vmatpush1.msra.mxu0 0.0
  %826 = vmatprep.subr.mxu0 0.0
  %827 = vmatpush1.msra.mxu0 0.0
  %828 = vmatprep.subr.mxu0 0.0
  %829 = vmatpush1.msra.mxu0 0.0
  %830 = vmatprep.subr.mxu0 0.0
  %831 = vmatpush1.msra.mxu0 0.0
  %832 = vmatprep.subr.mxu0 0.0
  %833 = vmatpush1.msra.mxu0 0.0
  %834 = vmatprep.subr.mxu0 0.0
  %835 = vmatpush1.msra.mxu0 0.0
  %836 = vmatprep.mubr.f32.mxu0 0.0
  %837 = vmatmul.mubr.f32.gmra.mrb[0].mxu0 %v770
  %v838 = vpop.f32.mrb[0].mxu0
  %v839 = vadd.f32 0.0, %v838
  %v840 = vpop.f32.mrb[0].mxu0
  %v841 = vadd.f32 0.0, %v840
  %842 = vdwg.mxu0
  %843 = vmatprep.subr.mxu0 %v764
  %844 = vmatpush1.msra.mxu0 %v763
  %845 = vmatprep.subr.mxu0 0.0
  %846 = vmatpush1.msra.mxu0 0.0
  %847 = vmatprep.subr.mxu0 0.0
  %848 = vmatpush1.msra.mxu0 0.0
  %849 = vmatprep.subr.mxu0 0.0
  %850 = vmatpush1.msra.mxu0 0.0
  %851 = vmatprep.subr.mxu0 0.0
  %852 = vmatpush1.msra.mxu0 0.0
  %853 = vmatprep.subr.mxu0 0.0
  %854 = vmatpush1.msra.mxu0 0.0
  %855 = vmatprep.subr.mxu0 0.0
  %856 = vmatpush1.msra.mxu0 0.0
  %857 = vmatprep.subr.mxu0 0.0
  %858 = vmatpush1.msra.mxu0 0.0
  %859 = vmatprep.subr.mxu0 0.0
  %860 = vmatpush1.msra.mxu0 0.0
  %861 = vmatprep.subr.mxu0 0.0
  %862 = vmatpush1.msra.mxu0 0.0
  %863 = vmatprep.subr.mxu0 0.0
  %864 = vmatpush1.msra.mxu0 0.0
  %865 = vmatprep.subr.mxu0 0.0
  %866 = vmatpush1.msra.mxu0 0.0
  %867 = vmatprep.subr.mxu0 0.0
  %868 = vmatpush1.msra.mxu0 0.0
  %869 = vmatprep.subr.mxu0 0.0
  %870 = vmatpush1.msra.mxu0 0.0
  %871 = vmatprep.subr.mxu0 0.0
  %872 = vmatpush1.msra.mxu0 0.0
  %873 = vmatprep.subr.mxu0 0.0
  %874 = vmatpush1.msra.mxu0 0.0
  %875 = vmatprep.subr.mxu0 0.0
  %876 = vmatpush1.msra.mxu0 0.0
  %877 = vmatprep.subr.mxu0 0.0
  %878 = vmatpush1.msra.mxu0 0.0
  %879 = vmatprep.subr.mxu0 0.0
  %880 = vmatpush1.msra.mxu0 0.0
  %881 = vmatprep.subr.mxu0 0.0
  %882 = vmatpush1.msra.mxu0 0.0
  %883 = vmatprep.subr.mxu0 0.0
  %884 = vmatpush1.msra.mxu0 0.0
  %885 = vmatprep.subr.mxu0 0.0
  %886 = vmatpush1.msra.mxu0 0.0
  %887 = vmatprep.subr.mxu0 0.0
  %888 = vmatpush1.msra.mxu0 0.0
  %889 = vmatprep.subr.mxu0 0.0
  %890 = vmatpush1.msra.mxu0 0.0
  %891 = vmatprep.subr.mxu0 0.0
  %892 = vmatpush1.msra.mxu0 0.0
  %893 = vmatprep.subr.mxu0 0.0
  %894 = vmatpush1.msra.mxu0 0.0
  %895 = vmatprep.subr.mxu0 0.0
  %896 = vmatpush1.msra.mxu0 0.0
  %897 = vmatprep.subr.mxu0 0.0
  %898 = vmatpush1.msra.mxu0 0.0
  %899 = vmatprep.subr.mxu0 0.0
  %900 = vmatpush1.msra.mxu0 0.0
  %901 = vmatprep.subr.mxu0 0.0
  %902 = vmatpush1.msra.mxu0 0.0
  %903 = vmatprep.subr.mxu0 0.0
  %904 = vmatpush1.msra.mxu0 0.0
  %905 = vmatprep.subr.mxu0 0.0
  %906 = vmatpush1.msra.mxu0 0.0
  %907 = vmatprep.mubr.f32.mxu0 0.0
  %908 = vmatmul.mubr.f32.gmra.mrb[0].mxu0 %v770
  %v909 = vpop.f32.mrb[0].mxu0
  %v910 = vadd.f32 0.0, %v909
  %v911 = vpop.f32.mrb[0].mxu0
  %v912 = vadd.f32 0.0, %v911
  %913 = vdwg.mxu0
  %v914 = vadd.f32 %v717, %v839
  %v915 = vadd.f32 %v718, %v841
  %v916 = vadd.f32 %v719, %v910
  %v917 = vadd.f32 %v720, %v912
  %s918 = scalar_lea.vmem %s1, 32
  %v919 = vld [vmem:[%s918] sm:$0xff]
  %v921 = vsel %vm171, %v919, 0
  %923 = vmatprep.subr.mxu0 %v42
  %924 = vmatpush1.msra.mxu0 %v41
  %925 = vmatprep.subr.mxu0 0.0
  %926 = vmatpush1.msra.mxu0 0.0
  %927 = vmatprep.subr.mxu0 0.0
  %928 = vmatpush1.msra.mxu0 0.0
  %929 = vmatprep.subr.mxu0 0.0
  %930 = vmatpush1.msra.mxu0 0.0
  %931 = vmatprep.subr.mxu0 0.0
  %932 = vmatpush1.msra.mxu0 0.0
  %933 = vmatprep.subr.mxu0 0.0
  %934 = vmatpush1.msra.mxu0 0.0
  %935 = vmatprep.subr.mxu0 0.0
  %936 = vmatpush1.msra.mxu0 0.0
  %937 = vmatprep.subr.mxu0 0.0
  %938 = vmatpush1.msra.mxu0 0.0
  %939 = vmatprep.subr.mxu0 0.0
  %940 = vmatpush1.msra.mxu0 0.0
  %941 = vmatprep.subr.mxu0 0.0
  %942 = vmatpush1.msra.mxu0 0.0
  %943 = vmatprep.subr.mxu0 0.0
  %944 = vmatpush1.msra.mxu0 0.0
  %945 = vmatprep.subr.mxu0 0.0
  %946 = vmatpush1.msra.mxu0 0.0
  %947 = vmatprep.subr.mxu0 0.0
  %948 = vmatpush1.msra.mxu0 0.0
  %949 = vmatprep.subr.mxu0 0.0
  %950 = vmatpush1.msra.mxu0 0.0
  %951 = vmatprep.subr.mxu0 0.0
  %952 = vmatpush1.msra.mxu0 0.0
  %953 = vmatprep.subr.mxu0 0.0
  %954 = vmatpush1.msra.mxu0 0.0
  %955 = vmatprep.subr.mxu0 0.0
  %956 = vmatpush1.msra.mxu0 0.0
  %957 = vmatprep.subr.mxu0 0.0
  %958 = vmatpush1.msra.mxu0 0.0
  %959 = vmatprep.subr.mxu0 0.0
  %960 = vmatpush1.msra.mxu0 0.0
  %961 = vmatprep.subr.mxu0 0.0
  %962 = vmatpush1.msra.mxu0 0.0
  %963 = vmatprep.subr.mxu0 0.0
  %964 = vmatpush1.msra.mxu0 0.0
  %965 = vmatprep.subr.mxu0 0.0
  %966 = vmatpush1.msra.mxu0 0.0
  %967 = vmatprep.subr.mxu0 0.0
  %968 = vmatpush1.msra.mxu0 0.0
  %969 = vmatprep.subr.mxu0 0.0
  %970 = vmatpush1.msra.mxu0 0.0
  %971 = vmatprep.subr.mxu0 0.0
  %972 = vmatpush1.msra.mxu0 0.0
  %973 = vmatprep.subr.mxu0 0.0
  %974 = vmatpush1.msra.mxu0 0.0
  %975 = vmatprep.subr.mxu0 0.0
  %976 = vmatpush1.msra.mxu0 0.0
  %977 = vmatprep.subr.mxu0 0.0
  %978 = vmatpush1.msra.mxu0 0.0
  %979 = vmatprep.subr.mxu0 0.0
  %980 = vmatpush1.msra.mxu0 0.0
  %981 = vmatprep.subr.mxu0 0.0
  %982 = vmatpush1.msra.mxu0 0.0
  %983 = vmatprep.subr.mxu0 0.0
  %984 = vmatpush1.msra.mxu0 0.0
  %985 = vmatprep.subr.mxu0 0.0
  %986 = vmatpush1.msra.mxu0 0.0
  %987 = vmatprep.mubr.f32.mxu0 0.0
  %988 = vmatmul.mubr.f32.gmra.mrb[0].mxu0 %v921
  %v989 = vpop.f32.mrb[0].mxu0
  %v990 = vadd.f32 0.0, %v989
  %v991 = vpop.f32.mrb[0].mxu0
  %v992 = vadd.f32 0.0, %v991
  %993 = vdwg.mxu0
  %994 = vmatprep.subr.mxu0 %v44
  %995 = vmatpush1.msra.mxu0 %v43
  %996 = vmatprep.subr.mxu0 0.0
  %997 = vmatpush1.msra.mxu0 0.0
  %998 = vmatprep.subr.mxu0 0.0
  %999 = vmatpush1.msra.mxu0 0.0
  %1000 = vmatprep.subr.mxu0 0.0
  %1001 = vmatpush1.msra.mxu0 0.0
  %1002 = vmatprep.subr.mxu0 0.0
  %1003 = vmatpush1.msra.mxu0 0.0
  %1004 = vmatprep.subr.mxu0 0.0
  %1005 = vmatpush1.msra.mxu0 0.0
  %1006 = vmatprep.subr.mxu0 0.0
  %1007 = vmatpush1.msra.mxu0 0.0
  %1008 = vmatprep.subr.mxu0 0.0
  %1009 = vmatpush1.msra.mxu0 0.0
  %1010 = vmatprep.subr.mxu0 0.0
  %1011 = vmatpush1.msra.mxu0 0.0
  %1012 = vmatprep.subr.mxu0 0.0
  %1013 = vmatpush1.msra.mxu0 0.0
  %1014 = vmatprep.subr.mxu0 0.0
  %1015 = vmatpush1.msra.mxu0 0.0
  %1016 = vmatprep.subr.mxu0 0.0
  %1017 = vmatpush1.msra.mxu0 0.0
  %1018 = vmatprep.subr.mxu0 0.0
  %1019 = vmatpush1.msra.mxu0 0.0
  %1020 = vmatprep.subr.mxu0 0.0
  %1021 = vmatpush1.msra.mxu0 0.0
  %1022 = vmatprep.subr.mxu0 0.0
  %1023 = vmatpush1.msra.mxu0 0.0
  %1024 = vmatprep.subr.mxu0 0.0
  %1025 = vmatpush1.msra.mxu0 0.0
  %1026 = vmatprep.subr.mxu0 0.0
  %1027 = vmatpush1.msra.mxu0 0.0
  %1028 = vmatprep.subr.mxu0 0.0
  %1029 = vmatpush1.msra.mxu0 0.0
  %1030 = vmatprep.subr.mxu0 0.0
  %1031 = vmatpush1.msra.mxu0 0.0
  %1032 = vmatprep.subr.mxu0 0.0
  %1033 = vmatpush1.msra.mxu0 0.0
  %1034 = vmatprep.subr.mxu0 0.0
  %1035 = vmatpush1.msra.mxu0 0.0
  %1036 = vmatprep.subr.mxu0 0.0
  %1037 = vmatpush1.msra.mxu0 0.0
  %1038 = vmatprep.subr.mxu0 0.0
  %1039 = vmatpush1.msra.mxu0 0.0
  %1040 = vmatprep.subr.mxu0 0.0
  %1041 = vmatpush1.msra.mxu0 0.0
  %1042 = vmatprep.subr.mxu0 0.0
  %1043 = vmatpush1.msra.mxu0 0.0
  %1044 = vmatprep.subr.mxu0 0.0
  %1045 = vmatpush1.msra.mxu0 0.0
  %1046 = vmatprep.subr.mxu0 0.0
  %1047 = vmatpush1.msra.mxu0 0.0
  %1048 = vmatprep.subr.mxu0 0.0
  %1049 = vmatpush1.msra.mxu0 0.0
  %1050 = vmatprep.subr.mxu0 0.0
  %1051 = vmatpush1.msra.mxu0 0.0
  %1052 = vmatprep.subr.mxu0 0.0
  %1053 = vmatpush1.msra.mxu0 0.0
  %1054 = vmatprep.subr.mxu0 0.0
  %1055 = vmatpush1.msra.mxu0 0.0
  %1056 = vmatprep.subr.mxu0 0.0
  %1057 = vmatpush1.msra.mxu0 0.0
  %1058 = vmatprep.mubr.f32.mxu0 0.0
  %1059 = vmatmul.mubr.f32.gmra.mrb[0].mxu0 %v921
  %v1060 = vpop.f32.mrb[0].mxu0
  %v1061 = vadd.f32 0.0, %v1060
  %v1062 = vpop.f32.mrb[0].mxu0
  %v1063 = vadd.f32 0.0, %v1062
  %1064 = vdwg.mxu0
  %v1065 = vadd.f32 %v914, %v990
  %v1066 = vadd.f32 %v915, %v992
  %v1067 = vadd.f32 %v916, %v1061
  %v1068 = vadd.f32 %v917, %v1063
  %v1069 = vld [vmem:[#allocation2 + $0x8] sm:$0xff]
  %v1070 = vld [vmem:[#allocation2 + $0x10] sm:$0xff]
  %v1071 = vld [vmem:[#allocation2 + $0x18] sm:$0xff]
  %v1072 = vld [vmem:[#allocation2 + $0x20] sm:$0xff]
  %v1073 = vld [vmem:[#allocation2 + $0x28] sm:$0xff]
  %1074 = vrot.lane.b32.xlu0 %v512, 1
  %v1075 = vpop.permute.xlu0 %1074
  %1076 = vrot.lane.b32.xlu0 %v516, 1
  %v1077 = vpop.permute.xlu0 %1076
  %1078 = vrot.lane.b32.xlu0 %v520, 1
  %v1079 = vpop.permute.xlu0 %1078
  %1080 = vrot.lane.b32.xlu0 %v524, 1
  %v1081 = vpop.permute.xlu0 %1080
  %v1082 = vsel %vm760, %v1075, %v1077
  %v1083 = vsel %vm760, %v1077, %v1079
  %v1084 = vsel %vm760, %v1079, %v1081
  %v1090 = vmul.f32 %v1069, %v1075
  %v1091 = vmul.f32 %v1070, %v1082
  %v1092 = vmul.f32 %v1071, %v1083
  %v1093 = vmul.f32 %v1072, %v1084
  %v1094 = vmul.f32 %v1073, %v1081
  %s1095 = scalar_lea.vmem %s1, 40
  %v1096 = vld [vmem:[%s1095] sm:$0xff]
  %1102 = vrot.lane.b32.xlu0 %v1090, 127
  %v1103 = vpop.permute.xlu0 %1102
  %1104 = vrot.lane.b32.xlu0 %v1091, 127
  %v1105 = vpop.permute.xlu0 %1104
  %1106 = vrot.lane.b32.xlu0 %v1092, 127
  %v1107 = vpop.permute.xlu0 %1106
  %1108 = vrot.lane.b32.xlu0 %v1093, 127
  %v1109 = vpop.permute.xlu0 %1108
  %1110 = vrot.lane.b32.xlu0 %v1094, 127
  %v1111 = vpop.permute.xlu0 %1110
  %v1112 = vsel %vm729, %v1103, %v1105
  %v1113 = vsel %vm729, %v1105, %v1107
  %v1114 = vsel %vm729, %v1107, %v1109
  %v1115 = vsel %vm729, %v1109, %v1111
  %v1121 = vsel %vm171, %v1096, 0
  %1123 = vmatprep.subr.mxu0 %v1113
  %1124 = vmatpush1.msra.mxu0 %v1112
  %1125 = vmatprep.subr.mxu0 0.0
  %1126 = vmatpush1.msra.mxu0 0.0
  %1127 = vmatprep.subr.mxu0 0.0
  %1128 = vmatpush1.msra.mxu0 0.0
  %1129 = vmatprep.subr.mxu0 0.0
  %1130 = vmatpush1.msra.mxu0 0.0
  %1131 = vmatprep.subr.mxu0 0.0
  %1132 = vmatpush1.msra.mxu0 0.0
  %1133 = vmatprep.subr.mxu0 0.0
  %1134 = vmatpush1.msra.mxu0 0.0
  %1135 = vmatprep.subr.mxu0 0.0
  %1136 = vmatpush1.msra.mxu0 0.0
  %1137 = vmatprep.subr.mxu0 0.0
  %1138 = vmatpush1.msra.mxu0 0.0
  %1139 = vmatprep.subr.mxu0 0.0
  %1140 = vmatpush1.msra.mxu0 0.0
  %1141 = vmatprep.subr.mxu0 0.0
  %1142 = vmatpush1.msra.mxu0 0.0
  %1143 = vmatprep.subr.mxu0 0.0
  %1144 = vmatpush1.msra.mxu0 0.0
  %1145 = vmatprep.subr.mxu0 0.0
  %1146 = vmatpush1.msra.mxu0 0.0
  %1147 = vmatprep.subr.mxu0 0.0
  %1148 = vmatpush1.msra.mxu0 0.0
  %1149 = vmatprep.subr.mxu0 0.0
  %1150 = vmatpush1.msra.mxu0 0.0
  %1151 = vmatprep.subr.mxu0 0.0
  %1152 = vmatpush1.msra.mxu0 0.0
  %1153 = vmatprep.subr.mxu0 0.0
  %1154 = vmatpush1.msra.mxu0 0.0
  %1155 = vmatprep.subr.mxu0 0.0
  %1156 = vmatpush1.msra.mxu0 0.0
  %1157 = vmatprep.subr.mxu0 0.0
  %1158 = vmatpush1.msra.mxu0 0.0
  %1159 = vmatprep.subr.mxu0 0.0
  %1160 = vmatpush1.msra.mxu0 0.0
  %1161 = vmatprep.subr.mxu0 0.0
  %1162 = vmatpush1.msra.mxu0 0.0
  %1163 = vmatprep.subr.mxu0 0.0
  %1164 = vmatpush1.msra.mxu0 0.0
  %1165 = vmatprep.subr.mxu0 0.0
  %1166 = vmatpush1.msra.mxu0 0.0
  %1167 = vmatprep.subr.mxu0 0.0
  %1168 = vmatpush1.msra.mxu0 0.0
  %1169 = vmatprep.subr.mxu0 0.0
  %1170 = vmatpush1.msra.mxu0 0.0
  %1171 = vmatprep.subr.mxu0 0.0
  %1172 = vmatpush1.msra.mxu0 0.0
  %1173 = vmatprep.subr.mxu0 0.0
  %1174 = vmatpush1.msra.mxu0 0.0
  %1175 = vmatprep.subr.mxu0 0.0
  %1176 = vmatpush1.msra.mxu0 0.0
  %1177 = vmatprep.subr.mxu0 0.0
  %1178 = vmatpush1.msra.mxu0 0.0
  %1179 = vmatprep.subr.mxu0 0.0
  %1180 = vmatpush1.msra.mxu0 0.0
  %1181 = vmatprep.subr.mxu0 0.0
  %1182 = vmatpush1.msra.mxu0 0.0
  %1183 = vmatprep.subr.mxu0 0.0
  %1184 = vmatpush1.msra.mxu0 0.0
  %1185 = vmatprep.subr.mxu0 0.0
  %1186 = vmatpush1.msra.mxu0 0.0
  %1187 = vmatprep.mubr.f32.mxu0 0.0
  %1188 = vmatmul.mubr.f32.gmra.mrb[0].mxu0 %v1121
  %v1189 = vpop.f32.mrb[0].mxu0
  %v1190 = vadd.f32 0.0, %v1189
  %v1191 = vpop.f32.mrb[0].mxu0
  %v1192 = vadd.f32 0.0, %v1191
  %1193 = vdwg.mxu0
  %1194 = vmatprep.subr.mxu0 %v1115
  %1195 = vmatpush1.msra.mxu0 %v1114
  %1196 = vmatprep.subr.mxu0 0.0
  %1197 = vmatpush1.msra.mxu0 0.0
  %1198 = vmatprep.subr.mxu0 0.0
  %1199 = vmatpush1.msra.mxu0 0.0
  %1200 = vmatprep.subr.mxu0 0.0
  %1201 = vmatpush1.msra.mxu0 0.0
  %1202 = vmatprep.subr.mxu0 0.0
  %1203 = vmatpush1.msra.mxu0 0.0
  %1204 = vmatprep.subr.mxu0 0.0
  %1205 = vmatpush1.msra.mxu0 0.0
  %1206 = vmatprep.subr.mxu0 0.0
  %1207 = vmatpush1.msra.mxu0 0.0
  %1208 = vmatprep.subr.mxu0 0.0
  %1209 = vmatpush1.msra.mxu0 0.0
  %1210 = vmatprep.subr.mxu0 0.0
  %1211 = vmatpush1.msra.mxu0 0.0
  %1212 = vmatprep.subr.mxu0 0.0
  %1213 = vmatpush1.msra.mxu0 0.0
  %1214 = vmatprep.subr.mxu0 0.0
  %1215 = vmatpush1.msra.mxu0 0.0
  %1216 = vmatprep.subr.mxu0 0.0
  %1217 = vmatpush1.msra.mxu0 0.0
  %1218 = vmatprep.subr.mxu0 0.0
  %1219 = vmatpush1.msra.mxu0 0.0
  %1220 = vmatprep.subr.mxu0 0.0
  %1221 = vmatpush1.msra.mxu0 0.0
  %1222 = vmatprep.subr.mxu0 0.0
  %1223 = vmatpush1.msra.mxu0 0.0
  %1224 = vmatprep.subr.mxu0 0.0
  %1225 = vmatpush1.msra.mxu0 0.0
  %1226 = vmatprep.subr.mxu0 0.0
  %1227 = vmatpush1.msra.mxu0 0.0
  %1228 = vmatprep.subr.mxu0 0.0
  %1229 = vmatpush1.msra.mxu0 0.0
  %1230 = vmatprep.subr.mxu0 0.0
  %1231 = vmatpush1.msra.mxu0 0.0
  %1232 = vmatprep.subr.mxu0 0.0
  %1233 = vmatpush1.msra.mxu0 0.0
  %1234 = vmatprep.subr.mxu0 0.0
  %1235 = vmatpush1.msra.mxu0 0.0
  %1236 = vmatprep.subr.mxu0 0.0
  %1237 = vmatpush1.msra.mxu0 0.0
  %1238 = vmatprep.subr.mxu0 0.0
  %1239 = vmatpush1.msra.mxu0 0.0
  %1240 = vmatprep.subr.mxu0 0.0
  %1241 = vmatpush1.msra.mxu0 0.0
  %1242 = vmatprep.subr.mxu0 0.0
  %1243 = vmatpush1.msra.mxu0 0.0
  %1244 = vmatprep.subr.mxu0 0.0
  %1245 = vmatpush1.msra.mxu0 0.0
  %1246 = vmatprep.subr.mxu0 0.0
  %1247 = vmatpush1.msra.mxu0 0.0
  %1248 = vmatprep.subr.mxu0 0.0
  %1249 = vmatpush1.msra.mxu0 0.0
  %1250 = vmatprep.subr.mxu0 0.0
  %1251 = vmatpush1.msra.mxu0 0.0
  %1252 = vmatprep.subr.mxu0 0.0
  %1253 = vmatpush1.msra.mxu0 0.0
  %1254 = vmatprep.subr.mxu0 0.0
  %1255 = vmatpush1.msra.mxu0 0.0
  %1256 = vmatprep.subr.mxu0 0.0
  %1257 = vmatpush1.msra.mxu0 0.0
  %1258 = vmatprep.mubr.f32.mxu0 0.0
  %1259 = vmatmul.mubr.f32.gmra.mrb[0].mxu0 %v1121
  %v1260 = vpop.f32.mrb[0].mxu0
  %v1261 = vadd.f32 0.0, %v1260
  %v1262 = vpop.f32.mrb[0].mxu0
  %v1263 = vadd.f32 0.0, %v1262
  %1264 = vdwg.mxu0
  %v1265 = vadd.f32 %v1065, %v1190
  %v1266 = vadd.f32 %v1066, %v1192
  %v1267 = vadd.f32 %v1067, %v1261
  %v1268 = vadd.f32 %v1068, %v1263
  %v1270 = vlaneseq
  %v1271 = vshrl.u32 %v1270, 7
  %v1272 = vsub.s32 0, %v1271
  %v1273 = vrot.slane %v27, %v1272
  %v1274 = vlaneseq
  %v1275 = vshrl.u32 %v1274, 7
  %v1276 = vsub.s32 1, %v1275
  %v1277 = vrot.slane %v27, %v1276
  %v1278 = vlaneseq
  %v1279 = vshrl.u32 %v1278, 7
  %v1280 = vsub.s32 2, %v1279
  %v1281 = vrot.slane %v27, %v1280
  %v1282 = vlaneseq
  %v1283 = vshrl.u32 %v1282, 7
  %v1284 = vsub.s32 3, %v1283
  %v1285 = vrot.slane %v27, %v1284
  %1286 = vrot.lane.b32.xlu0 %v1273, 15
  %v1287 = vpop.permute.xlu0 %1286
  %1288 = vrot.lane.b32.xlu0 %v1277, 15
  %v1289 = vpop.permute.xlu0 %1288
  %1290 = vrot.lane.b32.xlu0 %v1281, 15
  %v1291 = vpop.permute.xlu0 %1290
  %1292 = vrot.lane.b32.xlu0 %v1285, 15
  %v1293 = vpop.permute.xlu0 %1292
  %v1294 = vsel %vm563, %v1287, %v1289
  %v1295 = vsel %vm563, %v1289, %v1291
  %v1296 = vsel %vm563, %v1291, %v1293
  %v1302 = vmul.f32 %v1069, %v1287
  %v1303 = vmul.f32 %v1070, %v1294
  %v1304 = vmul.f32 %v1071, %v1295
  %v1305 = vmul.f32 %v1072, %v1296
  %v1306 = vmul.f32 %v1073, %v1293
  %1307 = vrot.lane.b32.xlu0 %v88, 15
  %v1308 = vpop.permute.xlu0 %1307
  %1309 = vrot.lane.b32.xlu0 %v92, 15
  %v1310 = vpop.permute.xlu0 %1309
  %1311 = vrot.lane.b32.xlu0 %v96, 15
  %v1312 = vpop.permute.xlu0 %1311
  %1313 = vrot.lane.b32.xlu0 %v100, 15
  %v1314 = vpop.permute.xlu0 %1313
  %v1315 = vsel %vm563, %v1308, %v1310
  %v1316 = vsel %vm563, %v1310, %v1312
  %v1317 = vsel %vm563, %v1312, %v1314
  %v1323 = vmul.f32 %v1302, %v1308
  %v1324 = vmul.f32 %v1303, %v1315
  %v1325 = vmul.f32 %v1304, %v1316
  %v1326 = vmul.f32 %v1305, %v1317
  %v1327 = vmul.f32 %v1306, %v1314
  %s1328 = scalar_lea.vmem %s1, 48
  %v1329 = vld [vmem:[%s1328] sm:$0xff]
  %1335 = vrot.lane.b32.xlu0 %v1323, 113
  %v1336 = vpop.permute.xlu0 %1335
  %1337 = vrot.lane.b32.xlu0 %v1324, 113
  %v1338 = vpop.permute.xlu0 %1337
  %1339 = vrot.lane.b32.xlu0 %v1325, 113
  %v1340 = vpop.permute.xlu0 %1339
  %1341 = vrot.lane.b32.xlu0 %v1326, 113
  %v1342 = vpop.permute.xlu0 %1341
  %1343 = vrot.lane.b32.xlu0 %v1327, 113
  %v1344 = vpop.permute.xlu0 %1343
  %v1345 = vsel %vm494, %v1336, %v1338
  %v1346 = vsel %vm494, %v1338, %v1340
  %v1347 = vsel %vm494, %v1340, %v1342
  %v1348 = vsel %vm494, %v1342, %v1344
  %v1354 = vsel %vm171, %v1329, 0
  %1356 = vmatprep.subr.mxu0 %v1346
  %1357 = vmatpush1.msra.mxu0 %v1345
  %1358 = vmatprep.subr.mxu0 0.0
  %1359 = vmatpush1.msra.mxu0 0.0
  %1360 = vmatprep.subr.mxu0 0.0
  %1361 = vmatpush1.msra.mxu0 0.0
  %1362 = vmatprep.subr.mxu0 0.0
  %1363 = vmatpush1.msra.mxu0 0.0
  %1364 = vmatprep.subr.mxu0 0.0
  %1365 = vmatpush1.msra.mxu0 0.0
  %1366 = vmatprep.subr.mxu0 0.0
  %1367 = vmatpush1.msra.mxu0 0.0
  %1368 = vmatprep.subr.mxu0 0.0
  %1369 = vmatpush1.msra.mxu0 0.0
  %1370 = vmatprep.subr.mxu0 0.0
  %1371 = vmatpush1.msra.mxu0 0.0
  %1372 = vmatprep.subr.mxu0 0.0
  %1373 = vmatpush1.msra.mxu0 0.0
  %1374 = vmatprep.subr.mxu0 0.0
  %1375 = vmatpush1.msra.mxu0 0.0
  %1376 = vmatprep.subr.mxu0 0.0
  %1377 = vmatpush1.msra.mxu0 0.0
  %1378 = vmatprep.subr.mxu0 0.0
  %1379 = vmatpush1.msra.mxu0 0.0
  %1380 = vmatprep.subr.mxu0 0.0
  %1381 = vmatpush1.msra.mxu0 0.0
  %1382 = vmatprep.subr.mxu0 0.0
  %1383 = vmatpush1.msra.mxu0 0.0
  %1384 = vmatprep.subr.mxu0 0.0
  %1385 = vmatpush1.msra.mxu0 0.0
  %1386 = vmatprep.subr.mxu0 0.0
  %1387 = vmatpush1.msra.mxu0 0.0
  %1388 = vmatprep.subr.mxu0 0.0
  %1389 = vmatpush1.msra.mxu0 0.0
  %1390 = vmatprep.subr.mxu0 0.0
  %1391 = vmatpush1.msra.mxu0 0.0
  %1392 = vmatprep.subr.mxu0 0.0
  %1393 = vmatpush1.msra.mxu0 0.0
  %1394 = vmatprep.subr.mxu0 0.0
  %1395 = vmatpush1.msra.mxu0 0.0
  %1396 = vmatprep.subr.mxu0 0.0
  %1397 = vmatpush1.msra.mxu0 0.0
  %1398 = vmatprep.subr.mxu0 0.0
  %1399 = vmatpush1.msra.mxu0 0.0
  %1400 = vmatprep.subr.mxu0 0.0
  %1401 = vmatpush1.msra.mxu0 0.0
  %1402 = vmatprep.subr.mxu0 0.0
  %1403 = vmatpush1.msra.mxu0 0.0
  %1404 = vmatprep.subr.mxu0 0.0
  %1405 = vmatpush1.msra.mxu0 0.0
  %1406 = vmatprep.subr.mxu0 0.0
  %1407 = vmatpush1.msra.mxu0 0.0
  %1408 = vmatprep.subr.mxu0 0.0
  %1409 = vmatpush1.msra.mxu0 0.0
  %1410 = vmatprep.subr.mxu0 0.0
  %1411 = vmatpush1.msra.mxu0 0.0
  %1412 = vmatprep.subr.mxu0 0.0
  %1413 = vmatpush1.msra.mxu0 0.0
  %1414 = vmatprep.subr.mxu0 0.0
  %1415 = vmatpush1.msra.mxu0 0.0
  %1416 = vmatprep.subr.mxu0 0.0
  %1417 = vmatpush1.msra.mxu0 0.0
  %1418 = vmatprep.subr.mxu0 0.0
  %1419 = vmatpush1.msra.mxu0 0.0
  %1420 = vmatprep.mubr.f32.mxu0 0.0
  %1421 = vmatmul.mubr.f32.gmra.mrb[0].mxu0 %v1354
  %v1422 = vpop.f32.mrb[0].mxu0
  %v1423 = vadd.f32 0.0, %v1422
  %v1424 = vpop.f32.mrb[0].mxu0
  %v1425 = vadd.f32 0.0, %v1424
  %1426 = vdwg.mxu0
  %1427 = vmatprep.subr.mxu0 %v1348
  %1428 = vmatpush1.msra.mxu0 %v1347
  %1429 = vmatprep.subr.mxu0 0.0
  %1430 = vmatpush1.msra.mxu0 0.0
  %1431 = vmatprep.subr.mxu0 0.0
  %1432 = vmatpush1.msra.mxu0 0.0
  %1433 = vmatprep.subr.mxu0 0.0
  %1434 = vmatpush1.msra.mxu0 0.0
  %1435 = vmatprep.subr.mxu0 0.0
  %1436 = vmatpush1.msra.mxu0 0.0
  %1437 = vmatprep.subr.mxu0 0.0
  %1438 = vmatpush1.msra.mxu0 0.0
  %1439 = vmatprep.subr.mxu0 0.0
  %1440 = vmatpush1.msra.mxu0 0.0
  %1441 = vmatprep.subr.mxu0 0.0
  %1442 = vmatpush1.msra.mxu0 0.0
  %1443 = vmatprep.subr.mxu0 0.0
  %1444 = vmatpush1.msra.mxu0 0.0
  %1445 = vmatprep.subr.mxu0 0.0
  %1446 = vmatpush1.msra.mxu0 0.0
  %1447 = vmatprep.subr.mxu0 0.0
  %1448 = vmatpush1.msra.mxu0 0.0
  %1449 = vmatprep.subr.mxu0 0.0
  %1450 = vmatpush1.msra.mxu0 0.0
  %1451 = vmatprep.subr.mxu0 0.0
  %1452 = vmatpush1.msra.mxu0 0.0
  %1453 = vmatprep.subr.mxu0 0.0
  %1454 = vmatpush1.msra.mxu0 0.0
  %1455 = vmatprep.subr.mxu0 0.0
  %1456 = vmatpush1.msra.mxu0 0.0
  %1457 = vmatprep.subr.mxu0 0.0
  %1458 = vmatpush1.msra.mxu0 0.0
  %1459 = vmatprep.subr.mxu0 0.0
  %1460 = vmatpush1.msra.mxu0 0.0
  %1461 = vmatprep.subr.mxu0 0.0
  %1462 = vmatpush1.msra.mxu0 0.0
  %1463 = vmatprep.subr.mxu0 0.0
  %1464 = vmatpush1.msra.mxu0 0.0
  %1465 = vmatprep.subr.mxu0 0.0
  %1466 = vmatpush1.msra.mxu0 0.0
  %1467 = vmatprep.subr.mxu0 0.0
  %1468 = vmatpush1.msra.mxu0 0.0
  %1469 = vmatprep.subr.mxu0 0.0
  %1470 = vmatpush1.msra.mxu0 0.0
  %1471 = vmatprep.subr.mxu0 0.0
  %1472 = vmatpush1.msra.mxu0 0.0
  %1473 = vmatprep.subr.mxu0 0.0
  %1474 = vmatpush1.msra.mxu0 0.0
  %1475 = vmatprep.subr.mxu0 0.0
  %1476 = vmatpush1.msra.mxu0 0.0
  %1477 = vmatprep.subr.mxu0 0.0
  %1478 = vmatpush1.msra.mxu0 0.0
  %1479 = vmatprep.subr.mxu0 0.0
  %1480 = vmatpush1.msra.mxu0 0.0
  %1481 = vmatprep.subr.mxu0 0.0
  %1482 = vmatpush1.msra.mxu0 0.0
  %1483 = vmatprep.subr.mxu0 0.0
  %1484 = vmatpush1.msra.mxu0 0.0
  %1485 = vmatprep.subr.mxu0 0.0
  %1486 = vmatpush1.msra.mxu0 0.0
  %1487 = vmatprep.subr.mxu0 0.0
  %1488 = vmatpush1.msra.mxu0 0.0
  %1489 = vmatprep.subr.mxu0 0.0
  %1490 = vmatpush1.msra.mxu0 0.0
  %1491 = vmatprep.mubr.f32.mxu0 0.0
  %1492 = vmatmul.mubr.f32.gmra.mrb[0].mxu0 %v1354
  %v1493 = vpop.f32.mrb[0].mxu0
  %v1494 = vadd.f32 0.0, %v1493
  %v1495 = vpop.f32.mrb[0].mxu0
  %v1496 = vadd.f32 0.0, %v1495
  %1497 = vdwg.mxu0
  %v1498 = vadd.f32 %v1265, %v1423
  %v1499 = vadd.f32 %v1266, %v1425
  %v1500 = vadd.f32 %v1267, %v1494
  %v1501 = vadd.f32 %v1268, %v1496
  %1502 = vrot.lane.b32.xlu0 %v1273, 16
  %v1503 = vpop.permute.xlu0 %1502
  %1504 = vrot.lane.b32.xlu0 %v1277, 16
  %v1505 = vpop.permute.xlu0 %1504
  %1506 = vrot.lane.b32.xlu0 %v1281, 16
  %v1507 = vpop.permute.xlu0 %1506
  %1508 = vrot.lane.b32.xlu0 %v1285, 16
  %v1509 = vpop.permute.xlu0 %1508
  %v1510 = vsel %vm162, %v1503, %v1505
  %v1511 = vsel %vm162, %v1505, %v1507
  %v1512 = vsel %vm162, %v1507, %v1509
  %v1518 = vmul.f32 %v1069, %v1503
  %v1519 = vmul.f32 %v1070, %v1510
  %v1520 = vmul.f32 %v1071, %v1511
  %v1521 = vmul.f32 %v1072, %v1512
  %v1522 = vmul.f32 %v1073, %v1509
  %s1523 = scalar_lea.vmem %s1, 56
  %v1524 = vld [vmem:[%s1523] sm:$0xff]
  %1530 = vrot.lane.b32.xlu0 %v1518, 112
  %v1531 = vpop.permute.xlu0 %1530
  %1532 = vrot.lane.b32.xlu0 %v1519, 112
  %v1533 = vpop.permute.xlu0 %1532
  %1534 = vrot.lane.b32.xlu0 %v1520, 112
  %v1535 = vpop.permute.xlu0 %1534
  %1536 = vrot.lane.b32.xlu0 %v1521, 112
  %v1537 = vpop.permute.xlu0 %1536
  %1538 = vrot.lane.b32.xlu0 %v1522, 112
  %v1539 = vpop.permute.xlu0 %1538
  %v1540 = vsel %vm131, %v1531, %v1533
  %v1541 = vsel %vm131, %v1533, %v1535
  %v1542 = vsel %vm131, %v1535, %v1537
  %v1543 = vsel %vm131, %v1537, %v1539
  %v1549 = vsel %vm171, %v1524, 0
  %1551 = vmatprep.subr.mxu0 %v1541
  %1552 = vmatpush1.msra.mxu0 %v1540
  %1553 = vmatprep.subr.mxu0 0.0
  %1554 = vmatpush1.msra.mxu0 0.0
  %1555 = vmatprep.subr.mxu0 0.0
  %1556 = vmatpush1.msra.mxu0 0.0
  %1557 = vmatprep.subr.mxu0 0.0
  %1558 = vmatpush1.msra.mxu0 0.0
  %1559 = vmatprep.subr.mxu0 0.0
  %1560 = vmatpush1.msra.mxu0 0.0
  %1561 = vmatprep.subr.mxu0 0.0
  %1562 = vmatpush1.msra.mxu0 0.0
  %1563 = vmatprep.subr.mxu0 0.0
  %1564 = vmatpush1.msra.mxu0 0.0
  %1565 = vmatprep.subr.mxu0 0.0
  %1566 = vmatpush1.msra.mxu0 0.0
  %1567 = vmatprep.subr.mxu0 0.0
  %1568 = vmatpush1.msra.mxu0 0.0
  %1569 = vmatprep.subr.mxu0 0.0
  %1570 = vmatpush1.msra.mxu0 0.0
  %1571 = vmatprep.subr.mxu0 0.0
  %1572 = vmatpush1.msra.mxu0 0.0
  %1573 = vmatprep.subr.mxu0 0.0
  %1574 = vmatpush1.msra.mxu0 0.0
  %1575 = vmatprep.subr.mxu0 0.0
  %1576 = vmatpush1.msra.mxu0 0.0
  %1577 = vmatprep.subr.mxu0 0.0
  %1578 = vmatpush1.msra.mxu0 0.0
  %1579 = vmatprep.subr.mxu0 0.0
  %1580 = vmatpush1.msra.mxu0 0.0
  %1581 = vmatprep.subr.mxu0 0.0
  %1582 = vmatpush1.msra.mxu0 0.0
  %1583 = vmatprep.subr.mxu0 0.0
  %1584 = vmatpush1.msra.mxu0 0.0
  %1585 = vmatprep.subr.mxu0 0.0
  %1586 = vmatpush1.msra.mxu0 0.0
  %1587 = vmatprep.subr.mxu0 0.0
  %1588 = vmatpush1.msra.mxu0 0.0
  %1589 = vmatprep.subr.mxu0 0.0
  %1590 = vmatpush1.msra.mxu0 0.0
  %1591 = vmatprep.subr.mxu0 0.0
  %1592 = vmatpush1.msra.mxu0 0.0
  %1593 = vmatprep.subr.mxu0 0.0
  %1594 = vmatpush1.msra.mxu0 0.0
  %1595 = vmatprep.subr.mxu0 0.0
  %1596 = vmatpush1.msra.mxu0 0.0
  %1597 = vmatprep.subr.mxu0 0.0
  %1598 = vmatpush1.msra.mxu0 0.0
  %1599 = vmatprep.subr.mxu0 0.0
  %1600 = vmatpush1.msra.mxu0 0.0
  %1601 = vmatprep.subr.mxu0 0.0
  %1602 = vmatpush1.msra.mxu0 0.0
  %1603 = vmatprep.subr.mxu0 0.0
  %1604 = vmatpush1.msra.mxu0 0.0
  %1605 = vmatprep.subr.mxu0 0.0
  %1606 = vmatpush1.msra.mxu0 0.0
  %1607 = vmatprep.subr.mxu0 0.0
  %1608 = vmatpush1.msra.mxu0 0.0
  %1609 = vmatprep.subr.mxu0 0.0
  %1610 = vmatpush1.msra.mxu0 0.0
  %1611 = vmatprep.subr.mxu0 0.0
  %1612 = vmatpush1.msra.mxu0 0.0
  %1613 = vmatprep.subr.mxu0 0.0
  %1614 = vmatpush1.msra.mxu0 0.0
  %1615 = vmatprep.mubr.f32.mxu0 0.0
  %1616 = vmatmul.mubr.f32.gmra.mrb[0].mxu0 %v1549
  %v1617 = vpop.f32.mrb[0].mxu0
  %v1618 = vadd.f32 0.0, %v1617
  %v1619 = vpop.f32.mrb[0].mxu0
  %v1620 = vadd.f32 0.0, %v1619
  %1621 = vdwg.mxu0
  %1622 = vmatprep.subr.mxu0 %v1543
  %1623 = vmatpush1.msra.mxu0 %v1542
  %1624 = vmatprep.subr.mxu0 0.0
  %1625 = vmatpush1.msra.mxu0 0.0
  %1626 = vmatprep.subr.mxu0 0.0
  %1627 = vmatpush1.msra.mxu0 0.0
  %1628 = vmatprep.subr.mxu0 0.0
  %1629 = vmatpush1.msra.mxu0 0.0
  %1630 = vmatprep.subr.mxu0 0.0
  %1631 = vmatpush1.msra.mxu0 0.0
  %1632 = vmatprep.subr.mxu0 0.0
  %1633 = vmatpush1.msra.mxu0 0.0
  %1634 = vmatprep.subr.mxu0 0.0
  %1635 = vmatpush1.msra.mxu0 0.0
  %1636 = vmatprep.subr.mxu0 0.0
  %1637 = vmatpush1.msra.mxu0 0.0
  %1638 = vmatprep.subr.mxu0 0.0
  %1639 = vmatpush1.msra.mxu0 0.0
  %1640 = vmatprep.subr.mxu0 0.0
  %1641 = vmatpush1.msra.mxu0 0.0
  %1642 = vmatprep.subr.mxu0 0.0
  %1643 = vmatpush1.msra.mxu0 0.0
  %1644 = vmatprep.subr.mxu0 0.0
  %1645 = vmatpush1.msra.mxu0 0.0
  %1646 = vmatprep.subr.mxu0 0.0
  %1647 = vmatpush1.msra.mxu0 0.0
  %1648 = vmatprep.subr.mxu0 0.0
  %1649 = vmatpush1.msra.mxu0 0.0
  %1650 = vmatprep.subr.mxu0 0.0
  %1651 = vmatpush1.msra.mxu0 0.0
  %1652 = vmatprep.subr.mxu0 0.0
  %1653 = vmatpush1.msra.mxu0 0.0
  %1654 = vmatprep.subr.mxu0 0.0
  %1655 = vmatpush1.msra.mxu0 0.0
  %1656 = vmatprep.subr.mxu0 0.0
  %1657 = vmatpush1.msra.mxu0 0.0
  %1658 = vmatprep.subr.mxu0 0.0
  %1659 = vmatpush1.msra.mxu0 0.0
  %1660 = vmatprep.subr.mxu0 0.0
  %1661 = vmatpush1.msra.mxu0 0.0
  %1662 = vmatprep.subr.mxu0 0.0
  %1663 = vmatpush1.msra.mxu0 0.0
  %1664 = vmatprep.subr.mxu0 0.0
  %1665 = vmatpush1.msra.mxu0 0.0
  %1666 = vmatprep.subr.mxu0 0.0
  %1667 = vmatpush1.msra.mxu0 0.0
  %1668 = vmatprep.subr.mxu0 0.0
  %1669 = vmatpush1.msra.mxu0 0.0
  %1670 = vmatprep.subr.mxu0 0.0
  %1671 = vmatpush1.msra.mxu0 0.0
  %1672 = vmatprep.subr.mxu0 0.0
  %1673 = vmatpush1.msra.mxu0 0.0
  %1674 = vmatprep.subr.mxu0 0.0
  %1675 = vmatpush1.msra.mxu0 0.0
  %1676 = vmatprep.subr.mxu0 0.0
  %1677 = vmatpush1.msra.mxu0 0.0
  %1678 = vmatprep.subr.mxu0 0.0
  %1679 = vmatpush1.msra.mxu0 0.0
  %1680 = vmatprep.subr.mxu0 0.0
  %1681 = vmatpush1.msra.mxu0 0.0
  %1682 = vmatprep.subr.mxu0 0.0
  %1683 = vmatpush1.msra.mxu0 0.0
  %1684 = vmatprep.subr.mxu0 0.0
  %1685 = vmatpush1.msra.mxu0 0.0
  %1686 = vmatprep.mubr.f32.mxu0 0.0
  %1687 = vmatmul.mubr.f32.gmra.mrb[0].mxu0 %v1549
  %v1688 = vpop.f32.mrb[0].mxu0
  %v1689 = vadd.f32 0.0, %v1688
  %v1690 = vpop.f32.mrb[0].mxu0
  %v1691 = vadd.f32 0.0, %v1690
  %1692 = vdwg.mxu0
  %v1693 = vadd.f32 %v1498, %v1618
  %v1694 = vadd.f32 %v1499, %v1620
  %v1695 = vadd.f32 %v1500, %v1689
  %v1696 = vadd.f32 %v1501, %v1691
  %1697 = vrot.lane.b32.xlu0 %v1273, 17
  %v1698 = vpop.permute.xlu0 %1697
  %1699 = vrot.lane.b32.xlu0 %v1277, 17
  %v1700 = vpop.permute.xlu0 %1699
  %1701 = vrot.lane.b32.xlu0 %v1281, 17
  %v1702 = vpop.permute.xlu0 %1701
  %1703 = vrot.lane.b32.xlu0 %v1285, 17
  %v1704 = vpop.permute.xlu0 %1703
  %v1705 = vsel %vm332, %v1698, %v1700
  %v1706 = vsel %vm332, %v1700, %v1702
  %v1707 = vsel %vm332, %v1702, %v1704
  %v1713 = vmul.f32 %v1069, %v1698
  %v1714 = vmul.f32 %v1070, %v1705
  %v1715 = vmul.f32 %v1071, %v1706
  %v1716 = vmul.f32 %v1072, %v1707
  %v1717 = vmul.f32 %v1073, %v1704
  %1718 = vrot.lane.b32.xlu0 %v512, 17
  %v1719 = vpop.permute.xlu0 %1718
  %1720 = vrot.lane.b32.xlu0 %v516, 17
  %v1721 = vpop.permute.xlu0 %1720
  %1722 = vrot.lane.b32.xlu0 %v520, 17
  %v1723 = vpop.permute.xlu0 %1722
  %1724 = vrot.lane.b32.xlu0 %v524, 17
  %v1725 = vpop.permute.xlu0 %1724
  %v1726 = vsel %vm332, %v1719, %v1721
  %v1727 = vsel %vm332, %v1721, %v1723
  %v1728 = vsel %vm332, %v1723, %v1725
  %v1734 = vmul.f32 %v1713, %v1719
  %v1735 = vmul.f32 %v1714, %v1726
  %v1736 = vmul.f32 %v1715, %v1727
  %v1737 = vmul.f32 %v1716, %v1728
  %v1738 = vmul.f32 %v1717, %v1725
  %s1739 = scalar_lea.vmem %s1, 64
  %v1740 = vld [vmem:[%s1739] sm:$0xff]
  %1746 = vrot.lane.b32.xlu0 %v1734, 111
  %v1747 = vpop.permute.xlu0 %1746
  %1748 = vrot.lane.b32.xlu0 %v1735, 111
  %v1749 = vpop.permute.xlu0 %1748
  %1750 = vrot.lane.b32.xlu0 %v1736, 111
  %v1751 = vpop.permute.xlu0 %1750
  %1752 = vrot.lane.b32.xlu0 %v1737, 111
  %v1753 = vpop.permute.xlu0 %1752
  %1754 = vrot.lane.b32.xlu0 %v1738, 111
  %v1755 = vpop.permute.xlu0 %1754
  %v1756 = vsel %vm70, %v1747, %v1749
  %v1757 = vsel %vm70, %v1749, %v1751
  %v1758 = vsel %vm70, %v1751, %v1753
  %v1759 = vsel %vm70, %v1753, %v1755
  %v1765 = vsel %vm171, %v1740, 0
  %1767 = vmatprep.subr.mxu0 %v1757
  %1768 = vmatpush1.msra.mxu0 %v1756
  %1769 = vmatprep.subr.mxu0 0.0
  %1770 = vmatpush1.msra.mxu0 0.0
  %1771 = vmatprep.subr.mxu0 0.0
  %1772 = vmatpush1.msra.mxu0 0.0
  %1773 = vmatprep.subr.mxu0 0.0
  %1774 = vmatpush1.msra.mxu0 0.0
  %1775 = vmatprep.subr.mxu0 0.0
  %1776 = vmatpush1.msra.mxu0 0.0
  %1777 = vmatprep.subr.mxu0 0.0
  %1778 = vmatpush1.msra.mxu0 0.0
  %1779 = vmatprep.subr.mxu0 0.0
  %1780 = vmatpush1.msra.mxu0 0.0
  %1781 = vmatprep.subr.mxu0 0.0
  %1782 = vmatpush1.msra.mxu0 0.0
  %1783 = vmatprep.subr.mxu0 0.0
  %1784 = vmatpush1.msra.mxu0 0.0
  %1785 = vmatprep.subr.mxu0 0.0
  %1786 = vmatpush1.msra.mxu0 0.0
  %1787 = vmatprep.subr.mxu0 0.0
  %1788 = vmatpush1.msra.mxu0 0.0
  %1789 = vmatprep.subr.mxu0 0.0
  %1790 = vmatpush1.msra.mxu0 0.0
  %1791 = vmatprep.subr.mxu0 0.0
  %1792 = vmatpush1.msra.mxu0 0.0
  %1793 = vmatprep.subr.mxu0 0.0
  %1794 = vmatpush1.msra.mxu0 0.0
  %1795 = vmatprep.subr.mxu0 0.0
  %1796 = vmatpush1.msra.mxu0 0.0
  %1797 = vmatprep.subr.mxu0 0.0
  %1798 = vmatpush1.msra.mxu0 0.0
  %1799 = vmatprep.subr.mxu0 0.0
  %1800 = vmatpush1.msra.mxu0 0.0
  %1801 = vmatprep.subr.mxu0 0.0
  %1802 = vmatpush1.msra.mxu0 0.0
  %1803 = vmatprep.subr.mxu0 0.0
  %1804 = vmatpush1.msra.mxu0 0.0
  %1805 = vmatprep.subr.mxu0 0.0
  %1806 = vmatpush1.msra.mxu0 0.0
  %1807 = vmatprep.subr.mxu0 0.0
  %1808 = vmatpush1.msra.mxu0 0.0
  %1809 = vmatprep.subr.mxu0 0.0
  %1810 = vmatpush1.msra.mxu0 0.0
  %1811 = vmatprep.subr.mxu0 0.0
  %1812 = vmatpush1.msra.mxu0 0.0
  %1813 = vmatprep.subr.mxu0 0.0
  %1814 = vmatpush1.msra.mxu0 0.0
  %1815 = vmatprep.subr.mxu0 0.0
  %1816 = vmatpush1.msra.mxu0 0.0
  %1817 = vmatprep.subr.mxu0 0.0
  %1818 = vmatpush1.msra.mxu0 0.0
  %1819 = vmatprep.subr.mxu0 0.0
  %1820 = vmatpush1.msra.mxu0 0.0
  %1821 = vmatprep.subr.mxu0 0.0
  %1822 = vmatpush1.msra.mxu0 0.0
  %1823 = vmatprep.subr.mxu0 0.0
  %1824 = vmatpush1.msra.mxu0 0.0
  %1825 = vmatprep.subr.mxu0 0.0
  %1826 = vmatpush1.msra.mxu0 0.0
  %1827 = vmatprep.subr.mxu0 0.0
  %1828 = vmatpush1.msra.mxu0 0.0
  %1829 = vmatprep.subr.mxu0 0.0
  %1830 = vmatpush1.msra.mxu0 0.0
  %1831 = vmatprep.mubr.f32.mxu0 0.0
  %1832 = vmatmul.mubr.f32.gmra.mrb[0].mxu0 %v1765
  %v1833 = vpop.f32.mrb[0].mxu0
  %v1834 = vadd.f32 0.0, %v1833
  %v1835 = vpop.f32.mrb[0].mxu0
  %v1836 = vadd.f32 0.0, %v1835
  %1837 = vdwg.mxu0
  %1838 = vmatprep.subr.mxu0 %v1759
  %1839 = vmatpush1.msra.mxu0 %v1758
  %1840 = vmatprep.subr.mxu0 0.0
  %1841 = vmatpush1.msra.mxu0 0.0
  %1842 = vmatprep.subr.mxu0 0.0
  %1843 = vmatpush1.msra.mxu0 0.0
  %1844 = vmatprep.subr.mxu0 0.0
  %1845 = vmatpush1.msra.mxu0 0.0
  %1846 = vmatprep.subr.mxu0 0.0
  %1847 = vmatpush1.msra.mxu0 0.0
  %1848 = vmatprep.subr.mxu0 0.0
  %1849 = vmatpush1.msra.mxu0 0.0
  %1850 = vmatprep.subr.mxu0 0.0
  %1851 = vmatpush1.msra.mxu0 0.0
  %1852 = vmatprep.subr.mxu0 0.0
  %1853 = vmatpush1.msra.mxu0 0.0
  %1854 = vmatprep.subr.mxu0 0.0
  %1855 = vmatpush1.msra.mxu0 0.0
  %1856 = vmatprep.subr.mxu0 0.0
  %1857 = vmatpush1.msra.mxu0 0.0
  %1858 = vmatprep.subr.mxu0 0.0
  %1859 = vmatpush1.msra.mxu0 0.0
  %1860 = vmatprep.subr.mxu0 0.0
  %1861 = vmatpush1.msra.mxu0 0.0
  %1862 = vmatprep.subr.mxu0 0.0
  %1863 = vmatpush1.msra.mxu0 0.0
  %1864 = vmatprep.subr.mxu0 0.0
  %1865 = vmatpush1.msra.mxu0 0.0
  %1866 = vmatprep.subr.mxu0 0.0
  %1867 = vmatpush1.msra.mxu0 0.0
  %1868 = vmatprep.subr.mxu0 0.0
  %1869 = vmatpush1.msra.mxu0 0.0
  %1870 = vmatprep.subr.mxu0 0.0
  %1871 = vmatpush1.msra.mxu0 0.0
  %1872 = vmatprep.subr.mxu0 0.0
  %1873 = vmatpush1.msra.mxu0 0.0
  %1874 = vmatprep.subr.mxu0 0.0
  %1875 = vmatpush1.msra.mxu0 0.0
  %1876 = vmatprep.subr.mxu0 0.0
  %1877 = vmatpush1.msra.mxu0 0.0
  %1878 = vmatprep.subr.mxu0 0.0
  %1879 = vmatpush1.msra.mxu0 0.0
  %1880 = vmatprep.subr.mxu0 0.0
  %1881 = vmatpush1.msra.mxu0 0.0
  %1882 = vmatprep.subr.mxu0 0.0
  %1883 = vmatpush1.msra.mxu0 0.0
  %1884 = vmatprep.subr.mxu0 0.0
  %1885 = vmatpush1.msra.mxu0 0.0
  %1886 = vmatprep.subr.mxu0 0.0
  %1887 = vmatpush1.msra.mxu0 0.0
  %1888 = vmatprep.subr.mxu0 0.0
  %1889 = vmatpush1.msra.mxu0 0.0
  %1890 = vmatprep.subr.mxu0 0.0
  %1891 = vmatpush1.msra.mxu0 0.0
  %1892 = vmatprep.subr.mxu0 0.0
  %1893 = vmatpush1.msra.mxu0 0.0
  %1894 = vmatprep.subr.mxu0 0.0
  %1895 = vmatpush1.msra.mxu0 0.0
  %1896 = vmatprep.subr.mxu0 0.0
  %1897 = vmatpush1.msra.mxu0 0.0
  %1898 = vmatprep.subr.mxu0 0.0
  %1899 = vmatpush1.msra.mxu0 0.0
  %1900 = vmatprep.subr.mxu0 0.0
  %1901 = vmatpush1.msra.mxu0 0.0
  %1902 = vmatprep.mubr.f32.mxu0 0.0
  %1903 = vmatmul.mubr.f32.gmra.mrb[0].mxu0 %v1765
  %v1904 = vpop.f32.mrb[0].mxu0
  %v1905 = vadd.f32 0.0, %v1904
  %v1906 = vpop.f32.mrb[0].mxu0
  %v1907 = vadd.f32 0.0, %v1906
  %1908 = vdwg.mxu0
  %v1909 = vadd.f32 %v1693, %v1834
  %v1910 = vadd.f32 %v1694, %v1836
  %v1911 = vadd.f32 %v1695, %v1905
  %v1912 = vadd.f32 %v1696, %v1907
  %v1913 = vld [vmem:[%s2] sm:$0xff]
  %1915 = vset.pattern.permute.xlu0 0
  %1916 = vperm.xlu0 %1915, %v1913
  %v1917 = vpop.permute.xlu0 %1916
  %v1919 = vadd.f32 %v1909, %v1917
  %v1920 = vadd.f32 %v1910, %v1917
  %v1921 = vadd.f32 %v1911, %v1917
  %v1922 = vadd.f32 %v1912, %v1917
  %v1923 = vmax.f32 %v1919, 0.0
  %v1924 = vmax.f32 %v1920, 0.0
  %v1925 = vmax.f32 %v1921, 0.0
  %v1926 = vmax.f32 %v1922, 0.0
  %1927 = vst [vmem:[#allocation2 + $0x8] sm:$0xff] %v1923
  %1928 = vst [vmem:[#allocation2 + $0x10] sm:$0xff] %v1924
  %1929 = vst [vmem:[#allocation2 + $0x18] sm:$0xff] %v1925
  %1930 = vst [vmem:[#allocation2 + $0x20] sm:$0xff] %v1926
  %v1931 = vld [vmem:[#allocation2] sm:$0xff]
  %v1932 = vld [vmem:[#allocation2 + $0x8] sm:$0xff]
  %v1933 = vld [vmem:[#allocation2 + $0x10] sm:$0xff]
  %v1934 = vld [vmem:[#allocation2 + $0x18] sm:$0xff]
  %v1935 = vld [vmem:[#allocation2 + $0x20] sm:$0xff]
  %v1936 = vmul.f32 %v1931, %v63
  %v1937 = vmul.f32 %v1932, %v71
  %v1938 = vmul.f32 %v1933, %v72
  %v1939 = vmul.f32 %v1934, %v73
  %v1940 = vmul.f32 %v1935, %v69
  %v1941 = vmul.f32 %v1936, %v102
  %v1942 = vmul.f32 %v1937, %v109
  %v1943 = vmul.f32 %v1938, %v110
  %v1944 = vmul.f32 %v1939, %v111
  %v1945 = vmul.f32 %v1940, %v108
  %v1946 = vld [vmem:[%s3] sm:$0xff]
  %v1947 = vmul.f32 %v1931, %v124
  %v1948 = vmul.f32 %v1932, %v132
  %v1949 = vmul.f32 %v1933, %v133
  %v1950 = vmul.f32 %v1934, %v134
  %v1951 = vmul.f32 %v1935, %v130
  %s1952 = scalar_lea.vmem %s3, 8
  %v1953 = vld [vmem:[%s1952] sm:$0xff]
  %1959 = vrot.lane.b32.xlu0 %v1947, 16
  %v1960 = vpop.permute.xlu0 %1959
  %1961 = vrot.lane.b32.xlu0 %v1948, 16
  %v1962 = vpop.permute.xlu0 %1961
  %1963 = vrot.lane.b32.xlu0 %v1949, 16
  %v1964 = vpop.permute.xlu0 %1963
  %1965 = vrot.lane.b32.xlu0 %v1950, 16
  %v1966 = vpop.permute.xlu0 %1965
  %1967 = vrot.lane.b32.xlu0 %v1951, 16
  %v1968 = vpop.permute.xlu0 %1967
  %v1969 = vsel %vm162, %v1960, %v1962
  %v1970 = vsel %vm162, %v1962, %v1964
  %v1971 = vsel %vm162, %v1964, %v1966
  %v1972 = vsel %vm162, %v1966, %v1968
  %v1978 = vsel %vm171, %v1953, 0
  %1980 = vmatprep.subr.mxu0 %v1970
  %1981 = vmatpush1.msra.mxu0 %v1969
  %1982 = vmatprep.subr.mxu0 0.0
  %1983 = vmatpush1.msra.mxu0 0.0
  %1984 = vmatprep.subr.mxu0 0.0
  %1985 = vmatpush1.msra.mxu0 0.0
  %1986 = vmatprep.subr.mxu0 0.0
  %1987 = vmatpush1.msra.mxu0 0.0
  %1988 = vmatprep.subr.mxu0 0.0
  %1989 = vmatpush1.msra.mxu0 0.0
  %1990 = vmatprep.subr.mxu0 0.0
  %1991 = vmatpush1.msra.mxu0 0.0
  %1992 = vmatprep.subr.mxu0 0.0
  %1993 = vmatpush1.msra.mxu0 0.0
  %1994 = vmatprep.subr.mxu0 0.0
  %1995 = vmatpush1.msra.mxu0 0.0
  %1996 = vmatprep.subr.mxu0 0.0
  %1997 = vmatpush1.msra.mxu0 0.0
  %1998 = vmatprep.subr.mxu0 0.0
  %1999 = vmatpush1.msra.mxu0 0.0
  %2000 = vmatprep.subr.mxu0 0.0
  %2001 = vmatpush1.msra.mxu0 0.0
  %2002 = vmatprep.subr.mxu0 0.0
  %2003 = vmatpush1.msra.mxu0 0.0
  %2004 = vmatprep.subr.mxu0 0.0
  %2005 = vmatpush1.msra.mxu0 0.0
  %2006 = vmatprep.subr.mxu0 0.0
  %2007 = vmatpush1.msra.mxu0 0.0
  %2008 = vmatprep.subr.mxu0 0.0
  %2009 = vmatpush1.msra.mxu0 0.0
  %2010 = vmatprep.subr.mxu0 0.0
  %2011 = vmatpush1.msra.mxu0 0.0
  %2012 = vmatprep.subr.mxu0 0.0
  %2013 = vmatpush1.msra.mxu0 0.0
  %2014 = vmatprep.subr.mxu0 0.0
  %2015 = vmatpush1.msra.mxu0 0.0
  %2016 = vmatprep.subr.mxu0 0.0
  %2017 = vmatpush1.msra.mxu0 0.0
  %2018 = vmatprep.subr.mxu0 0.0
  %2019 = vmatpush1.msra.mxu0 0.0
  %2020 = vmatprep.subr.mxu0 0.0
  %2021 = vmatpush1.msra.mxu0 0.0
  %2022 = vmatprep.subr.mxu0 0.0
  %2023 = vmatpush1.msra.mxu0 0.0
  %2024 = vmatprep.subr.mxu0 0.0
  %2025 = vmatpush1.msra.mxu0 0.0
  %2026 = vmatprep.subr.mxu0 0.0
  %2027 = vmatpush1.msra.mxu0 0.0
  %2028 = vmatprep.subr.mxu0 0.0
  %2029 = vmatpush1.msra.mxu0 0.0
  %2030 = vmatprep.subr.mxu0 0.0
  %2031 = vmatpush1.msra.mxu0 0.0
  %2032 = vmatprep.subr.mxu0 0.0
  %2033 = vmatpush1.msra.mxu0 0.0
  %2034 = vmatprep.subr.mxu0 0.0
  %2035 = vmatpush1.msra.mxu0 0.0
  %2036 = vmatprep.subr.mxu0 0.0
  %2037 = vmatpush1.msra.mxu0 0.0
  %2038 = vmatprep.subr.mxu0 0.0
  %2039 = vmatpush1.msra.mxu0 0.0
  %2040 = vmatprep.subr.mxu0 0.0
  %2041 = vmatpush1.msra.mxu0 0.0
  %2042 = vmatprep.subr.mxu0 0.0
  %2043 = vmatpush1.msra.mxu0 0.0
  %2044 = vmatprep.mubr.f32.mxu0 0.0
  %2045 = vmatmul.mubr.f32.gmra.mrb[0].mxu0 %v1978
  %v2046 = vpop.f32.mrb[0].mxu0
  %v2047 = vadd.f32 0.0, %v2046
  %v2048 = vpop.f32.mrb[0].mxu0
  %v2049 = vadd.f32 0.0, %v2048
  %2050 = vdwg.mxu0
  %2051 = vmatprep.subr.mxu0 %v1972
  %2052 = vmatpush1.msra.mxu0 %v1971
  %2053 = vmatprep.subr.mxu0 0.0
  %2054 = vmatpush1.msra.mxu0 0.0
  %2055 = vmatprep.subr.mxu0 0.0
  %2056 = vmatpush1.msra.mxu0 0.0
  %2057 = vmatprep.subr.mxu0 0.0
  %2058 = vmatpush1.msra.mxu0 0.0
  %2059 = vmatprep.subr.mxu0 0.0
  %2060 = vmatpush1.msra.mxu0 0.0
  %2061 = vmatprep.subr.mxu0 0.0
  %2062 = vmatpush1.msra.mxu0 0.0
  %2063 = vmatprep.subr.mxu0 0.0
  %2064 = vmatpush1.msra.mxu0 0.0
  %2065 = vmatprep.subr.mxu0 0.0
  %2066 = vmatpush1.msra.mxu0 0.0
  %2067 = vmatprep.subr.mxu0 0.0
  %2068 = vmatpush1.msra.mxu0 0.0
  %2069 = vmatprep.subr.mxu0 0.0
  %2070 = vmatpush1.msra.mxu0 0.0
  %2071 = vmatprep.subr.mxu0 0.0
  %2072 = vmatpush1.msra.mxu0 0.0
  %2073 = vmatprep.subr.mxu0 0.0
  %2074 = vmatpush1.msra.mxu0 0.0
  %2075 = vmatprep.subr.mxu0 0.0
  %2076 = vmatpush1.msra.mxu0 0.0
  %2077 = vmatprep.subr.mxu0 0.0
  %2078 = vmatpush1.msra.mxu0 0.0
  %2079 = vmatprep.subr.mxu0 0.0
  %2080 = vmatpush1.msra.mxu0 0.0
  %2081 = vmatprep.subr.mxu0 0.0
  %2082 = vmatpush1.msra.mxu0 0.0
  %2083 = vmatprep.subr.mxu0 0.0
  %2084 = vmatpush1.msra.mxu0 0.0
  %2085 = vmatprep.subr.mxu0 0.0
  %2086 = vmatpush1.msra.mxu0 0.0
  %2087 = vmatprep.subr.mxu0 0.0
  %2088 = vmatpush1.msra.mxu0 0.0
  %2089 = vmatprep.subr.mxu0 0.0
  %2090 = vmatpush1.msra.mxu0 0.0
  %2091 = vmatprep.subr.mxu0 0.0
  %2092 = vmatpush1.msra.mxu0 0.0
  %2093 = vmatprep.subr.mxu0 0.0
  %2094 = vmatpush1.msra.mxu0 0.0
  %2095 = vmatprep.subr.mxu0 0.0
  %2096 = vmatpush1.msra.mxu0 0.0
  %2097 = vmatprep.subr.mxu0 0.0
  %2098 = vmatpush1.msra.mxu0 0.0
  %2099 = vmatprep.subr.mxu0 0.0
  %2100 = vmatpush1.msra.mxu0 0.0
  %2101 = vmatprep.subr.mxu0 0.0
  %2102 = vmatpush1.msra.mxu0 0.0
  %2103 = vmatprep.subr.mxu0 0.0
  %2104 = vmatpush1.msra.mxu0 0.0
  %2105 = vmatprep.subr.mxu0 0.0
  %2106 = vmatpush1.msra.mxu0 0.0
  %2107 = vmatprep.subr.mxu0 0.0
  %2108 = vmatpush1.msra.mxu0 0.0
  %2109 = vmatprep.subr.mxu0 0.0
  %2110 = vmatpush1.msra.mxu0 0.0
  %2111 = vmatprep.subr.mxu0 0.0
  %2112 = vmatpush1.msra.mxu0 0.0
  %2113 = vmatprep.subr.mxu0 0.0
  %2114 = vmatpush1.msra.mxu0 0.0
  %2115 = vmatprep.mubr.f32.mxu0 0.0
  %2116 = vmatmul.mubr.f32.gmra.mrb[0].mxu0 %v1978
  %v2117 = vpop.f32.mrb[0].mxu0
  %v2118 = vadd.f32 0.0, %v2117
  %v2119 = vpop.f32.mrb[0].mxu0
  %v2120 = vadd.f32 0.0, %v2119
  %2121 = vdwg.mxu0
  %2127 = vrot.lane.b32.xlu0 %v1941, 17
  %v2128 = vpop.permute.xlu0 %2127
  %2129 = vrot.lane.b32.xlu0 %v1942, 17
  %v2130 = vpop.permute.xlu0 %2129
  %2131 = vrot.lane.b32.xlu0 %v1943, 17
  %v2132 = vpop.permute.xlu0 %2131
  %2133 = vrot.lane.b32.xlu0 %v1944, 17
  %v2134 = vpop.permute.xlu0 %2133
  %2135 = vrot.lane.b32.xlu0 %v1945, 17
  %v2136 = vpop.permute.xlu0 %2135
  %v2137 = vsel %vm332, %v2128, %v2130
  %v2138 = vsel %vm332, %v2130, %v2132
  %v2139 = vsel %vm332, %v2132, %v2134
  %v2140 = vsel %vm332, %v2134, %v2136
  %v2146 = vsel %vm171, %v1946, 0
  %2148 = vmatprep.subr.mxu0 %v2138
  %2149 = vmatpush1.msra.mxu0 %v2137
  %2150 = vmatprep.subr.mxu0 0.0
  %2151 = vmatpush1.msra.mxu0 0.0
  %2152 = vmatprep.subr.mxu0 0.0
  %2153 = vmatpush1.msra.mxu0 0.0
  %2154 = vmatprep.subr.mxu0 0.0
  %2155 = vmatpush1.msra.mxu0 0.0
  %2156 = vmatprep.subr.mxu0 0.0
  %2157 = vmatpush1.msra.mxu0 0.0
  %2158 = vmatprep.subr.mxu0 0.0
  %2159 = vmatpush1.msra.mxu0 0.0
  %2160 = vmatprep.subr.mxu0 0.0
  %2161 = vmatpush1.msra.mxu0 0.0
  %2162 = vmatprep.subr.mxu0 0.0
  %2163 = vmatpush1.msra.mxu0 0.0
  %2164 = vmatprep.subr.mxu0 0.0
  %2165 = vmatpush1.msra.mxu0 0.0
  %2166 = vmatprep.subr.mxu0 0.0
  %2167 = vmatpush1.msra.mxu0 0.0
  %2168 = vmatprep.subr.mxu0 0.0
  %2169 = vmatpush1.msra.mxu0 0.0
  %2170 = vmatprep.subr.mxu0 0.0
  %2171 = vmatpush1.msra.mxu0 0.0
  %2172 = vmatprep.subr.mxu0 0.0
  %2173 = vmatpush1.msra.mxu0 0.0
  %2174 = vmatprep.subr.mxu0 0.0
  %2175 = vmatpush1.msra.mxu0 0.0
  %2176 = vmatprep.subr.mxu0 0.0
  %2177 = vmatpush1.msra.mxu0 0.0
  %2178 = vmatprep.subr.mxu0 0.0
  %2179 = vmatpush1.msra.mxu0 0.0
  %2180 = vmatprep.subr.mxu0 0.0
  %2181 = vmatpush1.msra.mxu0 0.0
  %2182 = vmatprep.subr.mxu0 0.0
  %2183 = vmatpush1.msra.mxu0 0.0
  %2184 = vmatprep.subr.mxu0 0.0
  %2185 = vmatpush1.msra.mxu0 0.0
  %2186 = vmatprep.subr.mxu0 0.0
  %2187 = vmatpush1.msra.mxu0 0.0
  %2188 = vmatprep.subr.mxu0 0.0
  %2189 = vmatpush1.msra.mxu0 0.0
  %2190 = vmatprep.subr.mxu0 0.0
  %2191 = vmatpush1.msra.mxu0 0.0
  %2192 = vmatprep.subr.mxu0 0.0
  %2193 = vmatpush1.msra.mxu0 0.0
  %2194 = vmatprep.subr.mxu0 0.0
  %2195 = vmatpush1.msra.mxu0 0.0
  %2196 = vmatprep.subr.mxu0 0.0
  %2197 = vmatpush1.msra.mxu0 0.0
  %2198 = vmatprep.subr.mxu0 0.0
  %2199 = vmatpush1.msra.mxu0 0.0
  %2200 = vmatprep.subr.mxu0 0.0
  %2201 = vmatpush1.msra.mxu0 0.0
  %2202 = vmatprep.subr.mxu0 0.0
  %2203 = vmatpush1.msra.mxu0 0.0
  %2204 = vmatprep.subr.mxu0 0.0
  %2205 = vmatpush1.msra.mxu0 0.0
  %2206 = vmatprep.subr.mxu0 0.0
  %2207 = vmatpush1.msra.mxu0 0.0
  %2208 = vmatprep.subr.mxu0 0.0
  %2209 = vmatpush1.msra.mxu0 0.0
  %2210 = vmatprep.subr.mxu0 0.0
  %2211 = vmatpush1.msra.mxu0 0.0
  %2212 = vmatprep.mubr.f32.mxu0 0.0
  %2213 = vmatmul.mubr.f32.gmra.mrb[0].mxu0 %v2146
  %v2214 = vpop.f32.mrb[0].mxu0
  %v2215 = vadd.f32 %v2047, %v2214
  %v2216 = vpop.f32.mrb[0].mxu0
  %v2217 = vadd.f32 %v2049, %v2216
  %2218 = vdwg.mxu0
  %2219 = vmatprep.subr.mxu0 %v2140
  %2220 = vmatpush1.msra.mxu0 %v2139
  %2221 = vmatprep.subr.mxu0 0.0
  %2222 = vmatpush1.msra.mxu0 0.0
  %2223 = vmatprep.subr.mxu0 0.0
  %2224 = vmatpush1.msra.mxu0 0.0
  %2225 = vmatprep.subr.mxu0 0.0
  %2226 = vmatpush1.msra.mxu0 0.0
  %2227 = vmatprep.subr.mxu0 0.0
  %2228 = vmatpush1.msra.mxu0 0.0
  %2229 = vmatprep.subr.mxu0 0.0
  %2230 = vmatpush1.msra.mxu0 0.0
  %2231 = vmatprep.subr.mxu0 0.0
  %2232 = vmatpush1.msra.mxu0 0.0
  %2233 = vmatprep.subr.mxu0 0.0
  %2234 = vmatpush1.msra.mxu0 0.0
  %2235 = vmatprep.subr.mxu0 0.0
  %2236 = vmatpush1.msra.mxu0 0.0
  %2237 = vmatprep.subr.mxu0 0.0
  %2238 = vmatpush1.msra.mxu0 0.0
  %2239 = vmatprep.subr.mxu0 0.0
  %2240 = vmatpush1.msra.mxu0 0.0
  %2241 = vmatprep.subr.mxu0 0.0
  %2242 = vmatpush1.msra.mxu0 0.0
  %2243 = vmatprep.subr.mxu0 0.0
  %2244 = vmatpush1.msra.mxu0 0.0
  %2245 = vmatprep.subr.mxu0 0.0
  %2246 = vmatpush1.msra.mxu0 0.0
  %2247 = vmatprep.subr.mxu0 0.0
  %2248 = vmatpush1.msra.mxu0 0.0
  %2249 = vmatprep.subr.mxu0 0.0
  %2250 = vmatpush1.msra.mxu0 0.0
  %2251 = vmatprep.subr.mxu0 0.0
  %2252 = vmatpush1.msra.mxu0 0.0
  %2253 = vmatprep.subr.mxu0 0.0
  %2254 = vmatpush1.msra.mxu0 0.0
  %2255 = vmatprep.subr.mxu0 0.0
  %2256 = vmatpush1.msra.mxu0 0.0
  %2257 = vmatprep.subr.mxu0 0.0
  %2258 = vmatpush1.msra.mxu0 0.0
  %2259 = vmatprep.subr.mxu0 0.0
  %2260 = vmatpush1.msra.mxu0 0.0
  %2261 = vmatprep.subr.mxu0 0.0
  %2262 = vmatpush1.msra.mxu0 0.0
  %2263 = vmatprep.subr.mxu0 0.0
  %2264 = vmatpush1.msra.mxu0 0.0
  %2265 = vmatprep.subr.mxu0 0.0
  %2266 = vmatpush1.msra.mxu0 0.0
  %2267 = vmatprep.subr.mxu0 0.0
  %2268 = vmatpush1.msra.mxu0 0.0
  %2269 = vmatprep.subr.mxu0 0.0
  %2270 = vmatpush1.msra.mxu0 0.0
  %2271 = vmatprep.subr.mxu0 0.0
  %2272 = vmatpush1.msra.mxu0 0.0
  %2273 = vmatprep.subr.mxu0 0.0
  %2274 = vmatpush1.msra.mxu0 0.0
  %2275 = vmatprep.subr.mxu0 0.0
  %2276 = vmatpush1.msra.mxu0 0.0
  %2277 = vmatprep.subr.mxu0 0.0
  %2278 = vmatpush1.msra.mxu0 0.0
  %2279 = vmatprep.subr.mxu0 0.0
  %2280 = vmatpush1.msra.mxu0 0.0
  %2281 = vmatprep.subr.mxu0 0.0
  %2282 = vmatpush1.msra.mxu0 0.0
  %2283 = vmatprep.mubr.f32.mxu0 0.0
  %2284 = vmatmul.mubr.f32.gmra.mrb[0].mxu0 %v2146
  %v2285 = vpop.f32.mrb[0].mxu0
  %v2286 = vadd.f32 %v2118, %v2285
  %v2287 = vpop.f32.mrb[0].mxu0
  %v2288 = vadd.f32 %v2120, %v2287
  %2289 = vdwg.mxu0
  %v2290 = vmul.f32 %v1931, %v487
  %v2291 = vmul.f32 %v1932, %v495
  %v2292 = vmul.f32 %v1933, %v496
  %v2293 = vmul.f32 %v1934, %v497
  %v2294 = vmul.f32 %v1935, %v493
  %v2295 = vmul.f32 %v2290, %v526
  %v2296 = vmul.f32 %v2291, %v533
  %v2297 = vmul.f32 %v2292, %v534
  %v2298 = vmul.f32 %v2293, %v535
  %v2299 = vmul.f32 %v2294, %v532
  %s2300 = scalar_lea.vmem %s3, 16
  %v2301 = vld [vmem:[%s2300] sm:$0xff]
  %2307 = vrot.lane.b32.xlu0 %v2295, 15
  %v2308 = vpop.permute.xlu0 %2307
  %2309 = vrot.lane.b32.xlu0 %v2296, 15
  %v2310 = vpop.permute.xlu0 %2309
  %2311 = vrot.lane.b32.xlu0 %v2297, 15
  %v2312 = vpop.permute.xlu0 %2311
  %2313 = vrot.lane.b32.xlu0 %v2298, 15
  %v2314 = vpop.permute.xlu0 %2313
  %2315 = vrot.lane.b32.xlu0 %v2299, 15
  %v2316 = vpop.permute.xlu0 %2315
  %v2317 = vsel %vm563, %v2308, %v2310
  %v2318 = vsel %vm563, %v2310, %v2312
  %v2319 = vsel %vm563, %v2312, %v2314
  %v2320 = vsel %vm563, %v2314, %v2316
  %v2326 = vsel %vm171, %v2301, 0
  %2328 = vmatprep.subr.mxu0 %v2318
  %2329 = vmatpush1.msra.mxu0 %v2317
  %2330 = vmatprep.subr.mxu0 0.0
  %2331 = vmatpush1.msra.mxu0 0.0
  %2332 = vmatprep.subr.mxu0 0.0
  %2333 = vmatpush1.msra.mxu0 0.0
  %2334 = vmatprep.subr.mxu0 0.0
  %2335 = vmatpush1.msra.mxu0 0.0
  %2336 = vmatprep.subr.mxu0 0.0
  %2337 = vmatpush1.msra.mxu0 0.0
  %2338 = vmatprep.subr.mxu0 0.0
  %2339 = vmatpush1.msra.mxu0 0.0
  %2340 = vmatprep.subr.mxu0 0.0
  %2341 = vmatpush1.msra.mxu0 0.0
  %2342 = vmatprep.subr.mxu0 0.0
  %2343 = vmatpush1.msra.mxu0 0.0
  %2344 = vmatprep.subr.mxu0 0.0
  %2345 = vmatpush1.msra.mxu0 0.0
  %2346 = vmatprep.subr.mxu0 0.0
  %2347 = vmatpush1.msra.mxu0 0.0
  %2348 = vmatprep.subr.mxu0 0.0
  %2349 = vmatpush1.msra.mxu0 0.0
  %2350 = vmatprep.subr.mxu0 0.0
  %2351 = vmatpush1.msra.mxu0 0.0
  %2352 = vmatprep.subr.mxu0 0.0
  %2353 = vmatpush1.msra.mxu0 0.0
  %2354 = vmatprep.subr.mxu0 0.0
  %2355 = vmatpush1.msra.mxu0 0.0
  %2356 = vmatprep.subr.mxu0 0.0
  %2357 = vmatpush1.msra.mxu0 0.0
  %2358 = vmatprep.subr.mxu0 0.0
  %2359 = vmatpush1.msra.mxu0 0.0
  %2360 = vmatprep.subr.mxu0 0.0
  %2361 = vmatpush1.msra.mxu0 0.0
  %2362 = vmatprep.subr.mxu0 0.0
  %2363 = vmatpush1.msra.mxu0 0.0
  %2364 = vmatprep.subr.mxu0 0.0
  %2365 = vmatpush1.msra.mxu0 0.0
  %2366 = vmatprep.subr.mxu0 0.0
  %2367 = vmatpush1.msra.mxu0 0.0
  %2368 = vmatprep.subr.mxu0 0.0
  %2369 = vmatpush1.msra.mxu0 0.0
  %2370 = vmatprep.subr.mxu0 0.0
  %2371 = vmatpush1.msra.mxu0 0.0
  %2372 = vmatprep.subr.mxu0 0.0
  %2373 = vmatpush1.msra.mxu0 0.0
  %2374 = vmatprep.subr.mxu0 0.0
  %2375 = vmatpush1.msra.mxu0 0.0
  %2376 = vmatprep.subr.mxu0 0.0
  %2377 = vmatpush1.msra.mxu0 0.0
  %2378 = vmatprep.subr.mxu0 0.0
  %2379 = vmatpush1.msra.mxu0 0.0
  %2380 = vmatprep.subr.mxu0 0.0
  %2381 = vmatpush1.msra.mxu0 0.0
  %2382 = vmatprep.subr.mxu0 0.0
  %2383 = vmatpush1.msra.mxu0 0.0
  %2384 = vmatprep.subr.mxu0 0.0
  %2385 = vmatpush1.msra.mxu0 0.0
  %2386 = vmatprep.subr.mxu0 0.0
  %2387 = vmatpush1.msra.mxu0 0.0
  %2388 = vmatprep.subr.mxu0 0.0
  %2389 = vmatpush1.msra.mxu0 0.0
  %2390 = vmatprep.subr.mxu0 0.0
  %2391 = vmatpush1.msra.mxu0 0.0
  %2392 = vmatprep.mubr.f32.mxu0 0.0
  %2393 = vmatmul.mubr.f32.gmra.mrb[0].mxu0 %v2326
  %v2394 = vpop.f32.mrb[0].mxu0
  %v2395 = vadd.f32 0.0, %v2394
  %v2396 = vpop.f32.mrb[0].mxu0
  %v2397 = vadd.f32 0.0, %v2396
  %2398 = vdwg.mxu0
  %2399 = vmatprep.subr.mxu0 %v2320
  %2400 = vmatpush1.msra.mxu0 %v2319
  %2401 = vmatprep.subr.mxu0 0.0
  %2402 = vmatpush1.msra.mxu0 0.0
  %2403 = vmatprep.subr.mxu0 0.0
  %2404 = vmatpush1.msra.mxu0 0.0
  %2405 = vmatprep.subr.mxu0 0.0
  %2406 = vmatpush1.msra.mxu0 0.0
  %2407 = vmatprep.subr.mxu0 0.0
  %2408 = vmatpush1.msra.mxu0 0.0
  %2409 = vmatprep.subr.mxu0 0.0
  %2410 = vmatpush1.msra.mxu0 0.0
  %2411 = vmatprep.subr.mxu0 0.0
  %2412 = vmatpush1.msra.mxu0 0.0
  %2413 = vmatprep.subr.mxu0 0.0
  %2414 = vmatpush1.msra.mxu0 0.0
  %2415 = vmatprep.subr.mxu0 0.0
  %2416 = vmatpush1.msra.mxu0 0.0
  %2417 = vmatprep.subr.mxu0 0.0
  %2418 = vmatpush1.msra.mxu0 0.0
  %2419 = vmatprep.subr.mxu0 0.0
  %2420 = vmatpush1.msra.mxu0 0.0
  %2421 = vmatprep.subr.mxu0 0.0
  %2422 = vmatpush1.msra.mxu0 0.0
  %2423 = vmatprep.subr.mxu0 0.0
  %2424 = vmatpush1.msra.mxu0 0.0
  %2425 = vmatprep.subr.mxu0 0.0
  %2426 = vmatpush1.msra.mxu0 0.0
  %2427 = vmatprep.subr.mxu0 0.0
  %2428 = vmatpush1.msra.mxu0 0.0
  %2429 = vmatprep.subr.mxu0 0.0
  %2430 = vmatpush1.msra.mxu0 0.0
  %2431 = vmatprep.subr.mxu0 0.0
  %2432 = vmatpush1.msra.mxu0 0.0
  %2433 = vmatprep.subr.mxu0 0.0
  %2434 = vmatpush1.msra.mxu0 0.0
  %2435 = vmatprep.subr.mxu0 0.0
  %2436 = vmatpush1.msra.mxu0 0.0
  %2437 = vmatprep.subr.mxu0 0.0
  %2438 = vmatpush1.msra.mxu0 0.0
  %2439 = vmatprep.subr.mxu0 0.0
  %2440 = vmatpush1.msra.mxu0 0.0
  %2441 = vmatprep.subr.mxu0 0.0
  %2442 = vmatpush1.msra.mxu0 0.0
  %2443 = vmatprep.subr.mxu0 0.0
  %2444 = vmatpush1.msra.mxu0 0.0
  %2445 = vmatprep.subr.mxu0 0.0
  %2446 = vmatpush1.msra.mxu0 0.0
  %2447 = vmatprep.subr.mxu0 0.0
  %2448 = vmatpush1.msra.mxu0 0.0
  %2449 = vmatprep.subr.mxu0 0.0
  %2450 = vmatpush1.msra.mxu0 0.0
  %2451 = vmatprep.subr.mxu0 0.0
  %2452 = vmatpush1.msra.mxu0 0.0
  %2453 = vmatprep.subr.mxu0 0.0
  %2454 = vmatpush1.msra.mxu0 0.0
  %2455 = vmatprep.subr.mxu0 0.0
  %2456 = vmatpush1.msra.mxu0 0.0
  %2457 = vmatprep.subr.mxu0 0.0
  %2458 = vmatpush1.msra.mxu0 0.0
  %2459 = vmatprep.subr.mxu0 0.0
  %2460 = vmatpush1.msra.mxu0 0.0
  %2461 = vmatprep.subr.mxu0 0.0
  %2462 = vmatpush1.msra.mxu0 0.0
  %2463 = vmatprep.mubr.f32.mxu0 0.0
  %2464 = vmatmul.mubr.f32.gmra.mrb[0].mxu0 %v2326
  %v2465 = vpop.f32.mrb[0].mxu0
  %v2466 = vadd.f32 0.0, %v2465
  %v2467 = vpop.f32.mrb[0].mxu0
  %v2468 = vadd.f32 0.0, %v2467
  %2469 = vdwg.mxu0
  %v2470 = vadd.f32 %v2215, %v2395
  %v2471 = vadd.f32 %v2217, %v2397
  %v2472 = vadd.f32 %v2286, %v2466
  %v2473 = vadd.f32 %v2288, %v2468
  %v2474 = vmul.f32 %v1931, %v722
  %v2475 = vmul.f32 %v1932, %v730
  %v2476 = vmul.f32 %v1933, %v731
  %v2477 = vmul.f32 %v1934, %v732
  %v2478 = vmul.f32 %v1935, %v728
  %s2479 = scalar_lea.vmem %s3, 24
  %v2480 = vld [vmem:[%s2479] sm:$0xff]
  %2486 = vrot.lane.b32.xlu0 %v2474, 1
  %v2487 = vpop.permute.xlu0 %2486
  %2488 = vrot.lane.b32.xlu0 %v2475, 1
  %v2489 = vpop.permute.xlu0 %2488
  %2490 = vrot.lane.b32.xlu0 %v2476, 1
  %v2491 = vpop.permute.xlu0 %2490
  %2492 = vrot.lane.b32.xlu0 %v2477, 1
  %v2493 = vpop.permute.xlu0 %2492
  %2494 = vrot.lane.b32.xlu0 %v2478, 1
  %v2495 = vpop.permute.xlu0 %2494
  %v2496 = vsel %vm760, %v2487, %v2489
  %v2497 = vsel %vm760, %v2489, %v2491
  %v2498 = vsel %vm760, %v2491, %v2493
  %v2499 = vsel %vm760, %v2493, %v2495
  %v2505 = vsel %vm171, %v2480, 0
  %2507 = vmatprep.subr.mxu0 %v2497
  %2508 = vmatpush1.msra.mxu0 %v2496
  %2509 = vmatprep.subr.mxu0 0.0
  %2510 = vmatpush1.msra.mxu0 0.0
  %2511 = vmatprep.subr.mxu0 0.0
  %2512 = vmatpush1.msra.mxu0 0.0
  %2513 = vmatprep.subr.mxu0 0.0
  %2514 = vmatpush1.msra.mxu0 0.0
  %2515 = vmatprep.subr.mxu0 0.0
  %2516 = vmatpush1.msra.mxu0 0.0
  %2517 = vmatprep.subr.mxu0 0.0
  %2518 = vmatpush1.msra.mxu0 0.0
  %2519 = vmatprep.subr.mxu0 0.0
  %2520 = vmatpush1.msra.mxu0 0.0
  %2521 = vmatprep.subr.mxu0 0.0
  %2522 = vmatpush1.msra.mxu0 0.0
  %2523 = vmatprep.subr.mxu0 0.0
  %2524 = vmatpush1.msra.mxu0 0.0
  %2525 = vmatprep.subr.mxu0 0.0
  %2526 = vmatpush1.msra.mxu0 0.0
  %2527 = vmatprep.subr.mxu0 0.0
  %2528 = vmatpush1.msra.mxu0 0.0
  %2529 = vmatprep.subr.mxu0 0.0
  %2530 = vmatpush1.msra.mxu0 0.0
  %2531 = vmatprep.subr.mxu0 0.0
  %2532 = vmatpush1.msra.mxu0 0.0
  %2533 = vmatprep.subr.mxu0 0.0
  %2534 = vmatpush1.msra.mxu0 0.0
  %2535 = vmatprep.subr.mxu0 0.0
  %2536 = vmatpush1.msra.mxu0 0.0
  %2537 = vmatprep.subr.mxu0 0.0
  %2538 = vmatpush1.msra.mxu0 0.0
  %2539 = vmatprep.subr.mxu0 0.0
  %2540 = vmatpush1.msra.mxu0 0.0
  %2541 = vmatprep.subr.mxu0 0.0
  %2542 = vmatpush1.msra.mxu0 0.0
  %2543 = vmatprep.subr.mxu0 0.0
  %2544 = vmatpush1.msra.mxu0 0.0
  %2545 = vmatprep.subr.mxu0 0.0
  %2546 = vmatpush1.msra.mxu0 0.0
  %2547 = vmatprep.subr.mxu0 0.0
  %2548 = vmatpush1.msra.mxu0 0.0
  %2549 = vmatprep.subr.mxu0 0.0
  %2550 = vmatpush1.msra.mxu0 0.0
  %2551 = vmatprep.subr.mxu0 0.0
  %2552 = vmatpush1.msra.mxu0 0.0
  %2553 = vmatprep.subr.mxu0 0.0
  %2554 = vmatpush1.msra.mxu0 0.0
  %2555 = vmatprep.subr.mxu0 0.0
  %2556 = vmatpush1.msra.mxu0 0.0
  %2557 = vmatprep.subr.mxu0 0.0
  %2558 = vmatpush1.msra.mxu0 0.0
  %2559 = vmatprep.subr.mxu0 0.0
  %2560 = vmatpush1.msra.mxu0 0.0
  %2561 = vmatprep.subr.mxu0 0.0
  %2562 = vmatpush1.msra.mxu0 0.0
  %2563 = vmatprep.subr.mxu0 0.0
  %2564 = vmatpush1.msra.mxu0 0.0
  %2565 = vmatprep.subr.mxu0 0.0
  %2566 = vmatpush1.msra.mxu0 0.0
  %2567 = vmatprep.subr.mxu0 0.0
  %2568 = vmatpush1.msra.mxu0 0.0
  %2569 = vmatprep.subr.mxu0 0.0
  %2570 = vmatpush1.msra.mxu0 0.0
  %2571 = vmatprep.mubr.f32.mxu0 0.0
  %2572 = vmatmul.mubr.f32.gmra.mrb[0].mxu0 %v2505
  %v2573 = vpop.f32.mrb[0].mxu0
  %v2574 = vadd.f32 0.0, %v2573
  %v2575 = vpop.f32.mrb[0].mxu0
  %v2576 = vadd.f32 0.0, %v2575
  %2577 = vdwg.mxu0
  %2578 = vmatprep.subr.mxu0 %v2499
  %2579 = vmatpush1.msra.mxu0 %v2498
  %2580 = vmatprep.subr.mxu0 0.0
  %2581 = vmatpush1.msra.mxu0 0.0
  %2582 = vmatprep.subr.mxu0 0.0
  %2583 = vmatpush1.msra.mxu0 0.0
  %2584 = vmatprep.subr.mxu0 0.0
  %2585 = vmatpush1.msra.mxu0 0.0
  %2586 = vmatprep.subr.mxu0 0.0
  %2587 = vmatpush1.msra.mxu0 0.0
  %2588 = vmatprep.subr.mxu0 0.0
  %2589 = vmatpush1.msra.mxu0 0.0
  %2590 = vmatprep.subr.mxu0 0.0
  %2591 = vmatpush1.msra.mxu0 0.0
  %2592 = vmatprep.subr.mxu0 0.0
  %2593 = vmatpush1.msra.mxu0 0.0
  %2594 = vmatprep.subr.mxu0 0.0
  %2595 = vmatpush1.msra.mxu0 0.0
  %2596 = vmatprep.subr.mxu0 0.0
  %2597 = vmatpush1.msra.mxu0 0.0
  %2598 = vmatprep.subr.mxu0 0.0
  %2599 = vmatpush1.msra.mxu0 0.0
  %2600 = vmatprep.subr.mxu0 0.0
  %2601 = vmatpush1.msra.mxu0 0.0
  %2602 = vmatprep.subr.mxu0 0.0
  %2603 = vmatpush1.msra.mxu0 0.0
  %2604 = vmatprep.subr.mxu0 0.0
  %2605 = vmatpush1.msra.mxu0 0.0
  %2606 = vmatprep.subr.mxu0 0.0
  %2607 = vmatpush1.msra.mxu0 0.0
  %2608 = vmatprep.subr.mxu0 0.0
  %2609 = vmatpush1.msra.mxu0 0.0
  %2610 = vmatprep.subr.mxu0 0.0
  %2611 = vmatpush1.msra.mxu0 0.0
  %2612 = vmatprep.subr.mxu0 0.0
  %2613 = vmatpush1.msra.mxu0 0.0
  %2614 = vmatprep.subr.mxu0 0.0
  %2615 = vmatpush1.msra.mxu0 0.0
  %2616 = vmatprep.subr.mxu0 0.0
  %2617 = vmatpush1.msra.mxu0 0.0
  %2618 = vmatprep.subr.mxu0 0.0
  %2619 = vmatpush1.msra.mxu0 0.0
  %2620 = vmatprep.subr.mxu0 0.0
  %2621 = vmatpush1.msra.mxu0 0.0
  %2622 = vmatprep.subr.mxu0 0.0
  %2623 = vmatpush1.msra.mxu0 0.0
  %2624 = vmatprep.subr.mxu0 0.0
  %2625 = vmatpush1.msra.mxu0 0.0
  %2626 = vmatprep.subr.mxu0 0.0
  %2627 = vmatpush1.msra.mxu0 0.0
  %2628 = vmatprep.subr.mxu0 0.0
  %2629 = vmatpush1.msra.mxu0 0.0
  %2630 = vmatprep.subr.mxu0 0.0
  %2631 = vmatpush1.msra.mxu0 0.0
  %2632 = vmatprep.subr.mxu0 0.0
  %2633 = vmatpush1.msra.mxu0 0.0
  %2634 = vmatprep.subr.mxu0 0.0
  %2635 = vmatpush1.msra.mxu0 0.0
  %2636 = vmatprep.subr.mxu0 0.0
  %2637 = vmatpush1.msra.mxu0 0.0
  %2638 = vmatprep.subr.mxu0 0.0
  %2639 = vmatpush1.msra.mxu0 0.0
  %2640 = vmatprep.subr.mxu0 0.0
  %2641 = vmatpush1.msra.mxu0 0.0
  %2642 = vmatprep.mubr.f32.mxu0 0.0
  %2643 = vmatmul.mubr.f32.gmra.mrb[0].mxu0 %v2505
  %v2644 = vpop.f32.mrb[0].mxu0
  %v2645 = vadd.f32 0.0, %v2644
  %v2646 = vpop.f32.mrb[0].mxu0
  %v2647 = vadd.f32 0.0, %v2646
  %2648 = vdwg.mxu0
  %v2649 = vadd.f32 %v2470, %v2574
  %v2650 = vadd.f32 %v2471, %v2576
  %v2651 = vadd.f32 %v2472, %v2645
  %v2652 = vadd.f32 %v2473, %v2647
  %s2653 = scalar_lea.vmem %s3, 32
  %v2654 = vld [vmem:[%s2653] sm:$0xff]
  %v2656 = vsel %vm171, %v2654, 0
  %2658 = vmatprep.subr.mxu0 %v1933
  %2659 = vmatpush1.msra.mxu0 %v1932
  %2660 = vmatprep.subr.mxu0 0.0
  %2661 = vmatpush1.msra.mxu0 0.0
  %2662 = vmatprep.subr.mxu0 0.0
  %2663 = vmatpush1.msra.mxu0 0.0
  %2664 = vmatprep.subr.mxu0 0.0
  %2665 = vmatpush1.msra.mxu0 0.0
  %2666 = vmatprep.subr.mxu0 0.0
  %2667 = vmatpush1.msra.mxu0 0.0
  %2668 = vmatprep.subr.mxu0 0.0
  %2669 = vmatpush1.msra.mxu0 0.0
  %2670 = vmatprep.subr.mxu0 0.0
  %2671 = vmatpush1.msra.mxu0 0.0
  %2672 = vmatprep.subr.mxu0 0.0
  %2673 = vmatpush1.msra.mxu0 0.0
  %2674 = vmatprep.subr.mxu0 0.0
  %2675 = vmatpush1.msra.mxu0 0.0
  %2676 = vmatprep.subr.mxu0 0.0
  %2677 = vmatpush1.msra.mxu0 0.0
  %2678 = vmatprep.subr.mxu0 0.0
  %2679 = vmatpush1.msra.mxu0 0.0
  %2680 = vmatprep.subr.mxu0 0.0
  %2681 = vmatpush1.msra.mxu0 0.0
  %2682 = vmatprep.subr.mxu0 0.0
  %2683 = vmatpush1.msra.mxu0 0.0
  %2684 = vmatprep.subr.mxu0 0.0
  %2685 = vmatpush1.msra.mxu0 0.0
  %2686 = vmatprep.subr.mxu0 0.0
  %2687 = vmatpush1.msra.mxu0 0.0
  %2688 = vmatprep.subr.mxu0 0.0
  %2689 = vmatpush1.msra.mxu0 0.0
  %2690 = vmatprep.subr.mxu0 0.0
  %2691 = vmatpush1.msra.mxu0 0.0
  %2692 = vmatprep.subr.mxu0 0.0
  %2693 = vmatpush1.msra.mxu0 0.0
  %2694 = vmatprep.subr.mxu0 0.0
  %2695 = vmatpush1.msra.mxu0 0.0
  %2696 = vmatprep.subr.mxu0 0.0
  %2697 = vmatpush1.msra.mxu0 0.0
  %2698 = vmatprep.subr.mxu0 0.0
  %2699 = vmatpush1.msra.mxu0 0.0
  %2700 = vmatprep.subr.mxu0 0.0
  %2701 = vmatpush1.msra.mxu0 0.0
  %2702 = vmatprep.subr.mxu0 0.0
  %2703 = vmatpush1.msra.mxu0 0.0
  %2704 = vmatprep.subr.mxu0 0.0
  %2705 = vmatpush1.msra.mxu0 0.0
  %2706 = vmatprep.subr.mxu0 0.0
  %2707 = vmatpush1.msra.mxu0 0.0
  %2708 = vmatprep.subr.mxu0 0.0
  %2709 = vmatpush1.msra.mxu0 0.0
  %2710 = vmatprep.subr.mxu0 0.0
  %2711 = vmatpush1.msra.mxu0 0.0
  %2712 = vmatprep.subr.mxu0 0.0
  %2713 = vmatpush1.msra.mxu0 0.0
  %2714 = vmatprep.subr.mxu0 0.0
  %2715 = vmatpush1.msra.mxu0 0.0
  %2716 = vmatprep.subr.mxu0 0.0
  %2717 = vmatpush1.msra.mxu0 0.0
  %2718 = vmatprep.subr.mxu0 0.0
  %2719 = vmatpush1.msra.mxu0 0.0
  %2720 = vmatprep.subr.mxu0 0.0
  %2721 = vmatpush1.msra.mxu0 0.0
  %2722 = vmatprep.mubr.f32.mxu0 0.0
  %2723 = vmatmul.mubr.f32.gmra.mrb[0].mxu0 %v2656
  %v2724 = vpop.f32.mrb[0].mxu0
  %v2725 = vadd.f32 0.0, %v2724
  %v2726 = vpop.f32.mrb[0].mxu0
  %v2727 = vadd.f32 0.0, %v2726
  %2728 = vdwg.mxu0
  %2729 = vmatprep.subr.mxu0 %v1935
  %2730 = vmatpush1.msra.mxu0 %v1934
  %2731 = vmatprep.subr.mxu0 0.0
  %2732 = vmatpush1.msra.mxu0 0.0
  %2733 = vmatprep.subr.mxu0 0.0
  %2734 = vmatpush1.msra.mxu0 0.0
  %2735 = vmatprep.subr.mxu0 0.0
  %2736 = vmatpush1.msra.mxu0 0.0
  %2737 = vmatprep.subr.mxu0 0.0
  %2738 = vmatpush1.msra.mxu0 0.0
  %2739 = vmatprep.subr.mxu0 0.0
  %2740 = vmatpush1.msra.mxu0 0.0
  %2741 = vmatprep.subr.mxu0 0.0
  %2742 = vmatpush1.msra.mxu0 0.0
  %2743 = vmatprep.subr.mxu0 0.0
  %2744 = vmatpush1.msra.mxu0 0.0
  %2745 = vmatprep.subr.mxu0 0.0
  %2746 = vmatpush1.msra.mxu0 0.0
  %2747 = vmatprep.subr.mxu0 0.0
  %2748 = vmatpush1.msra.mxu0 0.0
  %2749 = vmatprep.subr.mxu0 0.0
  %2750 = vmatpush1.msra.mxu0 0.0
  %2751 = vmatprep.subr.mxu0 0.0
  %2752 = vmatpush1.msra.mxu0 0.0
  %2753 = vmatprep.subr.mxu0 0.0
  %2754 = vmatpush1.msra.mxu0 0.0
  %2755 = vmatprep.subr.mxu0 0.0
  %2756 = vmatpush1.msra.mxu0 0.0
  %2757 = vmatprep.subr.mxu0 0.0
  %2758 = vmatpush1.msra.mxu0 0.0
  %2759 = vmatprep.subr.mxu0 0.0
  %2760 = vmatpush1.msra.mxu0 0.0
  %2761 = vmatprep.subr.mxu0 0.0
  %2762 = vmatpush1.msra.mxu0 0.0
  %2763 = vmatprep.subr.mxu0 0.0
  %2764 = vmatpush1.msra.mxu0 0.0
  %2765 = vmatprep.subr.mxu0 0.0
  %2766 = vmatpush1.msra.mxu0 0.0
  %2767 = vmatprep.subr.mxu0 0.0
  %2768 = vmatpush1.msra.mxu0 0.0
  %2769 = vmatprep.subr.mxu0 0.0
  %2770 = vmatpush1.msra.mxu0 0.0
  %2771 = vmatprep.subr.mxu0 0.0
  %2772 = vmatpush1.msra.mxu0 0.0
  %2773 = vmatprep.subr.mxu0 0.0
  %2774 = vmatpush1.msra.mxu0 0.0
  %2775 = vmatprep.subr.mxu0 0.0
  %2776 = vmatpush1.msra.mxu0 0.0
  %2777 = vmatprep.subr.mxu0 0.0
  %2778 = vmatpush1.msra.mxu0 0.0
  %2779 = vmatprep.subr.mxu0 0.0
  %2780 = vmatpush1.msra.mxu0 0.0
  %2781 = vmatprep.subr.mxu0 0.0
  %2782 = vmatpush1.msra.mxu0 0.0
  %2783 = vmatprep.subr.mxu0 0.0
  %2784 = vmatpush1.msra.mxu0 0.0
  %2785 = vmatprep.subr.mxu0 0.0
  %2786 = vmatpush1.msra.mxu0 0.0
  %2787 = vmatprep.subr.mxu0 0.0
  %2788 = vmatpush1.msra.mxu0 0.0
  %2789 = vmatprep.subr.mxu0 0.0
  %2790 = vmatpush1.msra.mxu0 0.0
  %2791 = vmatprep.subr.mxu0 0.0
  %2792 = vmatpush1.msra.mxu0 0.0
  %2793 = vmatprep.mubr.f32.mxu0 0.0
  %2794 = vmatmul.mubr.f32.gmra.mrb[0].mxu0 %v2656
  %v2795 = vpop.f32.mrb[0].mxu0
  %v2796 = vadd.f32 0.0, %v2795
  %v2797 = vpop.f32.mrb[0].mxu0
  %v2798 = vadd.f32 0.0, %v2797
  %2799 = vdwg.mxu0
  %v2800 = vadd.f32 %v2649, %v2725
  %v2801 = vadd.f32 %v2650, %v2727
  %v2802 = vadd.f32 %v2651, %v2796
  %v2803 = vadd.f32 %v2652, %v2798
  %v2804 = vld [vmem:[#allocation2 + $0x8] sm:$0xff]
  %v2805 = vld [vmem:[#allocation2 + $0x10] sm:$0xff]
  %v2806 = vld [vmem:[#allocation2 + $0x18] sm:$0xff]
  %v2807 = vld [vmem:[#allocation2 + $0x20] sm:$0xff]
  %v2808 = vld [vmem:[#allocation2 + $0x28] sm:$0xff]
  %v2809 = vmul.f32 %v2804, %v1075
  %v2810 = vmul.f32 %v2805, %v1082
  %v2811 = vmul.f32 %v2806, %v1083
  %v2812 = vmul.f32 %v2807, %v1084
  %v2813 = vmul.f32 %v2808, %v1081
  %s2814 = scalar_lea.vmem %s3, 40
  %v2815 = vld [vmem:[%s2814] sm:$0xff]
  %2821 = vrot.lane.b32.xlu0 %v2809, 127
  %v2822 = vpop.permute.xlu0 %2821
  %2823 = vrot.lane.b32.xlu0 %v2810, 127
  %v2824 = vpop.permute.xlu0 %2823
  %2825 = vrot.lane.b32.xlu0 %v2811, 127
  %v2826 = vpop.permute.xlu0 %2825
  %2827 = vrot.lane.b32.xlu0 %v2812, 127
  %v2828 = vpop.permute.xlu0 %2827
  %2829 = vrot.lane.b32.xlu0 %v2813, 127
  %v2830 = vpop.permute.xlu0 %2829
  %v2831 = vsel %vm729, %v2822, %v2824
  %v2832 = vsel %vm729, %v2824, %v2826
  %v2833 = vsel %vm729, %v2826, %v2828
  %v2834 = vsel %vm729, %v2828, %v2830
  %v2840 = vsel %vm171, %v2815, 0
  %2842 = vmatprep.subr.mxu0 %v2832
  %2843 = vmatpush1.msra.mxu0 %v2831
  %2844 = vmatprep.subr.mxu0 0.0
  %2845 = vmatpush1.msra.mxu0 0.0
  %2846 = vmatprep.subr.mxu0 0.0
  %2847 = vmatpush1.msra.mxu0 0.0
  %2848 = vmatprep.subr.mxu0 0.0
  %2849 = vmatpush1.msra.mxu0 0.0
  %2850 = vmatprep.subr.mxu0 0.0
  %2851 = vmatpush1.msra.mxu0 0.0
  %2852 = vmatprep.subr.mxu0 0.0
  %2853 = vmatpush1.msra.mxu0 0.0
  %2854 = vmatprep.subr.mxu0 0.0
  %2855 = vmatpush1.msra.mxu0 0.0
  %2856 = vmatprep.subr.mxu0 0.0
  %2857 = vmatpush1.msra.mxu0 0.0
  %2858 = vmatprep.subr.mxu0 0.0
  %2859 = vmatpush1.msra.mxu0 0.0
  %2860 = vmatprep.subr.mxu0 0.0
  %2861 = vmatpush1.msra.mxu0 0.0
  %2862 = vmatprep.subr.mxu0 0.0
  %2863 = vmatpush1.msra.mxu0 0.0
  %2864 = vmatprep.subr.mxu0 0.0
  %2865 = vmatpush1.msra.mxu0 0.0
  %2866 = vmatprep.subr.mxu0 0.0
  %2867 = vmatpush1.msra.mxu0 0.0
  %2868 = vmatprep.subr.mxu0 0.0
  %2869 = vmatpush1.msra.mxu0 0.0
  %2870 = vmatprep.subr.mxu0 0.0
  %2871 = vmatpush1.msra.mxu0 0.0
  %2872 = vmatprep.subr.mxu0 0.0
  %2873 = vmatpush1.msra.mxu0 0.0
  %2874 = vmatprep.subr.mxu0 0.0
  %2875 = vmatpush1.msra.mxu0 0.0
  %2876 = vmatprep.subr.mxu0 0.0
  %2877 = vmatpush1.msra.mxu0 0.0
  %2878 = vmatprep.subr.mxu0 0.0
  %2879 = vmatpush1.msra.mxu0 0.0
  %2880 = vmatprep.subr.mxu0 0.0
  %2881 = vmatpush1.msra.mxu0 0.0
  %2882 = vmatprep.subr.mxu0 0.0
  %2883 = vmatpush1.msra.mxu0 0.0
  %2884 = vmatprep.subr.mxu0 0.0
  %2885 = vmatpush1.msra.mxu0 0.0
  %2886 = vmatprep.subr.mxu0 0.0
  %2887 = vmatpush1.msra.mxu0 0.0
  %2888 = vmatprep.subr.mxu0 0.0
  %2889 = vmatpush1.msra.mxu0 0.0
  %2890 = vmatprep.subr.mxu0 0.0
  %2891 = vmatpush1.msra.mxu0 0.0
  %2892 = vmatprep.subr.mxu0 0.0
  %2893 = vmatpush1.msra.mxu0 0.0
  %2894 = vmatprep.subr.mxu0 0.0
  %2895 = vmatpush1.msra.mxu0 0.0
  %2896 = vmatprep.subr.mxu0 0.0
  %2897 = vmatpush1.msra.mxu0 0.0
  %2898 = vmatprep.subr.mxu0 0.0
  %2899 = vmatpush1.msra.mxu0 0.0
  %2900 = vmatprep.subr.mxu0 0.0
  %2901 = vmatpush1.msra.mxu0 0.0
  %2902 = vmatprep.subr.mxu0 0.0
  %2903 = vmatpush1.msra.mxu0 0.0
  %2904 = vmatprep.subr.mxu0 0.0
  %2905 = vmatpush1.msra.mxu0 0.0
  %2906 = vmatprep.mubr.f32.mxu0 0.0
  %2907 = vmatmul.mubr.f32.gmra.mrb[0].mxu0 %v2840
  %v2908 = vpop.f32.mrb[0].mxu0
  %v2909 = vadd.f32 0.0, %v2908
  %v2910 = vpop.f32.mrb[0].mxu0
  %v2911 = vadd.f32 0.0, %v2910
  %2912 = vdwg.mxu0
  %2913 = vmatprep.subr.mxu0 %v2834
  %2914 = vmatpush1.msra.mxu0 %v2833
  %2915 = vmatprep.subr.mxu0 0.0
  %2916 = vmatpush1.msra.mxu0 0.0
  %2917 = vmatprep.subr.mxu0 0.0
  %2918 = vmatpush1.msra.mxu0 0.0
  %2919 = vmatprep.subr.mxu0 0.0
  %2920 = vmatpush1.msra.mxu0 0.0
  %2921 = vmatprep.subr.mxu0 0.0
  %2922 = vmatpush1.msra.mxu0 0.0
  %2923 = vmatprep.subr.mxu0 0.0
  %2924 = vmatpush1.msra.mxu0 0.0
  %2925 = vmatprep.subr.mxu0 0.0
  %2926 = vmatpush1.msra.mxu0 0.0
  %2927 = vmatprep.subr.mxu0 0.0
  %2928 = vmatpush1.msra.mxu0 0.0
  %2929 = vmatprep.subr.mxu0 0.0
  %2930 = vmatpush1.msra.mxu0 0.0
  %2931 = vmatprep.subr.mxu0 0.0
  %2932 = vmatpush1.msra.mxu0 0.0
  %2933 = vmatprep.subr.mxu0 0.0
  %2934 = vmatpush1.msra.mxu0 0.0
  %2935 = vmatprep.subr.mxu0 0.0
  %2936 = vmatpush1.msra.mxu0 0.0
  %2937 = vmatprep.subr.mxu0 0.0
  %2938 = vmatpush1.msra.mxu0 0.0
  %2939 = vmatprep.subr.mxu0 0.0
  %2940 = vmatpush1.msra.mxu0 0.0
  %2941 = vmatprep.subr.mxu0 0.0
  %2942 = vmatpush1.msra.mxu0 0.0
  %2943 = vmatprep.subr.mxu0 0.0
  %2944 = vmatpush1.msra.mxu0 0.0
  %2945 = vmatprep.subr.mxu0 0.0
  %2946 = vmatpush1.msra.mxu0 0.0
  %2947 = vmatprep.subr.mxu0 0.0
  %2948 = vmatpush1.msra.mxu0 0.0
  %2949 = vmatprep.subr.mxu0 0.0
  %2950 = vmatpush1.msra.mxu0 0.0
  %2951 = vmatprep.subr.mxu0 0.0
  %2952 = vmatpush1.msra.mxu0 0.0
  %2953 = vmatprep.subr.mxu0 0.0
  %2954 = vmatpush1.msra.mxu0 0.0
  %2955 = vmatprep.subr.mxu0 0.0
  %2956 = vmatpush1.msra.mxu0 0.0
  %2957 = vmatprep.subr.mxu0 0.0
  %2958 = vmatpush1.msra.mxu0 0.0
  %2959 = vmatprep.subr.mxu0 0.0
  %2960 = vmatpush1.msra.mxu0 0.0
  %2961 = vmatprep.subr.mxu0 0.0
  %2962 = vmatpush1.msra.mxu0 0.0
  %2963 = vmatprep.subr.mxu0 0.0
  %2964 = vmatpush1.msra.mxu0 0.0
  %2965 = vmatprep.subr.mxu0 0.0
  %2966 = vmatpush1.msra.mxu0 0.0
  %2967 = vmatprep.subr.mxu0 0.0
  %2968 = vmatpush1.msra.mxu0 0.0
  %2969 = vmatprep.subr.mxu0 0.0
  %2970 = vmatpush1.msra.mxu0 0.0
  %2971 = vmatprep.subr.mxu0 0.0
  %2972 = vmatpush1.msra.mxu0 0.0
  %2973 = vmatprep.subr.mxu0 0.0
  %2974 = vmatpush1.msra.mxu0 0.0
  %2975 = vmatprep.subr.mxu0 0.0
  %2976 = vmatpush1.msra.mxu0 0.0
  %2977 = vmatprep.mubr.f32.mxu0 0.0
  %2978 = vmatmul.mubr.f32.gmra.mrb[0].mxu0 %v2840
  %v2979 = vpop.f32.mrb[0].mxu0
  %v2980 = vadd.f32 0.0, %v2979
  %v2981 = vpop.f32.mrb[0].mxu0
  %v2982 = vadd.f32 0.0, %v2981
  %2983 = vdwg.mxu0
  %v2984 = vadd.f32 %v2800, %v2909
  %v2985 = vadd.f32 %v2801, %v2911
  %v2986 = vadd.f32 %v2802, %v2980
  %v2987 = vadd.f32 %v2803, %v2982
  %v2988 = vmul.f32 %v2804, %v1287
  %v2989 = vmul.f32 %v2805, %v1294
  %v2990 = vmul.f32 %v2806, %v1295
  %v2991 = vmul.f32 %v2807, %v1296
  %v2992 = vmul.f32 %v2808, %v1293
  %v2993 = vmul.f32 %v2988, %v1308
  %v2994 = vmul.f32 %v2989, %v1315
  %v2995 = vmul.f32 %v2990, %v1316
  %v2996 = vmul.f32 %v2991, %v1317
  %v2997 = vmul.f32 %v2992, %v1314
  %s2998 = scalar_lea.vmem %s3, 48
  %v2999 = vld [vmem:[%s2998] sm:$0xff]
  %3005 = vrot.lane.b32.xlu0 %v2993, 113
  %v3006 = vpop.permute.xlu0 %3005
  %3007 = vrot.lane.b32.xlu0 %v2994, 113
  %v3008 = vpop.permute.xlu0 %3007
  %3009 = vrot.lane.b32.xlu0 %v2995, 113
  %v3010 = vpop.permute.xlu0 %3009
  %3011 = vrot.lane.b32.xlu0 %v2996, 113
  %v3012 = vpop.permute.xlu0 %3011
  %3013 = vrot.lane.b32.xlu0 %v2997, 113
  %v3014 = vpop.permute.xlu0 %3013
  %v3015 = vsel %vm494, %v3006, %v3008
  %v3016 = vsel %vm494, %v3008, %v3010
  %v3017 = vsel %vm494, %v3010, %v3012
  %v3018 = vsel %vm494, %v3012, %v3014
  %v3024 = vsel %vm171, %v2999, 0
  %3026 = vmatprep.subr.mxu0 %v3016
  %3027 = vmatpush1.msra.mxu0 %v3015
  %3028 = vmatprep.subr.mxu0 0.0
  %3029 = vmatpush1.msra.mxu0 0.0
  %3030 = vmatprep.subr.mxu0 0.0
  %3031 = vmatpush1.msra.mxu0 0.0
  %3032 = vmatprep.subr.mxu0 0.0
  %3033 = vmatpush1.msra.mxu0 0.0
  %3034 = vmatprep.subr.mxu0 0.0
  %3035 = vmatpush1.msra.mxu0 0.0
  %3036 = vmatprep.subr.mxu0 0.0
  %3037 = vmatpush1.msra.mxu0 0.0
  %3038 = vmatprep.subr.mxu0 0.0
  %3039 = vmatpush1.msra.mxu0 0.0
  %3040 = vmatprep.subr.mxu0 0.0
  %3041 = vmatpush1.msra.mxu0 0.0
  %3042 = vmatprep.subr.mxu0 0.0
  %3043 = vmatpush1.msra.mxu0 0.0
  %3044 = vmatprep.subr.mxu0 0.0
  %3045 = vmatpush1.msra.mxu0 0.0
  %3046 = vmatprep.subr.mxu0 0.0
  %3047 = vmatpush1.msra.mxu0 0.0
  %3048 = vmatprep.subr.mxu0 0.0
  %3049 = vmatpush1.msra.mxu0 0.0
  %3050 = vmatprep.subr.mxu0 0.0
  %3051 = vmatpush1.msra.mxu0 0.0
  %3052 = vmatprep.subr.mxu0 0.0
  %3053 = vmatpush1.msra.mxu0 0.0
  %3054 = vmatprep.subr.mxu0 0.0
  %3055 = vmatpush1.msra.mxu0 0.0
  %3056 = vmatprep.subr.mxu0 0.0
  %3057 = vmatpush1.msra.mxu0 0.0
  %3058 = vmatprep.subr.mxu0 0.0
  %3059 = vmatpush1.msra.mxu0 0.0
  %3060 = vmatprep.subr.mxu0 0.0
  %3061 = vmatpush1.msra.mxu0 0.0
  %3062 = vmatprep.subr.mxu0 0.0
  %3063 = vmatpush1.msra.mxu0 0.0
  %3064 = vmatprep.subr.mxu0 0.0
  %3065 = vmatpush1.msra.mxu0 0.0
  %3066 = vmatprep.subr.mxu0 0.0
  %3067 = vmatpush1.msra.mxu0 0.0
  %3068 = vmatprep.subr.mxu0 0.0
  %3069 = vmatpush1.msra.mxu0 0.0
  %3070 = vmatprep.subr.mxu0 0.0
  %3071 = vmatpush1.msra.mxu0 0.0
  %3072 = vmatprep.subr.mxu0 0.0
  %3073 = vmatpush1.msra.mxu0 0.0
  %3074 = vmatprep.subr.mxu0 0.0
  %3075 = vmatpush1.msra.mxu0 0.0
  %3076 = vmatprep.subr.mxu0 0.0
  %3077 = vmatpush1.msra.mxu0 0.0
  %3078 = vmatprep.subr.mxu0 0.0
  %3079 = vmatpush1.msra.mxu0 0.0
  %3080 = vmatprep.subr.mxu0 0.0
  %3081 = vmatpush1.msra.mxu0 0.0
  %3082 = vmatprep.subr.mxu0 0.0
  %3083 = vmatpush1.msra.mxu0 0.0
  %3084 = vmatprep.subr.mxu0 0.0
  %3085 = vmatpush1.msra.mxu0 0.0
  %3086 = vmatprep.subr.mxu0 0.0
  %3087 = vmatpush1.msra.mxu0 0.0
  %3088 = vmatprep.subr.mxu0 0.0
  %3089 = vmatpush1.msra.mxu0 0.0
  %3090 = vmatprep.mubr.f32.mxu0 0.0
  %3091 = vmatmul.mubr.f32.gmra.mrb[0].mxu0 %v3024
  %v3092 = vpop.f32.mrb[0].mxu0
  %v3093 = vadd.f32 0.0, %v3092
  %v3094 = vpop.f32.mrb[0].mxu0
  %v3095 = vadd.f32 0.0, %v3094
  %3096 = vdwg.mxu0
  %3097 = vmatprep.subr.mxu0 %v3018
  %3098 = vmatpush1.msra.mxu0 %v3017
  %3099 = vmatprep.subr.mxu0 0.0
  %3100 = vmatpush1.msra.mxu0 0.0
  %3101 = vmatprep.subr.mxu0 0.0
  %3102 = vmatpush1.msra.mxu0 0.0
  %3103 = vmatprep.subr.mxu0 0.0
  %3104 = vmatpush1.msra.mxu0 0.0
  %3105 = vmatprep.subr.mxu0 0.0
  %3106 = vmatpush1.msra.mxu0 0.0
  %3107 = vmatprep.subr.mxu0 0.0
  %3108 = vmatpush1.msra.mxu0 0.0
  %3109 = vmatprep.subr.mxu0 0.0
  %3110 = vmatpush1.msra.mxu0 0.0
  %3111 = vmatprep.subr.mxu0 0.0
  %3112 = vmatpush1.msra.mxu0 0.0
  %3113 = vmatprep.subr.mxu0 0.0
  %3114 = vmatpush1.msra.mxu0 0.0
  %3115 = vmatprep.subr.mxu0 0.0
  %3116 = vmatpush1.msra.mxu0 0.0
  %3117 = vmatprep.subr.mxu0 0.0
  %3118 = vmatpush1.msra.mxu0 0.0
  %3119 = vmatprep.subr.mxu0 0.0
  %3120 = vmatpush1.msra.mxu0 0.0
  %3121 = vmatprep.subr.mxu0 0.0
  %3122 = vmatpush1.msra.mxu0 0.0
  %3123 = vmatprep.subr.mxu0 0.0
  %3124 = vmatpush1.msra.mxu0 0.0
  %3125 = vmatprep.subr.mxu0 0.0
  %3126 = vmatpush1.msra.mxu0 0.0
  %3127 = vmatprep.subr.mxu0 0.0
  %3128 = vmatpush1.msra.mxu0 0.0
  %3129 = vmatprep.subr.mxu0 0.0
  %3130 = vmatpush1.msra.mxu0 0.0
  %3131 = vmatprep.subr.mxu0 0.0
  %3132 = vmatpush1.msra.mxu0 0.0
  %3133 = vmatprep.subr.mxu0 0.0
  %3134 = vmatpush1.msra.mxu0 0.0
  %3135 = vmatprep.subr.mxu0 0.0
  %3136 = vmatpush1.msra.mxu0 0.0
  %3137 = vmatprep.subr.mxu0 0.0
  %3138 = vmatpush1.msra.mxu0 0.0
  %3139 = vmatprep.subr.mxu0 0.0
  %3140 = vmatpush1.msra.mxu0 0.0
  %3141 = vmatprep.subr.mxu0 0.0
  %3142 = vmatpush1.msra.mxu0 0.0
  %3143 = vmatprep.subr.mxu0 0.0
  %3144 = vmatpush1.msra.mxu0 0.0
  %3145 = vmatprep.subr.mxu0 0.0
  %3146 = vmatpush1.msra.mxu0 0.0
  %3147 = vmatprep.subr.mxu0 0.0
  %3148 = vmatpush1.msra.mxu0 0.0
  %3149 = vmatprep.subr.mxu0 0.0
  %3150 = vmatpush1.msra.mxu0 0.0
  %3151 = vmatprep.subr.mxu0 0.0
  %3152 = vmatpush1.msra.mxu0 0.0
  %3153 = vmatprep.subr.mxu0 0.0
  %3154 = vmatpush1.msra.mxu0 0.0
  %3155 = vmatprep.subr.mxu0 0.0
  %3156 = vmatpush1.msra.mxu0 0.0
  %3157 = vmatprep.subr.mxu0 0.0
  %3158 = vmatpush1.msra.mxu0 0.0
  %3159 = vmatprep.subr.mxu0 0.0
  %3160 = vmatpush1.msra.mxu0 0.0
  %3161 = vmatprep.mubr.f32.mxu0 0.0
  %3162 = vmatmul.mubr.f32.gmra.mrb[0].mxu0 %v3024
  %v3163 = vpop.f32.mrb[0].mxu0
  %v3164 = vadd.f32 0.0, %v3163
  %v3165 = vpop.f32.mrb[0].mxu0
  %v3166 = vadd.f32 0.0, %v3165
  %3167 = vdwg.mxu0
  %v3168 = vadd.f32 %v2984, %v3093
  %v3169 = vadd.f32 %v2985, %v3095
  %v3170 = vadd.f32 %v2986, %v3164
  %v3171 = vadd.f32 %v2987, %v3166
  %v3172 = vmul.f32 %v2804, %v1503
  %v3173 = vmul.f32 %v2805, %v1510
  %v3174 = vmul.f32 %v2806, %v1511
  %v3175 = vmul.f32 %v2807, %v1512
  %v3176 = vmul.f32 %v2808, %v1509
  %s3177 = scalar_lea.vmem %s3, 56
  %v3178 = vld [vmem:[%s3177] sm:$0xff]
  %3184 = vrot.lane.b32.xlu0 %v3172, 112
  %v3185 = vpop.permute.xlu0 %3184
  %3186 = vrot.lane.b32.xlu0 %v3173, 112
  %v3187 = vpop.permute.xlu0 %3186
  %3188 = vrot.lane.b32.xlu0 %v3174, 112
  %v3189 = vpop.permute.xlu0 %3188
  %3190 = vrot.lane.b32.xlu0 %v3175, 112
  %v3191 = vpop.permute.xlu0 %3190
  %3192 = vrot.lane.b32.xlu0 %v3176, 112
  %v3193 = vpop.permute.xlu0 %3192
  %v3194 = vsel %vm131, %v3185, %v3187
  %v3195 = vsel %vm131, %v3187, %v3189
  %v3196 = vsel %vm131, %v3189, %v3191
  %v3197 = vsel %vm131, %v3191, %v3193
  %v3203 = vsel %vm171, %v3178, 0
  %3205 = vmatprep.subr.mxu0 %v3195
  %3206 = vmatpush1.msra.mxu0 %v3194
  %3207 = vmatprep.subr.mxu0 0.0
  %3208 = vmatpush1.msra.mxu0 0.0
  %3209 = vmatprep.subr.mxu0 0.0
  %3210 = vmatpush1.msra.mxu0 0.0
  %3211 = vmatprep.subr.mxu0 0.0
  %3212 = vmatpush1.msra.mxu0 0.0
  %3213 = vmatprep.subr.mxu0 0.0
  %3214 = vmatpush1.msra.mxu0 0.0
  %3215 = vmatprep.subr.mxu0 0.0
  %3216 = vmatpush1.msra.mxu0 0.0
  %3217 = vmatprep.subr.mxu0 0.0
  %3218 = vmatpush1.msra.mxu0 0.0
  %3219 = vmatprep.subr.mxu0 0.0
  %3220 = vmatpush1.msra.mxu0 0.0
  %3221 = vmatprep.subr.mxu0 0.0
  %3222 = vmatpush1.msra.mxu0 0.0
  %3223 = vmatprep.subr.mxu0 0.0
  %3224 = vmatpush1.msra.mxu0 0.0
  %3225 = vmatprep.subr.mxu0 0.0
  %3226 = vmatpush1.msra.mxu0 0.0
  %3227 = vmatprep.subr.mxu0 0.0
  %3228 = vmatpush1.msra.mxu0 0.0
  %3229 = vmatprep.subr.mxu0 0.0
  %3230 = vmatpush1.msra.mxu0 0.0
  %3231 = vmatprep.subr.mxu0 0.0
  %3232 = vmatpush1.msra.mxu0 0.0
  %3233 = vmatprep.subr.mxu0 0.0
  %3234 = vmatpush1.msra.mxu0 0.0
  %3235 = vmatprep.subr.mxu0 0.0
  %3236 = vmatpush1.msra.mxu0 0.0
  %3237 = vmatprep.subr.mxu0 0.0
  %3238 = vmatpush1.msra.mxu0 0.0
  %3239 = vmatprep.subr.mxu0 0.0
  %3240 = vmatpush1.msra.mxu0 0.0
  %3241 = vmatprep.subr.mxu0 0.0
  %3242 = vmatpush1.msra.mxu0 0.0
  %3243 = vmatprep.subr.mxu0 0.0
  %3244 = vmatpush1.msra.mxu0 0.0
  %3245 = vmatprep.subr.mxu0 0.0
  %3246 = vmatpush1.msra.mxu0 0.0
  %3247 = vmatprep.subr.mxu0 0.0
  %3248 = vmatpush1.msra.mxu0 0.0
  %3249 = vmatprep.subr.mxu0 0.0
  %3250 = vmatpush1.msra.mxu0 0.0
  %3251 = vmatprep.subr.mxu0 0.0
  %3252 = vmatpush1.msra.mxu0 0.0
  %3253 = vmatprep.subr.mxu0 0.0
  %3254 = vmatpush1.msra.mxu0 0.0
  %3255 = vmatprep.subr.mxu0 0.0
  %3256 = vmatpush1.msra.mxu0 0.0
  %3257 = vmatprep.subr.mxu0 0.0
  %3258 = vmatpush1.msra.mxu0 0.0
  %3259 = vmatprep.subr.mxu0 0.0
  %3260 = vmatpush1.msra.mxu0 0.0
  %3261 = vmatprep.subr.mxu0 0.0
  %3262 = vmatpush1.msra.mxu0 0.0
  %3263 = vmatprep.subr.mxu0 0.0
  %3264 = vmatpush1.msra.mxu0 0.0
  %3265 = vmatprep.subr.mxu0 0.0
  %3266 = vmatpush1.msra.mxu0 0.0
  %3267 = vmatprep.subr.mxu0 0.0
  %3268 = vmatpush1.msra.mxu0 0.0
  %3269 = vmatprep.mubr.f32.mxu0 0.0
  %3270 = vmatmul.mubr.f32.gmra.mrb[0].mxu0 %v3203
  %v3271 = vpop.f32.mrb[0].mxu0
  %v3272 = vadd.f32 0.0, %v3271
  %v3273 = vpop.f32.mrb[0].mxu0
  %v3274 = vadd.f32 0.0, %v3273
  %3275 = vdwg.mxu0
  %3276 = vmatprep.subr.mxu0 %v3197
  %3277 = vmatpush1.msra.mxu0 %v3196
  %3278 = vmatprep.subr.mxu0 0.0
  %3279 = vmatpush1.msra.mxu0 0.0
  %3280 = vmatprep.subr.mxu0 0.0
  %3281 = vmatpush1.msra.mxu0 0.0
  %3282 = vmatprep.subr.mxu0 0.0
  %3283 = vmatpush1.msra.mxu0 0.0
  %3284 = vmatprep.subr.mxu0 0.0
  %3285 = vmatpush1.msra.mxu0 0.0
  %3286 = vmatprep.subr.mxu0 0.0
  %3287 = vmatpush1.msra.mxu0 0.0
  %3288 = vmatprep.subr.mxu0 0.0
  %3289 = vmatpush1.msra.mxu0 0.0
  %3290 = vmatprep.subr.mxu0 0.0
  %3291 = vmatpush1.msra.mxu0 0.0
  %3292 = vmatprep.subr.mxu0 0.0
  %3293 = vmatpush1.msra.mxu0 0.0
  %3294 = vmatprep.subr.mxu0 0.0
  %3295 = vmatpush1.msra.mxu0 0.0
  %3296 = vmatprep.subr.mxu0 0.0
  %3297 = vmatpush1.msra.mxu0 0.0
  %3298 = vmatprep.subr.mxu0 0.0
  %3299 = vmatpush1.msra.mxu0 0.0
  %3300 = vmatprep.subr.mxu0 0.0
  %3301 = vmatpush1.msra.mxu0 0.0
  %3302 = vmatprep.subr.mxu0 0.0
  %3303 = vmatpush1.msra.mxu0 0.0
  %3304 = vmatprep.subr.mxu0 0.0
  %3305 = vmatpush1.msra.mxu0 0.0
  %3306 = vmatprep.subr.mxu0 0.0
  %3307 = vmatpush1.msra.mxu0 0.0
  %3308 = vmatprep.subr.mxu0 0.0
  %3309 = vmatpush1.msra.mxu0 0.0
  %3310 = vmatprep.subr.mxu0 0.0
  %3311 = vmatpush1.msra.mxu0 0.0
  %3312 = vmatprep.subr.mxu0 0.0
  %3313 = vmatpush1.msra.mxu0 0.0
  %3314 = vmatprep.subr.mxu0 0.0
  %3315 = vmatpush1.msra.mxu0 0.0
  %3316 = vmatprep.subr.mxu0 0.0
  %3317 = vmatpush1.msra.mxu0 0.0
  %3318 = vmatprep.subr.mxu0 0.0
  %3319 = vmatpush1.msra.mxu0 0.0
  %3320 = vmatprep.subr.mxu0 0.0
  %3321 = vmatpush1.msra.mxu0 0.0
  %3322 = vmatprep.subr.mxu0 0.0
  %3323 = vmatpush1.msra.mxu0 0.0
  %3324 = vmatprep.subr.mxu0 0.0
  %3325 = vmatpush1.msra.mxu0 0.0
  %3326 = vmatprep.subr.mxu0 0.0
  %3327 = vmatpush1.msra.mxu0 0.0
  %3328 = vmatprep.subr.mxu0 0.0
  %3329 = vmatpush1.msra.mxu0 0.0
  %3330 = vmatprep.subr.mxu0 0.0
  %3331 = vmatpush1.msra.mxu0 0.0
  %3332 = vmatprep.subr.mxu0 0.0
  %3333 = vmatpush1.msra.mxu0 0.0
  %3334 = vmatprep.subr.mxu0 0.0
  %3335 = vmatpush1.msra.mxu0 0.0
  %3336 = vmatprep.subr.mxu0 0.0
  %3337 = vmatpush1.msra.mxu0 0.0
  %3338 = vmatprep.subr.mxu0 0.0
  %3339 = vmatpush1.msra.mxu0 0.0
  %3340 = vmatprep.mubr.f32.mxu0 0.0
  %3341 = vmatmul.mubr.f32.gmra.mrb[0].mxu0 %v3203
  %v3342 = vpop.f32.mrb[0].mxu0
  %v3343 = vadd.f32 0.0, %v3342
  %v3344 = vpop.f32.mrb[0].mxu0
  %v3345 = vadd.f32 0.0, %v3344
  %3346 = vdwg.mxu0
  %v3347 = vadd.f32 %v3168, %v3272
  %v3348 = vadd.f32 %v3169, %v3274
  %v3349 = vadd.f32 %v3170, %v3343
  %v3350 = vadd.f32 %v3171, %v3345
  %v3351 = vmul.f32 %v2804, %v1698
  %v3352 = vmul.f32 %v2805, %v1705
  %v3353 = vmul.f32 %v2806, %v1706
  %v3354 = vmul.f32 %v2807, %v1707
  %v3355 = vmul.f32 %v2808, %v1704
  %v3356 = vmul.f32 %v3351, %v1719
  %v3357 = vmul.f32 %v3352, %v1726
  %v3358 = vmul.f32 %v3353, %v1727
  %v3359 = vmul.f32 %v3354, %v1728
  %v3360 = vmul.f32 %v3355, %v1725
  %s3361 = scalar_lea.vmem %s3, 64
  %v3362 = vld [vmem:[%s3361] sm:$0xff]
  %3368 = vrot.lane.b32.xlu0 %v3356, 111
  %v3369 = vpop.permute.xlu0 %3368
  %3370 = vrot.lane.b32.xlu0 %v3357, 111
  %v3371 = vpop.permute.xlu0 %3370
  %3372 = vrot.lane.b32.xlu0 %v3358, 111
  %v3373 = vpop.permute.xlu0 %3372
  %3374 = vrot.lane.b32.xlu0 %v3359, 111
  %v3375 = vpop.permute.xlu0 %3374
  %3376 = vrot.lane.b32.xlu0 %v3360, 111
  %v3377 = vpop.permute.xlu0 %3376
  %v3378 = vsel %vm70, %v3369, %v3371
  %v3379 = vsel %vm70, %v3371, %v3373
  %v3380 = vsel %vm70, %v3373, %v3375
  %v3381 = vsel %vm70, %v3375, %v3377
  %v3387 = vsel %vm171, %v3362, 0
  %3389 = vmatprep.subr.mxu0 %v3379
  %3390 = vmatpush1.msra.mxu0 %v3378
  %3391 = vmatprep.subr.mxu0 0.0
  %3392 = vmatpush1.msra.mxu0 0.0
  %3393 = vmatprep.subr.mxu0 0.0
  %3394 = vmatpush1.msra.mxu0 0.0
  %3395 = vmatprep.subr.mxu0 0.0
  %3396 = vmatpush1.msra.mxu0 0.0
  %3397 = vmatprep.subr.mxu0 0.0
  %3398 = vmatpush1.msra.mxu0 0.0
  %3399 = vmatprep.subr.mxu0 0.0
  %3400 = vmatpush1.msra.mxu0 0.0
  %3401 = vmatprep.subr.mxu0 0.0
  %3402 = vmatpush1.msra.mxu0 0.0
  %3403 = vmatprep.subr.mxu0 0.0
  %3404 = vmatpush1.msra.mxu0 0.0
  %3405 = vmatprep.subr.mxu0 0.0
  %3406 = vmatpush1.msra.mxu0 0.0
  %3407 = vmatprep.subr.mxu0 0.0
  %3408 = vmatpush1.msra.mxu0 0.0
  %3409 = vmatprep.subr.mxu0 0.0
  %3410 = vmatpush1.msra.mxu0 0.0
  %3411 = vmatprep.subr.mxu0 0.0
  %3412 = vmatpush1.msra.mxu0 0.0
  %3413 = vmatprep.subr.mxu0 0.0
  %3414 = vmatpush1.msra.mxu0 0.0
  %3415 = vmatprep.subr.mxu0 0.0
  %3416 = vmatpush1.msra.mxu0 0.0
  %3417 = vmatprep.subr.mxu0 0.0
  %3418 = vmatpush1.msra.mxu0 0.0
  %3419 = vmatprep.subr.mxu0 0.0
  %3420 = vmatpush1.msra.mxu0 0.0
  %3421 = vmatprep.subr.mxu0 0.0
  %3422 = vmatpush1.msra.mxu0 0.0
  %3423 = vmatprep.subr.mxu0 0.0
  %3424 = vmatpush1.msra.mxu0 0.0
  %3425 = vmatprep.subr.mxu0 0.0
  %3426 = vmatpush1.msra.mxu0 0.0
  %3427 = vmatprep.subr.mxu0 0.0
  %3428 = vmatpush1.msra.mxu0 0.0
  %3429 = vmatprep.subr.mxu0 0.0
  %3430 = vmatpush1.msra.mxu0 0.0
  %3431 = vmatprep.subr.mxu0 0.0
  %3432 = vmatpush1.msra.mxu0 0.0
  %3433 = vmatprep.subr.mxu0 0.0
  %3434 = vmatpush1.msra.mxu0 0.0
  %3435 = vmatprep.subr.mxu0 0.0
  %3436 = vmatpush1.msra.mxu0 0.0
  %3437 = vmatprep.subr.mxu0 0.0
  %3438 = vmatpush1.msra.mxu0 0.0
  %3439 = vmatprep.subr.mxu0 0.0
  %3440 = vmatpush1.msra.mxu0 0.0
  %3441 = vmatprep.subr.mxu0 0.0
  %3442 = vmatpush1.msra.mxu0 0.0
  %3443 = vmatprep.subr.mxu0 0.0
  %3444 = vmatpush1.msra.mxu0 0.0
  %3445 = vmatprep.subr.mxu0 0.0
  %3446 = vmatpush1.msra.mxu0 0.0
  %3447 = vmatprep.subr.mxu0 0.0
  %3448 = vmatpush1.msra.mxu0 0.0
  %3449 = vmatprep.subr.mxu0 0.0
  %3450 = vmatpush1.msra.mxu0 0.0
  %3451 = vmatprep.subr.mxu0 0.0
  %3452 = vmatpush1.msra.mxu0 0.0
  %3453 = vmatprep.mubr.f32.mxu0 0.0
  %3454 = vmatmul.mubr.f32.gmra.mrb[0].mxu0 %v3387
  %v3455 = vpop.f32.mrb[0].mxu0
  %v3456 = vadd.f32 0.0, %v3455
  %v3457 = vpop.f32.mrb[0].mxu0
  %v3458 = vadd.f32 0.0, %v3457
  %3459 = vdwg.mxu0
  %3460 = vmatprep.subr.mxu0 %v3381
  %3461 = vmatpush1.msra.mxu0 %v3380
  %3462 = vmatprep.subr.mxu0 0.0
  %3463 = vmatpush1.msra.mxu0 0.0
  %3464 = vmatprep.subr.mxu0 0.0
  %3465 = vmatpush1.msra.mxu0 0.0
  %3466 = vmatprep.subr.mxu0 0.0
  %3467 = vmatpush1.msra.mxu0 0.0
  %3468 = vmatprep.subr.mxu0 0.0
  %3469 = vmatpush1.msra.mxu0 0.0
  %3470 = vmatprep.subr.mxu0 0.0
  %3471 = vmatpush1.msra.mxu0 0.0
  %3472 = vmatprep.subr.mxu0 0.0
  %3473 = vmatpush1.msra.mxu0 0.0
  %3474 = vmatprep.subr.mxu0 0.0
  %3475 = vmatpush1.msra.mxu0 0.0
  %3476 = vmatprep.subr.mxu0 0.0
  %3477 = vmatpush1.msra.mxu0 0.0
  %3478 = vmatprep.subr.mxu0 0.0
  %3479 = vmatpush1.msra.mxu0 0.0
  %3480 = vmatprep.subr.mxu0 0.0
  %3481 = vmatpush1.msra.mxu0 0.0
  %3482 = vmatprep.subr.mxu0 0.0
  %3483 = vmatpush1.msra.mxu0 0.0
  %3484 = vmatprep.subr.mxu0 0.0
  %3485 = vmatpush1.msra.mxu0 0.0
  %3486 = vmatprep.subr.mxu0 0.0
  %3487 = vmatpush1.msra.mxu0 0.0
  %3488 = vmatprep.subr.mxu0 0.0
  %3489 = vmatpush1.msra.mxu0 0.0
  %3490 = vmatprep.subr.mxu0 0.0
  %3491 = vmatpush1.msra.mxu0 0.0
  %3492 = vmatprep.subr.mxu0 0.0
  %3493 = vmatpush1.msra.mxu0 0.0
  %3494 = vmatprep.subr.mxu0 0.0
  %3495 = vmatpush1.msra.mxu0 0.0
  %3496 = vmatprep.subr.mxu0 0.0
  %3497 = vmatpush1.msra.mxu0 0.0
  %3498 = vmatprep.subr.mxu0 0.0
  %3499 = vmatpush1.msra.mxu0 0.0
  %3500 = vmatprep.subr.mxu0 0.0
  %3501 = vmatpush1.msra.mxu0 0.0
  %3502 = vmatprep.subr.mxu0 0.0
  %3503 = vmatpush1.msra.mxu0 0.0
  %3504 = vmatprep.subr.mxu0 0.0
  %3505 = vmatpush1.msra.mxu0 0.0
  %3506 = vmatprep.subr.mxu0 0.0
  %3507 = vmatpush1.msra.mxu0 0.0
  %3508 = vmatprep.subr.mxu0 0.0
  %3509 = vmatpush1.msra.mxu0 0.0
  %3510 = vmatprep.subr.mxu0 0.0
  %3511 = vmatpush1.msra.mxu0 0.0
  %3512 = vmatprep.subr.mxu0 0.0
  %3513 = vmatpush1.msra.mxu0 0.0
  %3514 = vmatprep.subr.mxu0 0.0
  %3515 = vmatpush1.msra.mxu0 0.0
  %3516 = vmatprep.subr.mxu0 0.0
  %3517 = vmatpush1.msra.mxu0 0.0
  %3518 = vmatprep.subr.mxu0 0.0
  %3519 = vmatpush1.msra.mxu0 0.0
  %3520 = vmatprep.subr.mxu0 0.0
  %3521 = vmatpush1.msra.mxu0 0.0
  %3522 = vmatprep.subr.mxu0 0.0
  %3523 = vmatpush1.msra.mxu0 0.0
  %3524 = vmatprep.mubr.f32.mxu0 0.0
  %3525 = vmatmul.mubr.f32.gmra.mrb[0].mxu0 %v3387
  %v3526 = vpop.f32.mrb[0].mxu0
  %v3527 = vadd.f32 0.0, %v3526
  %v3528 = vpop.f32.mrb[0].mxu0
  %v3529 = vadd.f32 0.0, %v3528
  %3530 = vdwg.mxu0
  %v3531 = vadd.f32 %v3347, %v3456
  %v3532 = vadd.f32 %v3348, %v3458
  %v3533 = vadd.f32 %v3349, %v3527
  %v3534 = vadd.f32 %v3350, %v3529
  %v3535 = vld [vmem:[%s4] sm:$0xff]
  %3537 = vset.pattern.permute.xlu0 0
  %3538 = vperm.xlu0 %3537, %v3535
  %v3539 = vpop.permute.xlu0 %3538
  %v3541 = vadd.f32 %v3531, %v3539
  %v3542 = vadd.f32 %v3532, %v3539
  %v3543 = vadd.f32 %v3533, %v3539
  %v3544 = vadd.f32 %v3534, %v3539
  %v3545 = vadd.f32 %v3541, %v32
  %v3546 = vadd.f32 %v3542, %v33
  %v3547 = vadd.f32 %v3543, %v34
  %v3548 = vadd.f32 %v3544, %v35
  %v3549 = vmax.f32 %v3545, 0.0
  %v3550 = vmax.f32 %v3546, 0.0
  %v3551 = vmax.f32 %v3547, 0.0
  %v3552 = vmax.f32 %v3548, 0.0
  %3553 = vst [vmem:[%s6] sm:$0xff] %v3549
  %3554 = vst [vmem:[%s6 + $0x8] sm:$0xff] %v3550
  %3555 = vst [vmem:[%s6 + $0x10] sm:$0xff] %v3551
  %3556 = vst [vmem:[%s6 + $0x18] sm:$0xff] %v3552
  // Predicated region
  $region26: #{basic_block_forward.1} parent=0 // pred_check
    _
  $region27: #{basic_block_forward.1} parent=0 // pred_check_branch
    %3558 = sbr.rel (0) target = $region29
  $region28: #{basic_block_forward.1} parent=0 // pred_region
    _
  $region29: #{basic_block_forward.1} parent=0 // pred_fallthru
    _
  // Predicated region
  $region30: #{basic_block_forward.1} parent=0 // pred_check
    _
  $region31: #{basic_block_forward.1} parent=0 // pred_check_branch
    %3560 = sbr.rel (0) target = $region33
  $region32: #{basic_block_forward.1} parent=0 // pred_region
    _
  $region33: #{basic_block_forward.1} parent=0 // pred_fallthru
    _

</llo_original>
